<compile_context>
chip_gen: v5e
topology: v5e:2x2
jax: 0.10.0
libtpu: 0.0.40
codegen_flags: <defaults>
</compile_context>

<pallas_src>
import numpy as np
import jax
import jax.numpy as jnp
from jax import lax
from jax.experimental import pallas as pl
from jax.experimental.pallas import tpu as pltpu


_CONV_SHAPES = [(8, 1), (16, 8), (16, 16), (32, 16), (64, 32), (64, 64), (64, 64)]


# ---------------- host-side constant builders --------------------------------

def _geom(H, W):
    Wp, Hp = W + 2, H + 2
    Mi = H * Wp                 # conv-output flat length (row width Wp, incl. wrap cols)
    Lp = Hp * Wp + 2            # zero-padded flat length (+2 so tap slices stay in range)
    return Wp, Hp, Mi, Lp


def _wrap_mask(H, W, bblk):
    """(1, bblk*Mi) 0/1 row zeroing the j>=W wrap-around columns of the tap GEMM."""
    Wp, _, Mi, _ = _geom(H, W)
    m = np.zeros((Mi,), np.float32)
    for i in range(H):
        m[i * Wp: i * Wp + W] = 1.0
    return np.tile(m, bblk)[None, :]


def _pool_select(H, W, compact):
    """(Mt, *) 0/1 gather matrix for MaxPool2d(2, stride=2, padding=1) outputs.

    Row m of the shifted-max array T (T[m] = max of the 2x2 window whose top-left
    sits at padded flat position m) is selected iff m = 2*po*Wp + 2*qo.
    compact=True targets the dense (Ho*Wo) layout (final pool, feeds Flatten),
    otherwise the next stage's zero-padded flat layout (borders come out 0).
    """
    Wp = W + 2
    Ho, Wo = H // 2 + 1, W // 2 + 1
    Mt = 2 * (Ho - 1) * Wp + 2 * (Wo - 1) + 1
    if compact:
        S = np.zeros((Mt, Ho * Wo), np.float32)
        for po in range(Ho):
            for qo in range(Wo):
                S[2 * po * Wp + 2 * qo, po * Wo + qo] = 1.0
    else:
        Wpn = Wo + 2
        Lpn = (Ho + 2) * Wpn + 2
        S = np.zeros((Mt, Lpn), np.float32)
        for po in range(Ho):
            for qo in range(Wo):
                S[2 * po * Wp + 2 * qo, (po + 1) * Wpn + (qo + 1)] = 1.0
    return S


def _pick_batch_block(B):
    # widest batch block that still leaves >= 2 grid steps (v7x has 2 TensorCores)
    for bb in (8, 4, 2):
        if B % bb == 0 and B // bb >= 2:
            return bb
    return 1


# ------------------------------ fused forward --------------------------------

def custom_cnn2d_forward(x, params):
    """x: (B, seq, feat) -> (B, 64 * Hf * Wf); matches CustomCNN2d.forward."""
    B, seq, feat = x.shape
    H1, W1 = feat, seq
    H2, W2 = H1 // 2 + 1, W1 // 2 + 1
    H3, W3 = H2 // 2 + 1, W2 // 2 + 1
    Hf, Wf = H3 // 2 + 1, W3 // 2 + 1

    Wp1, _, Mi1, LP1 = _geom(H1, W1)
    Wp2, _, Mi2, LP2 = _geom(H2, W2)
    Wp3, _, Mi3, LP3 = _geom(H3, W3)

    BB = _pick_batch_block(B)       # images per grid step (folded into lane axis)
    G = B // BB                     # grid length

    # glue: embed the single-channel input image into the zero-padded flat layout
    xt = jnp.swapaxes(x, 1, 2).astype(jnp.float32)            # (B, H1, W1) = (B, feat, seq)
    xp = jnp.pad(xt, ((0, 0), (1, 1), (1, 1)))                # (B, H1+2, W1+2)
    xf = xp.reshape(B, 1, (H1 + 2) * Wp1)
    xf = jnp.pad(xf, ((0, 0), (0, 0), (0, LP1 - (H1 + 2) * Wp1)))   # (B, 1, LP1)

    # weights: conv1 tap-major f32 (VPU outer product); convs 2..7 packed to
    # (Cout, 9*Cin) for one fused GEMM each.  conv2 stays f32 (its 8-row tap
    # stores would sit at half-tile sublane offsets in a packed bf16 buffer);
    # convs 3..7 are bf16 MXU operands with f32 accumulation.
    w1, b1 = params[0]
    wb = [jnp.transpose(w1, (2, 3, 0, 1)).reshape(9, 8, 1).astype(jnp.float32),
          b1.reshape(8, 1).astype(jnp.float32)]
    for li, (w, b) in enumerate(params[1:], start=1):
        cout, cin = int(w.shape[0]), int(w.shape[1])
        wdt = jnp.float32 if li == 1 else jnp.bfloat16
        wb.append(jnp.transpose(w, (0, 2, 3, 1)).reshape(cout, 9 * cin).astype(wdt))
        wb.append(b.reshape(cout, 1).astype(jnp.float32))

    # wrap-column masks + stride-2 pool gather matrices (tiny constants)
    m1 = jnp.asarray(_wrap_mask(H1, W1, BB))
    m2 = jnp.asarray(_wrap_mask(H2, W2, BB))
    m3 = jnp.asarray(_wrap_mask(H3, W3, BB))
    s1 = jnp.asarray(_pool_select(H1, W1, compact=False)).astype(jnp.bfloat16)
    s2 = jnp.asarray(_pool_select(H2, W2, compact=False)).astype(jnp.bfloat16)
    s3 = jnp.asarray(_pool_select(H3, W3, compact=True)).astype(jnp.bfloat16)

    def kernel(x_ref,
               w1r, b1r, w2r, b2r, w3r, b3r, w4r, b4r, w5r, b5r, w6r, b6r,
               w7r, b7r, m1r, m2r, m3r, s1r, s2r, s3r, o_ref,
               pad1a, pad1b, pad2a, pad2b, pad2c, pad3a, pad3b, pad3c, pad3d,
               tap1, tap2, tap3):

        def embed_store(dst, y, H, W):
            # mask already applied to y; write zero borders + shifted interior.
            # The whole scratch is rewritten every grid step (no cross-iteration
            # state), so "parallel" grid splitting is safe.
            Wp = W + 2
            Mi = H * Wp
            LP = (H + 2) * Wp + 2
            dst[...] = jnp.zeros_like(dst)
            for b in range(BB):
                dst[:, b * LP + Wp + 1: b * LP + Wp + 1 + Mi] = (
                    y[:, b * Mi:(b + 1) * Mi].astype(dst.dtype))

        def conv_fused(src, tap, w_ref, b_ref, mask_ref, H, W, cin):
            # 3x3 'same' conv + bias + ReLU as ONE (Cout, 9Cin) @ (9Cin, BB*Mi)
            # GEMM (f32 acc).  Nine shifted copies of the padded activation build
            # the K = 9*Cin tapped-activation operand.
            Wp = W + 2
            Mi = H * Wp
            LP = (H + 2) * Wp + 2
            for t in range(9):
                dy, dx = divmod(t, 3)
                s = dy * Wp + dx
                for b in range(BB):
                    tap[t * cin:(t + 1) * cin, b * Mi:(b + 1) * Mi] = (
                        src[:, b * LP + s: b * LP + s + Mi].astype(tap.dtype))
            y = jnp.dot(w_ref[...], tap[0:9 * cin, :],
                        preferred_element_type=jnp.float32)     # (Cout, BB*Mi)
            return jnp.maximum(y + b_ref[...], 0.0) * mask_ref[...]

        def pool(src, sel_ref, H, W):
            # MaxPool2d(2, stride=2, padding=1).  0-pad == -inf pad here because
            # the input is post-ReLU and every window holds a valid pixel.
            Wp = W + 2
            LP = (H + 2) * Wp + 2
            Ho, Wo = H // 2 + 1, W // 2 + 1
            Mt = 2 * (Ho - 1) * Wp + 2 * (Wo - 1) + 1
            outs = []
            for b in range(BB):
                o = b * LP
                t00 = src[:, o: o + Mt].astype(jnp.float32)
                t01 = src[:, o + 1: o + 1 + Mt].astype(jnp.float32)
                t10 = src[:, o + Wp: o + Wp + Mt].astype(jnp.float32)
                t11 = src[:, o + Wp + 1: o + Wp + 1 + Mt].astype(jnp.float32)
                tmax = jnp.maximum(jnp.maximum(t00, t01), jnp.maximum(t10, t11))
                outs.append(jnp.dot(tmax.astype(jnp.bfloat16), sel_ref[...],
                                    preferred_element_type=jnp.float32))
            return outs

        # ---------------- stage 1 : H1 x W1 ----------------
        # conv1 (Cin=1): 9-tap VPU outer product straight off the padded input.
        pad1a[...] = jnp.zeros_like(pad1a)
        for b in range(BB):
            acc = None
            for t in range(9):
                dy, dx = divmod(t, 3)
                s = dy * Wp1 + dx
                term = w1r[t] * x_ref[b, :, s:s + Mi1]          # (8,1)*(1,Mi1)
                acc = term if acc is None else acc + term
            yb = jnp.maximum(acc + b1r[...], 0.0) * m1r[:, :Mi1]
            pad1a[:, b * LP1 + Wp1 + 1: b * LP1 + Wp1 + 1 + Mi1] = (
                yb.astype(pad1a.dtype))

        embed_store(pad1b, conv_fused(pad1a, tap1, w2r, b2r, m1r, H1, W1, 8),
                    H1, W1)
        for b, q in enumerate(pool(pad1b, s1r, H1, W1)):
            pad2a[:, b * LP2:(b + 1) * LP2] = q.astype(pad2a.dtype)

        # ---------------- stage 2 : H2 x W2 ----------------
        embed_store(pad2b, conv_fused(pad2a, tap2, w3r, b3r, m2r, H2, W2, 16),
                    H2, W2)
        embed_store(pad2c, conv_fused(pad2b, tap2, w4r, b4r, m2r, H2, W2, 16),
                    H2, W2)
        for b, q in enumerate(pool(pad2c, s2r, H2, W2)):
            pad3a[:, b * LP3:(b + 1) * LP3] = q.astype(pad3a.dtype)

        # ---------------- stage 3 : H3 x W3 ----------------
        embed_store(pad3b, conv_fused(pad3a, tap3, w5r, b5r, m3r, H3, W3, 32),
                    H3, W3)
        embed_store(pad3c, conv_fused(pad3b, tap3, w6r, b6r, m3r, H3, W3, 64),
                    H3, W3)
        embed_store(pad3d, conv_fused(pad3c, tap3, w7r, b7r, m3r, H3, W3, 64),
                    H3, W3)
        # final pool straight into the (BB, 64, Hf*Wf) output block (NCHW flatten)
        for b, q in enumerate(pool(pad3d, s3r, H3, W3)):
            o_ref[b] = q.astype(o_ref.dtype)

    def rep(a):
        nd = a.ndim
        return pl.BlockSpec(a.shape, lambda g: (0,) * nd)

    in_specs = [pl.BlockSpec((BB, 1, LP1), lambda g: (g, 0, 0))]
    in_specs += [rep(a) for a in wb]
    in_specs += [rep(a) for a in (m1, m2, m3, s1, s2, s3)]

    scratch_shapes = [
        pltpu.VMEM((8,  BB * LP1), jnp.float32),     # pad1a: conv1 out (padded)
        pltpu.VMEM((16, BB * LP1), jnp.bfloat16),    # pad1b: conv2 out (pool1 in)
        pltpu.VMEM((16, BB * LP2), jnp.bfloat16),    # pad2a: pool1 out
        pltpu.VMEM((16, BB * LP2), jnp.bfloat16),    # pad2b: conv3 out
        pltpu.VMEM((32, BB * LP2), jnp.bfloat16),    # pad2c: conv4 out (pool2 in)
        pltpu.VMEM((32, BB * LP3), jnp.bfloat16),    # pad3a: pool2 out
        pltpu.VMEM((64, BB * LP3), jnp.bfloat16),    # pad3b: conv5 out
        pltpu.VMEM((64, BB * LP3), jnp.bfloat16),    # pad3c: conv6 out
        pltpu.VMEM((64, BB * LP3), jnp.bfloat16),    # pad3d: conv7 out (pool3 in)
        pltpu.VMEM((72,  BB * Mi1), jnp.float32),    # tap1: 9*Cin taps, stage 1
        pltpu.VMEM((144, BB * Mi2), jnp.bfloat16),   # tap2: 9*Cin taps, stage 2
        pltpu.VMEM((576, BB * Mi3), jnp.bfloat16),   # tap3: 9*Cin taps, stage 3
    ]

    # realistic cost estimate: conv GEMMs + pool gather GEMMs
    hw = [(H1, W1), (H1, W1), (H2, W2), (H2, W2), (H3, W3), (H3, W3), (H3, W3)]
    conv_flops = sum(2 * cout * 9 * cin * (h * (w + 2))
                     for (cout, cin), (h, w) in zip(_CONV_SHAPES, hw))
    pool_flops = 0
    for c, (h, w), n in ((16, (H1, W1), LP2), (32, (H2, W2), LP3),
                         (64, (H3, W3), Hf * Wf)):
        ho, wo = h // 2 + 1, w // 2 + 1
        mt = 2 * (ho - 1) * (w + 2) + 2 * (wo - 1) + 1
        pool_flops += 2 * c * mt * n
    flops = int(B * (conv_flops + pool_flops))
    bytes_accessed = int(
        xf.size * 4
        + sum(int(a.size) * a.dtype.itemsize for a in wb)
        + sum(int(a.size) * a.dtype.itemsize for a in (m1, m2, m3, s1, s2, s3))
        + B * 64 * Hf * Wf * 4)

    out = pl.pallas_call(
        kernel,
        out_shape=jax.ShapeDtypeStruct((B, 64, Hf * Wf), jnp.float32),
        grid=(G,),
        in_specs=in_specs,
        out_specs=pl.BlockSpec((BB, 64, Hf * Wf), lambda g: (g, 0, 0)),
        scratch_shapes=scratch_shapes,
        compiler_params=pltpu.CompilerParams(
            dimension_semantics=("parallel",)),
        cost_estimate=pl.CostEstimate(flops=flops, transcendentals=0,
                                      bytes_accessed=bytes_accessed),
    )(xf, *wb, m1, m2, m3, s1, s2, s3)
    return out.reshape(B, 64 * Hf * Wf)


# ------------------------------ reference & test ------------------------------

def reference_forward(x, params):
    """Pure-JAX reference (lax.conv / reduce_window) for correctness check."""
    x = jnp.swapaxes(x, 1, 2).astype(jnp.float32)[..., None]   # NHWC, C=1

    def conv(x, w, b):
        y = lax.conv_general_dilated(x, w, (1, 1), ((1, 1), (1, 1)),
                                     dimension_numbers=("NHWC", "OIHW", "NHWC"))
        return jnp.maximum(y + b, 0.0)

    def pool(x):
        return lax.reduce_window(x, -jnp.inf, lax.max, (1, 2, 2, 1), (1, 2, 2, 1),
                                 padding=((0, 0), (1, 1), (1, 1), (0, 0)))

    x = conv(x, *params[0]); x = conv(x, *params[1]); x = pool(x)
    x = conv(x, *params[2]); x = conv(x, *params[3]); x = pool(x)
    x = conv(x, *params[4]); x = conv(x, *params[5]); x = conv(x, *params[6])
    x = pool(x)
    x = jnp.transpose(x, (0, 3, 1, 2))
    return x.reshape(x.shape[0], -1)


def init_params(key):
    params = []
    for cout, cin in _CONV_SHAPES:
        key, kw, kb = jax.random.split(key, 3)
        bound = 1.0 / float(cin * 9) ** 0.5  # PyTorch Conv2d default init bound
        w = jax.random.uniform(kw, (cout, cin, 3, 3), jnp.float32, -bound, bound)
        b = jax.random.uniform(kb, (cout,), jnp.float32, -bound, bound)
        params.append((w, b))
    return params


if __name__ == "__main__":
    key = jax.random.PRNGKey(0)
    pkey, xkey = jax.random.split(key)
    params = init_params(pkey)

    # observation_space.shape = (16, 16): x is (B, seq, feat) = (2, 16, 16)
    x = jax.random.normal(xkey, (2, 16, 16), dtype=jnp.float32)
    y = jax.jit(custom_cnn2d_forward)(x, params)
    jax.block_until_ready(y)
    assert y.shape == (2, 576), y.shape              # output_size = 64 * 3 * 3
    y_ref = reference_forward(x, params)
    # bf16 MXU operands (f32 accumulation) -> slightly looser tolerance than f32
    assert jnp.allclose(y, y_ref, atol=2e-2, rtol=2e-2), \
        float(jnp.max(jnp.abs(y - y_ref)))

    # also exercise the batch-folded path (BB=4 images per grid step, grid=2)
    xb = jax.random.normal(jax.random.split(xkey)[0], (8, 16, 16), dtype=jnp.float32)
    yb = jax.jit(custom_cnn2d_forward)(xb, params)
    jax.block_until_ready(yb)
    assert yb.shape == (8, 576), yb.shape
    yb_ref = reference_forward(xb, params)
    assert jnp.allclose(yb, yb_ref, atol=2e-2, rtol=2e-2), \
        float(jnp.max(jnp.abs(yb - yb_ref)))

    print("KERNEL_OK")
</pallas_src>

<mosaic_0001>
module attributes {stable_mosaic.version = 11 : i64} {
  func.func @kernel(%arg0: i32, %arg1: memref<1x1x326xf32, #tpu.memory_space<vmem>>, %arg2: memref<9x8x1xf32, #tpu.memory_space<vmem>>, %arg3: memref<8x1xf32, #tpu.memory_space<vmem>>, %arg4: memref<16x72xf32, #tpu.memory_space<vmem>>, %arg5: memref<16x1xf32, #tpu.memory_space<vmem>>, %arg6: memref<16x144xbf16, #tpu.memory_space<vmem>>, %arg7: memref<16x1xf32, #tpu.memory_space<vmem>>, %arg8: memref<32x144xbf16, #tpu.memory_space<vmem>>, %arg9: memref<32x1xf32, #tpu.memory_space<vmem>>, %arg10: memref<64x288xbf16, #tpu.memory_space<vmem>>, %arg11: memref<64x1xf32, #tpu.memory_space<vmem>>, %arg12: memref<64x576xbf16, #tpu.memory_space<vmem>>, %arg13: memref<64x1xf32, #tpu.memory_space<vmem>>, %arg14: memref<64x576xbf16, #tpu.memory_space<vmem>>, %arg15: memref<64x1xf32, #tpu.memory_space<vmem>>, %arg16: memref<1x288xf32, #tpu.memory_space<vmem>>, %arg17: memref<1x99xf32, #tpu.memory_space<vmem>>, %arg18: memref<1x35xf32, #tpu.memory_space<vmem>>, %arg19: memref<305x123xbf16, #tpu.memory_space<vmem>>, %arg20: memref<97x51xbf16, #tpu.memory_space<vmem>>, %arg21: memref<33x9xbf16, #tpu.memory_space<vmem>>, %arg22: memref<1x64x9xf32, #tpu.memory_space<vmem>>, %arg23: memref<8x326xf32, #tpu.memory_space<vmem>>, %arg24: memref<16x326xbf16, #tpu.memory_space<vmem>>, %arg25: memref<16x123xbf16, #tpu.memory_space<vmem>>, %arg26: memref<16x123xbf16, #tpu.memory_space<vmem>>, %arg27: memref<32x123xbf16, #tpu.memory_space<vmem>>, %arg28: memref<32x51xbf16, #tpu.memory_space<vmem>>, %arg29: memref<64x51xbf16, #tpu.memory_space<vmem>>, %arg30: memref<64x51xbf16, #tpu.memory_space<vmem>>, %arg31: memref<64x51xbf16, #tpu.memory_space<vmem>>, %arg32: memref<72x288xf32, #tpu.memory_space<vmem>>, %arg33: memref<144x99xbf16, #tpu.memory_space<vmem>>, %arg34: memref<576x35xbf16, #tpu.memory_space<vmem>>) attributes {dimension_semantics = [#tpu.dimension_semantics<parallel>], iteration_bounds = array<i64: 2>, scalar_prefetch = 0 : i64, scratch_operands = 12 : i64, tpu.core_type = #tpu.core_type<tc>, window_params = [{transform_indices = @transform_0, window_bounds = array<i64: 1, 1, 326>}, {pipeline_mode = #tpu.pipeline_mode<synchronous>, transform_indices = @transform_1, window_bounds = array<i64: 9, 8, 1>}, {pipeline_mode = #tpu.pipeline_mode<synchronous>, transform_indices = @transform_2, window_bounds = array<i64: 8, 1>}, {pipeline_mode = #tpu.pipeline_mode<synchronous>, transform_indices = @transform_3, window_bounds = array<i64: 16, 72>}, {pipeline_mode = #tpu.pipeline_mode<synchronous>, transform_indices = @transform_4, window_bounds = array<i64: 16, 1>}, {pipeline_mode = #tpu.pipeline_mode<synchronous>, transform_indices = @transform_5, window_bounds = array<i64: 16, 144>}, {pipeline_mode = #tpu.pipeline_mode<synchronous>, transform_indices = @transform_6, window_bounds = array<i64: 16, 1>}, {pipeline_mode = #tpu.pipeline_mode<synchronous>, transform_indices = @transform_7, window_bounds = array<i64: 32, 144>}, {pipeline_mode = #tpu.pipeline_mode<synchronous>, transform_indices = @transform_8, window_bounds = array<i64: 32, 1>}, {pipeline_mode = #tpu.pipeline_mode<synchronous>, transform_indices = @transform_9, window_bounds = array<i64: 64, 288>}, {pipeline_mode = #tpu.pipeline_mode<synchronous>, transform_indices = @transform_10, window_bounds = array<i64: 64, 1>}, {pipeline_mode = #tpu.pipeline_mode<synchronous>, transform_indices = @transform_11, window_bounds = array<i64: 64, 576>}, {pipeline_mode = #tpu.pipeline_mode<synchronous>, transform_indices = @transform_12, window_bounds = array<i64: 64, 1>}, {pipeline_mode = #tpu.pipeline_mode<synchronous>, transform_indices = @transform_13, window_bounds = array<i64: 64, 576>}, {pipeline_mode = #tpu.pipeline_mode<synchronous>, transform_indices = @transform_14, window_bounds = array<i64: 64, 1>}, {pipeline_mode = #tpu.pipeline_mode<synchronous>, transform_indices = @transform_15, window_bounds = array<i64: 1, 288>}, {pipeline_mode = #tpu.pipeline_mode<synchronous>, transform_indices = @transform_16, window_bounds = array<i64: 1, 99>}, {pipeline_mode = #tpu.pipeline_mode<synchronous>, transform_indices = @transform_17, window_bounds = array<i64: 1, 35>}, {pipeline_mode = #tpu.pipeline_mode<synchronous>, transform_indices = @transform_18, window_bounds = array<i64: 305, 123>}, {pipeline_mode = #tpu.pipeline_mode<synchronous>, transform_indices = @transform_19, window_bounds = array<i64: 97, 51>}, {pipeline_mode = #tpu.pipeline_mode<synchronous>, transform_indices = @transform_20, window_bounds = array<i64: 33, 9>}, {transform_indices = @transform_21, window_bounds = array<i64: 1, 64, 9>}]} {
    %cst = arith.constant 0.000000e+00 : f32
    %0 = vector.broadcast %cst : f32 to vector<8x326xf32>
    %c0 = arith.constant 0 : index
    %c0_0 = arith.constant 0 : index
    %1 = vector.load %arg23[%c0, %c0_0] : memref<8x326xf32, #tpu.memory_space<vmem>>, vector<8x326xf32>
    tpu.vector_store %arg23[%c0, %c0_0], %0 {strides = array<i32>} : memref<8x326xf32, #tpu.memory_space<vmem>>, vector<8x326xf32>,
    %c0_1 = arith.constant 0 : index
    %c0_2 = arith.constant 0 : index
    %c0_3 = arith.constant 0 : index
    %2 = vector.load %arg2[%c0_1, %c0_2, %c0_3] : memref<9x8x1xf32, #tpu.memory_space<vmem>>, vector<1x8x1xf32>
    %3 = vector.shape_cast %2 : vector<1x8x1xf32> to vector<8x1xf32>
    %c0_4 = arith.constant 0 : index
    %c0_5 = arith.constant 0 : index
    %c0_6 = arith.constant 0 : index
    %4 = vector.load %arg1[%c0_4, %c0_5, %c0_6] : memref<1x1x326xf32, #tpu.memory_space<vmem>>, vector<1x1x288xf32>
    %5 = vector.shape_cast %4 : vector<1x1x288xf32> to vector<1x288xf32>
    %6 = vector.broadcast %3 : vector<8x1xf32> to vector<8x288xf32>
    %7 = vector.broadcast %5 : vector<1x288xf32> to vector<8x288xf32>
    %8 = arith.mulf %6, %7 : vector<8x288xf32>
    %c1 = arith.constant 1 : index
    %c0_7 = arith.constant 0 : index
    %c0_8 = arith.constant 0 : index
    %9 = vector.load %arg2[%c1, %c0_7, %c0_8] : memref<9x8x1xf32, #tpu.memory_space<vmem>>, vector<1x8x1xf32>
    %10 = vector.shape_cast %9 : vector<1x8x1xf32> to vector<8x1xf32>
    %c0_9 = arith.constant 0 : index
    %c0_10 = arith.constant 0 : index
    %c1_11 = arith.constant 1 : index
    %11 = vector.load %arg1[%c0_9, %c0_10, %c1_11] : memref<1x1x326xf32, #tpu.memory_space<vmem>>, vector<1x1x288xf32>
    %12 = vector.shape_cast %11 : vector<1x1x288xf32> to vector<1x288xf32>
    %13 = vector.broadcast %10 : vector<8x1xf32> to vector<8x288xf32>
    %14 = vector.broadcast %12 : vector<1x288xf32> to vector<8x288xf32>
    %15 = arith.mulf %13, %14 : vector<8x288xf32>
    %16 = arith.addf %8, %15 : vector<8x288xf32>
    %c2 = arith.constant 2 : index
    %c0_12 = arith.constant 0 : index
    %c0_13 = arith.constant 0 : index
    %17 = vector.load %arg2[%c2, %c0_12, %c0_13] : memref<9x8x1xf32, #tpu.memory_space<vmem>>, vector<1x8x1xf32>
    %18 = vector.shape_cast %17 : vector<1x8x1xf32> to vector<8x1xf32>
    %c0_14 = arith.constant 0 : index
    %c0_15 = arith.constant 0 : index
    %c2_16 = arith.constant 2 : index
    %19 = vector.load %arg1[%c0_14, %c0_15, %c2_16] : memref<1x1x326xf32, #tpu.memory_space<vmem>>, vector<1x1x288xf32>
    %20 = vector.shape_cast %19 : vector<1x1x288xf32> to vector<1x288xf32>
    %21 = vector.broadcast %18 : vector<8x1xf32> to vector<8x288xf32>
    %22 = vector.broadcast %20 : vector<1x288xf32> to vector<8x288xf32>
    %23 = arith.mulf %21, %22 : vector<8x288xf32>
    %24 = arith.addf %16, %23 : vector<8x288xf32>
    %c3 = arith.constant 3 : index
    %c0_17 = arith.constant 0 : index
    %c0_18 = arith.constant 0 : index
    %25 = vector.load %arg2[%c3, %c0_17, %c0_18] : memref<9x8x1xf32, #tpu.memory_space<vmem>>, vector<1x8x1xf32>
    %26 = vector.shape_cast %25 : vector<1x8x1xf32> to vector<8x1xf32>
    %c0_19 = arith.constant 0 : index
    %c0_20 = arith.constant 0 : index
    %c18 = arith.constant 18 : index
    %27 = vector.load %arg1[%c0_19, %c0_20, %c18] : memref<1x1x326xf32, #tpu.memory_space<vmem>>, vector<1x1x288xf32>
    %28 = vector.shape_cast %27 : vector<1x1x288xf32> to vector<1x288xf32>
    %29 = vector.broadcast %26 : vector<8x1xf32> to vector<8x288xf32>
    %30 = vector.broadcast %28 : vector<1x288xf32> to vector<8x288xf32>
    %31 = arith.mulf %29, %30 : vector<8x288xf32>
    %32 = arith.addf %24, %31 : vector<8x288xf32>
    %c4 = arith.constant 4 : index
    %c0_21 = arith.constant 0 : index
    %c0_22 = arith.constant 0 : index
    %33 = vector.load %arg2[%c4, %c0_21, %c0_22] : memref<9x8x1xf32, #tpu.memory_space<vmem>>, vector<1x8x1xf32>
    %34 = vector.shape_cast %33 : vector<1x8x1xf32> to vector<8x1xf32>
    %c0_23 = arith.constant 0 : index
    %c0_24 = arith.constant 0 : index
    %c19 = arith.constant 19 : index
    %35 = vector.load %arg1[%c0_23, %c0_24, %c19] : memref<1x1x326xf32, #tpu.memory_space<vmem>>, vector<1x1x288xf32>
    %36 = vector.shape_cast %35 : vector<1x1x288xf32> to vector<1x288xf32>
    %37 = vector.broadcast %34 : vector<8x1xf32> to vector<8x288xf32>
    %38 = vector.broadcast %36 : vector<1x288xf32> to vector<8x288xf32>
    %39 = arith.mulf %37, %38 : vector<8x288xf32>
    %40 = arith.addf %32, %39 : vector<8x288xf32>
    %c5 = arith.constant 5 : index
    %c0_25 = arith.constant 0 : index
    %c0_26 = arith.constant 0 : index
    %41 = vector.load %arg2[%c5, %c0_25, %c0_26] : memref<9x8x1xf32, #tpu.memory_space<vmem>>, vector<1x8x1xf32>
    %42 = vector.shape_cast %41 : vector<1x8x1xf32> to vector<8x1xf32>
    %c0_27 = arith.constant 0 : index
    %c0_28 = arith.constant 0 : index
    %c20 = arith.constant 20 : index
    %43 = vector.load %arg1[%c0_27, %c0_28, %c20] : memref<1x1x326xf32, #tpu.memory_space<vmem>>, vector<1x1x288xf32>
    %44 = vector.shape_cast %43 : vector<1x1x288xf32> to vector<1x288xf32>
    %45 = vector.broadcast %42 : vector<8x1xf32> to vector<8x288xf32>
    %46 = vector.broadcast %44 : vector<1x288xf32> to vector<8x288xf32>
    %47 = arith.mulf %45, %46 : vector<8x288xf32>
    %48 = arith.addf %40, %47 : vector<8x288xf32>
    %c6 = arith.constant 6 : index
    %c0_29 = arith.constant 0 : index
    %c0_30 = arith.constant 0 : index
    %49 = vector.load %arg2[%c6, %c0_29, %c0_30] : memref<9x8x1xf32, #tpu.memory_space<vmem>>, vector<1x8x1xf32>
    %50 = vector.shape_cast %49 : vector<1x8x1xf32> to vector<8x1xf32>
    %c0_31 = arith.constant 0 : index
    %c0_32 = arith.constant 0 : index
    %c36 = arith.constant 36 : index
    %51 = vector.load %arg1[%c0_31, %c0_32, %c36] : memref<1x1x326xf32, #tpu.memory_space<vmem>>, vector<1x1x288xf32>
    %52 = vector.shape_cast %51 : vector<1x1x288xf32> to vector<1x288xf32>
    %53 = vector.broadcast %50 : vector<8x1xf32> to vector<8x288xf32>
    %54 = vector.broadcast %52 : vector<1x288xf32> to vector<8x288xf32>
    %55 = arith.mulf %53, %54 : vector<8x288xf32>
    %56 = arith.addf %48, %55 : vector<8x288xf32>
    %c7 = arith.constant 7 : index
    %c0_33 = arith.constant 0 : index
    %c0_34 = arith.constant 0 : index
    %57 = vector.load %arg2[%c7, %c0_33, %c0_34] : memref<9x8x1xf32, #tpu.memory_space<vmem>>, vector<1x8x1xf32>
    %58 = vector.shape_cast %57 : vector<1x8x1xf32> to vector<8x1xf32>
    %c0_35 = arith.constant 0 : index
    %c0_36 = arith.constant 0 : index
    %c37 = arith.constant 37 : index
    %59 = vector.load %arg1[%c0_35, %c0_36, %c37] : memref<1x1x326xf32, #tpu.memory_space<vmem>>, vector<1x1x288xf32>
    %60 = vector.shape_cast %59 : vector<1x1x288xf32> to vector<1x288xf32>
    %61 = vector.broadcast %58 : vector<8x1xf32> to vector<8x288xf32>
    %62 = vector.broadcast %60 : vector<1x288xf32> to vector<8x288xf32>
    %63 = arith.mulf %61, %62 : vector<8x288xf32>
    %64 = arith.addf %56, %63 : vector<8x288xf32>
    %c8 = arith.constant 8 : index
    %c0_37 = arith.constant 0 : index
    %c0_38 = arith.constant 0 : index
    %65 = vector.load %arg2[%c8, %c0_37, %c0_38] : memref<9x8x1xf32, #tpu.memory_space<vmem>>, vector<1x8x1xf32>
    %66 = vector.shape_cast %65 : vector<1x8x1xf32> to vector<8x1xf32>
    %c0_39 = arith.constant 0 : index
    %c0_40 = arith.constant 0 : index
    %c38 = arith.constant 38 : index
    %67 = vector.load %arg1[%c0_39, %c0_40, %c38] : memref<1x1x326xf32, #tpu.memory_space<vmem>>, vector<1x1x288xf32>
    %68 = vector.shape_cast %67 : vector<1x1x288xf32> to vector<1x288xf32>
    %69 = vector.broadcast %66 : vector<8x1xf32> to vector<8x288xf32>
    %70 = vector.broadcast %68 : vector<1x288xf32> to vector<8x288xf32>
    %71 = arith.mulf %69, %70 : vector<8x288xf32>
    %72 = arith.addf %64, %71 : vector<8x288xf32>
    %c0_41 = arith.constant 0 : index
    %c0_42 = arith.constant 0 : index
    %73 = vector.load %arg3[%c0_41, %c0_42] : memref<8x1xf32, #tpu.memory_space<vmem>>, vector<8x1xf32>
    %74 = vector.broadcast %73 : vector<8x1xf32> to vector<8x288xf32>
    %75 = arith.addf %72, %74 : vector<8x288xf32>
    %cst_43 = arith.constant 0.000000e+00 : f32
    %76 = vector.broadcast %cst_43 : f32 to vector<8x288xf32>
    %77 = arith.maximumf %75, %76 : vector<8x288xf32>
    %c0_44 = arith.constant 0 : index
    %c0_45 = arith.constant 0 : index
    %78 = vector.load %arg16[%c0_44, %c0_45] : memref<1x288xf32, #tpu.memory_space<vmem>>, vector<1x288xf32>
    %79 = vector.broadcast %78 : vector<1x288xf32> to vector<8x288xf32>
    %80 = arith.mulf %77, %79 : vector<8x288xf32>
    %c0_46 = arith.constant 0 : index
    %c19_47 = arith.constant 19 : index
    %81 = vector.load %arg23[%c0_46, %c19_47] : memref<8x326xf32, #tpu.memory_space<vmem>>, vector<8x288xf32>
    tpu.vector_store %arg23[%c0_46, %c19_47], %80 {strides = array<i32>} : memref<8x326xf32, #tpu.memory_space<vmem>>, vector<8x288xf32>,
    %c0_48 = arith.constant 0 : index
    %c0_49 = arith.constant 0 : index
    %82 = vector.load %arg23[%c0_48, %c0_49] : memref<8x326xf32, #tpu.memory_space<vmem>>, vector<8x288xf32>
    %c0_50 = arith.constant 0 : index
    %c0_51 = arith.constant 0 : index
    %83 = vector.load %arg32[%c0_50, %c0_51] : memref<72x288xf32, #tpu.memory_space<vmem>>, vector<8x288xf32>
    tpu.vector_store %arg32[%c0_50, %c0_51], %82 {strides = array<i32>} : memref<72x288xf32, #tpu.memory_space<vmem>>, vector<8x288xf32>,
    %c0_52 = arith.constant 0 : index
    %c1_53 = arith.constant 1 : index
    %84 = vector.load %arg23[%c0_52, %c1_53] : memref<8x326xf32, #tpu.memory_space<vmem>>, vector<8x288xf32>
    %c8_54 = arith.constant 8 : index
    %c0_55 = arith.constant 0 : index
    %85 = vector.load %arg32[%c8_54, %c0_55] : memref<72x288xf32, #tpu.memory_space<vmem>>, vector<8x288xf32>
    tpu.vector_store %arg32[%c8_54, %c0_55], %84 {strides = array<i32>} : memref<72x288xf32, #tpu.memory_space<vmem>>, vector<8x288xf32>,
    %c0_56 = arith.constant 0 : index
    %c2_57 = arith.constant 2 : index
    %86 = vector.load %arg23[%c0_56, %c2_57] : memref<8x326xf32, #tpu.memory_space<vmem>>, vector<8x288xf32>
    %c16 = arith.constant 16 : index
    %c0_58 = arith.constant 0 : index
    %87 = vector.load %arg32[%c16, %c0_58] : memref<72x288xf32, #tpu.memory_space<vmem>>, vector<8x288xf32>
    tpu.vector_store %arg32[%c16, %c0_58], %86 {strides = array<i32>} : memref<72x288xf32, #tpu.memory_space<vmem>>, vector<8x288xf32>,
    %c0_59 = arith.constant 0 : index
    %c18_60 = arith.constant 18 : index
    %88 = vector.load %arg23[%c0_59, %c18_60] : memref<8x326xf32, #tpu.memory_space<vmem>>, vector<8x288xf32>
    %c24 = arith.constant 24 : index
    %c0_61 = arith.constant 0 : index
    %89 = vector.load %arg32[%c24, %c0_61] : memref<72x288xf32, #tpu.memory_space<vmem>>, vector<8x288xf32>
    tpu.vector_store %arg32[%c24, %c0_61], %88 {strides = array<i32>} : memref<72x288xf32, #tpu.memory_space<vmem>>, vector<8x288xf32>,
    %c0_62 = arith.constant 0 : index
    %c19_63 = arith.constant 19 : index
    %90 = vector.load %arg23[%c0_62, %c19_63] : memref<8x326xf32, #tpu.memory_space<vmem>>, vector<8x288xf32>
    %c32 = arith.constant 32 : index
    %c0_64 = arith.constant 0 : index
    %91 = vector.load %arg32[%c32, %c0_64] : memref<72x288xf32, #tpu.memory_space<vmem>>, vector<8x288xf32>
    tpu.vector_store %arg32[%c32, %c0_64], %90 {strides = array<i32>} : memref<72x288xf32, #tpu.memory_space<vmem>>, vector<8x288xf32>,
    %c0_65 = arith.constant 0 : index
    %c20_66 = arith.constant 20 : index
    %92 = vector.load %arg23[%c0_65, %c20_66] : memref<8x326xf32, #tpu.memory_space<vmem>>, vector<8x288xf32>
    %c40 = arith.constant 40 : index
    %c0_67 = arith.constant 0 : index
    %93 = vector.load %arg32[%c40, %c0_67] : memref<72x288xf32, #tpu.memory_space<vmem>>, vector<8x288xf32>
    tpu.vector_store %arg32[%c40, %c0_67], %92 {strides = array<i32>} : memref<72x288xf32, #tpu.memory_space<vmem>>, vector<8x288xf32>,
    %c0_68 = arith.constant 0 : index
    %c36_69 = arith.constant 36 : index
    %94 = vector.load %arg23[%c0_68, %c36_69] : memref<8x326xf32, #tpu.memory_space<vmem>>, vector<8x288xf32>
    %c48 = arith.constant 48 : index
    %c0_70 = arith.constant 0 : index
    %95 = vector.load %arg32[%c48, %c0_70] : memref<72x288xf32, #tpu.memory_space<vmem>>, vector<8x288xf32>
    tpu.vector_store %arg32[%c48, %c0_70], %94 {strides = array<i32>} : memref<72x288xf32, #tpu.memory_space<vmem>>, vector<8x288xf32>,
    %c0_71 = arith.constant 0 : index
    %c37_72 = arith.constant 37 : index
    %96 = vector.load %arg23[%c0_71, %c37_72] : memref<8x326xf32, #tpu.memory_space<vmem>>, vector<8x288xf32>
    %c56 = arith.constant 56 : index
    %c0_73 = arith.constant 0 : index
    %97 = vector.load %arg32[%c56, %c0_73] : memref<72x288xf32, #tpu.memory_space<vmem>>, vector<8x288xf32>
    tpu.vector_store %arg32[%c56, %c0_73], %96 {strides = array<i32>} : memref<72x288xf32, #tpu.memory_space<vmem>>, vector<8x288xf32>,
    %c0_74 = arith.constant 0 : index
    %c38_75 = arith.constant 38 : index
    %98 = vector.load %arg23[%c0_74, %c38_75] : memref<8x326xf32, #tpu.memory_space<vmem>>, vector<8x288xf32>
    %c64 = arith.constant 64 : index
    %c0_76 = arith.constant 0 : index
    %99 = vector.load %arg32[%c64, %c0_76] : memref<72x288xf32, #tpu.memory_space<vmem>>, vector<8x288xf32>
    tpu.vector_store %arg32[%c64, %c0_76], %98 {strides = array<i32>} : memref<72x288xf32, #tpu.memory_space<vmem>>, vector<8x288xf32>,
    %c0_77 = arith.constant 0 : index
    %c0_78 = arith.constant 0 : index
    %100 = vector.load %arg4[%c0_77, %c0_78] : memref<16x72xf32, #tpu.memory_space<vmem>>, vector<16x72xf32>
    %c0_79 = arith.constant 0 : index
    %c0_80 = arith.constant 0 : index
    %101 = vector.load %arg32[%c0_79, %c0_80] : memref<72x288xf32, #tpu.memory_space<vmem>>, vector<72x288xf32>
    %cst_81 = arith.constant dense<0.000000e+00> : vector<16x288xf32>
    %102 = tpu.matmul %100, %101, %cst_81 {dimension_numbers = #tpu.dot_dimension_numbers<[1], [0], [0], [1], [0, 0, 1, 1], [], []>} : vector<16x72xf32>, vector<72x288xf32>, vector<16x288xf32> -> vector<16x288xf32>
    %c0_82 = arith.constant 0 : index
    %c0_83 = arith.constant 0 : index
    %103 = vector.load %arg5[%c0_82, %c0_83] : memref<16x1xf32, #tpu.memory_space<vmem>>, vector<16x1xf32>
    %104 = vector.broadcast %103 : vector<16x1xf32> to vector<16x288xf32>
    %105 = arith.addf %102, %104 : vector<16x288xf32>
    %cst_84 = arith.constant 0.000000e+00 : f32
    %106 = vector.broadcast %cst_84 : f32 to vector<16x288xf32>
    %107 = arith.maximumf %105, %106 : vector<16x288xf32>
    %c0_85 = arith.constant 0 : index
    %c0_86 = arith.constant 0 : index
    %108 = vector.load %arg16[%c0_85, %c0_86] : memref<1x288xf32, #tpu.memory_space<vmem>>, vector<1x288xf32>
    %109 = vector.broadcast %108 : vector<1x288xf32> to vector<16x288xf32>
    %110 = arith.mulf %107, %109 : vector<16x288xf32>
    %cst_87 = arith.constant 0.000000e+00 : bf16
    %111 = vector.broadcast %cst_87 : bf16 to vector<16x326xbf16>
    %c0_88 = arith.constant 0 : index
    %c0_89 = arith.constant 0 : index
    %112 = vector.load %arg24[%c0_88, %c0_89] : memref<16x326xbf16, #tpu.memory_space<vmem>>, vector<16x326xbf16>
    tpu.vector_store %arg24[%c0_88, %c0_89], %111 {strides = array<i32>} : memref<16x326xbf16, #tpu.memory_space<vmem>>, vector<16x326xbf16>,
    %113 = arith.truncf %110 : vector<16x288xf32> to vector<16x288xbf16>
    %c0_90 = arith.constant 0 : index
    %c19_91 = arith.constant 19 : index
    %114 = vector.load %arg24[%c0_90, %c19_91] : memref<16x326xbf16, #tpu.memory_space<vmem>>, vector<16x288xbf16>
    tpu.vector_store %arg24[%c0_90, %c19_91], %113 {strides = array<i32>} : memref<16x326xbf16, #tpu.memory_space<vmem>>, vector<16x288xbf16>,
    %c0_92 = arith.constant 0 : index
    %c0_93 = arith.constant 0 : index
    %115 = vector.load %arg24[%c0_92, %c0_93] : memref<16x326xbf16, #tpu.memory_space<vmem>>, vector<16x305xbf16>
    %116 = arith.extf %115 : vector<16x305xbf16> to vector<16x305xf32>
    %c0_94 = arith.constant 0 : index
    %c1_95 = arith.constant 1 : index
    %117 = vector.load %arg24[%c0_94, %c1_95] : memref<16x326xbf16, #tpu.memory_space<vmem>>, vector<16x305xbf16>
    %118 = arith.extf %117 : vector<16x305xbf16> to vector<16x305xf32>
    %c0_96 = arith.constant 0 : index
    %c18_97 = arith.constant 18 : index
    %119 = vector.load %arg24[%c0_96, %c18_97] : memref<16x326xbf16, #tpu.memory_space<vmem>>, vector<16x305xbf16>
    %120 = arith.extf %119 : vector<16x305xbf16> to vector<16x305xf32>
    %c0_98 = arith.constant 0 : index
    %c19_99 = arith.constant 19 : index
    %121 = vector.load %arg24[%c0_98, %c19_99] : memref<16x326xbf16, #tpu.memory_space<vmem>>, vector<16x305xbf16>
    %122 = arith.extf %121 : vector<16x305xbf16> to vector<16x305xf32>
    %123 = arith.maximumf %116, %118 : vector<16x305xf32>
    %124 = arith.maximumf %120, %122 : vector<16x305xf32>
    %125 = arith.maximumf %123, %124 : vector<16x305xf32>
    %126 = arith.truncf %125 : vector<16x305xf32> to vector<16x305xbf16>
    %c0_100 = arith.constant 0 : index
    %c0_101 = arith.constant 0 : index
    %127 = vector.load %arg19[%c0_100, %c0_101] : memref<305x123xbf16, #tpu.memory_space<vmem>>, vector<305x123xbf16>
    %cst_102 = arith.constant dense<0.000000e+00> : vector<16x123xf32>
    %128 = tpu.matmul %126, %127, %cst_102 {dimension_numbers = #tpu.dot_dimension_numbers<[1], [0], [0], [1], [0, 0, 1, 1], [], []>} : vector<16x305xbf16>, vector<305x123xbf16>, vector<16x123xf32> -> vector<16x123xf32>
    %129 = arith.truncf %128 : vector<16x123xf32> to vector<16x123xbf16>
    %c0_103 = arith.constant 0 : index
    %c0_104 = arith.constant 0 : index
    %130 = vector.load %arg25[%c0_103, %c0_104] : memref<16x123xbf16, #tpu.memory_space<vmem>>, vector<16x123xbf16>
    tpu.vector_store %arg25[%c0_103, %c0_104], %129 {strides = array<i32>} : memref<16x123xbf16, #tpu.memory_space<vmem>>, vector<16x123xbf16>,
    %c0_105 = arith.constant 0 : index
    %c0_106 = arith.constant 0 : index
    %131 = vector.load %arg25[%c0_105, %c0_106] : memref<16x123xbf16, #tpu.memory_space<vmem>>, vector<16x99xbf16>
    %c0_107 = arith.constant 0 : index
    %c0_108 = arith.constant 0 : index
    %132 = vector.load %arg33[%c0_107, %c0_108] : memref<144x99xbf16, #tpu.memory_space<vmem>>, vector<16x99xbf16>
    tpu.vector_store %arg33[%c0_107, %c0_108], %131 {strides = array<i32>} : memref<144x99xbf16, #tpu.memory_space<vmem>>, vector<16x99xbf16>,
    %c0_109 = arith.constant 0 : index
    %c1_110 = arith.constant 1 : index
    %133 = vector.load %arg25[%c0_109, %c1_110] : memref<16x123xbf16, #tpu.memory_space<vmem>>, vector<16x99xbf16>
    %c16_111 = arith.constant 16 : index
    %c0_112 = arith.constant 0 : index
    %134 = vector.load %arg33[%c16_111, %c0_112] : memref<144x99xbf16, #tpu.memory_space<vmem>>, vector<16x99xbf16>
    tpu.vector_store %arg33[%c16_111, %c0_112], %133 {strides = array<i32>} : memref<144x99xbf16, #tpu.memory_space<vmem>>, vector<16x99xbf16>,
    %c0_113 = arith.constant 0 : index
    %c2_114 = arith.constant 2 : index
    %135 = vector.load %arg25[%c0_113, %c2_114] : memref<16x123xbf16, #tpu.memory_space<vmem>>, vector<16x99xbf16>
    %c32_115 = arith.constant 32 : index
    %c0_116 = arith.constant 0 : index
    %136 = vector.load %arg33[%c32_115, %c0_116] : memref<144x99xbf16, #tpu.memory_space<vmem>>, vector<16x99xbf16>
    tpu.vector_store %arg33[%c32_115, %c0_116], %135 {strides = array<i32>} : memref<144x99xbf16, #tpu.memory_space<vmem>>, vector<16x99xbf16>,
    %c0_117 = arith.constant 0 : index
    %c11 = arith.constant 11 : index
    %137 = vector.load %arg25[%c0_117, %c11] : memref<16x123xbf16, #tpu.memory_space<vmem>>, vector<16x99xbf16>
    %c48_118 = arith.constant 48 : index
    %c0_119 = arith.constant 0 : index
    %138 = vector.load %arg33[%c48_118, %c0_119] : memref<144x99xbf16, #tpu.memory_space<vmem>>, vector<16x99xbf16>
    tpu.vector_store %arg33[%c48_118, %c0_119], %137 {strides = array<i32>} : memref<144x99xbf16, #tpu.memory_space<vmem>>, vector<16x99xbf16>,
    %c0_120 = arith.constant 0 : index
    %c12 = arith.constant 12 : index
    %139 = vector.load %arg25[%c0_120, %c12] : memref<16x123xbf16, #tpu.memory_space<vmem>>, vector<16x99xbf16>
    %c64_121 = arith.constant 64 : index
    %c0_122 = arith.constant 0 : index
    %140 = vector.load %arg33[%c64_121, %c0_122] : memref<144x99xbf16, #tpu.memory_space<vmem>>, vector<16x99xbf16>
    tpu.vector_store %arg33[%c64_121, %c0_122], %139 {strides = array<i32>} : memref<144x99xbf16, #tpu.memory_space<vmem>>, vector<16x99xbf16>,
    %c0_123 = arith.constant 0 : index
    %c13 = arith.constant 13 : index
    %141 = vector.load %arg25[%c0_123, %c13] : memref<16x123xbf16, #tpu.memory_space<vmem>>, vector<16x99xbf16>
    %c80 = arith.constant 80 : index
    %c0_124 = arith.constant 0 : index
    %142 = vector.load %arg33[%c80, %c0_124] : memref<144x99xbf16, #tpu.memory_space<vmem>>, vector<16x99xbf16>
    tpu.vector_store %arg33[%c80, %c0_124], %141 {strides = array<i32>} : memref<144x99xbf16, #tpu.memory_space<vmem>>, vector<16x99xbf16>,
    %c0_125 = arith.constant 0 : index
    %c22 = arith.constant 22 : index
    %143 = vector.load %arg25[%c0_125, %c22] : memref<16x123xbf16, #tpu.memory_space<vmem>>, vector<16x99xbf16>
    %c96 = arith.constant 96 : index
    %c0_126 = arith.constant 0 : index
    %144 = vector.load %arg33[%c96, %c0_126] : memref<144x99xbf16, #tpu.memory_space<vmem>>, vector<16x99xbf16>
    tpu.vector_store %arg33[%c96, %c0_126], %143 {strides = array<i32>} : memref<144x99xbf16, #tpu.memory_space<vmem>>, vector<16x99xbf16>,
    %c0_127 = arith.constant 0 : index
    %c23 = arith.constant 23 : index
    %145 = vector.load %arg25[%c0_127, %c23] : memref<16x123xbf16, #tpu.memory_space<vmem>>, vector<16x99xbf16>
    %c112 = arith.constant 112 : index
    %c0_128 = arith.constant 0 : index
    %146 = vector.load %arg33[%c112, %c0_128] : memref<144x99xbf16, #tpu.memory_space<vmem>>, vector<16x99xbf16>
    tpu.vector_store %arg33[%c112, %c0_128], %145 {strides = array<i32>} : memref<144x99xbf16, #tpu.memory_space<vmem>>, vector<16x99xbf16>,
    %c0_129 = arith.constant 0 : index
    %c24_130 = arith.constant 24 : index
    %147 = vector.load %arg25[%c0_129, %c24_130] : memref<16x123xbf16, #tpu.memory_space<vmem>>, vector<16x99xbf16>
    %c128 = arith.constant 128 : index
    %c0_131 = arith.constant 0 : index
    %148 = vector.load %arg33[%c128, %c0_131] : memref<144x99xbf16, #tpu.memory_space<vmem>>, vector<16x99xbf16>
    tpu.vector_store %arg33[%c128, %c0_131], %147 {strides = array<i32>} : memref<144x99xbf16, #tpu.memory_space<vmem>>, vector<16x99xbf16>,
    %c0_132 = arith.constant 0 : index
    %c0_133 = arith.constant 0 : index
    %149 = vector.load %arg6[%c0_132, %c0_133] : memref<16x144xbf16, #tpu.memory_space<vmem>>, vector<16x144xbf16>
    %c0_134 = arith.constant 0 : index
    %c0_135 = arith.constant 0 : index
    %150 = vector.load %arg33[%c0_134, %c0_135] : memref<144x99xbf16, #tpu.memory_space<vmem>>, vector<144x99xbf16>
    %cst_136 = arith.constant dense<0.000000e+00> : vector<16x99xf32>
    %151 = tpu.matmul %149, %150, %cst_136 {dimension_numbers = #tpu.dot_dimension_numbers<[1], [0], [0], [1], [0, 0, 1, 1], [], []>} : vector<16x144xbf16>, vector<144x99xbf16>, vector<16x99xf32> -> vector<16x99xf32>
    %c0_137 = arith.constant 0 : index
    %c0_138 = arith.constant 0 : index
    %152 = vector.load %arg7[%c0_137, %c0_138] : memref<16x1xf32, #tpu.memory_space<vmem>>, vector<16x1xf32>
    %153 = vector.broadcast %152 : vector<16x1xf32> to vector<16x99xf32>
    %154 = arith.addf %151, %153 : vector<16x99xf32>
    %cst_139 = arith.constant 0.000000e+00 : f32
    %155 = vector.broadcast %cst_139 : f32 to vector<16x99xf32>
    %156 = arith.maximumf %154, %155 : vector<16x99xf32>
    %c0_140 = arith.constant 0 : index
    %c0_141 = arith.constant 0 : index
    %157 = vector.load %arg17[%c0_140, %c0_141] : memref<1x99xf32, #tpu.memory_space<vmem>>, vector<1x99xf32>
    %158 = vector.broadcast %157 : vector<1x99xf32> to vector<16x99xf32>
    %159 = arith.mulf %156, %158 : vector<16x99xf32>
    %cst_142 = arith.constant 0.000000e+00 : bf16
    %160 = vector.broadcast %cst_142 : bf16 to vector<16x123xbf16>
    %c0_143 = arith.constant 0 : index
    %c0_144 = arith.constant 0 : index
    %161 = vector.load %arg26[%c0_143, %c0_144] : memref<16x123xbf16, #tpu.memory_space<vmem>>, vector<16x123xbf16>
    tpu.vector_store %arg26[%c0_143, %c0_144], %160 {strides = array<i32>} : memref<16x123xbf16, #tpu.memory_space<vmem>>, vector<16x123xbf16>,
    %162 = arith.truncf %159 : vector<16x99xf32> to vector<16x99xbf16>
    %c0_145 = arith.constant 0 : index
    %c12_146 = arith.constant 12 : index
    %163 = vector.load %arg26[%c0_145, %c12_146] : memref<16x123xbf16, #tpu.memory_space<vmem>>, vector<16x99xbf16>
    tpu.vector_store %arg26[%c0_145, %c12_146], %162 {strides = array<i32>} : memref<16x123xbf16, #tpu.memory_space<vmem>>, vector<16x99xbf16>,
    %c0_147 = arith.constant 0 : index
    %c0_148 = arith.constant 0 : index
    %164 = vector.load %arg26[%c0_147, %c0_148] : memref<16x123xbf16, #tpu.memory_space<vmem>>, vector<16x99xbf16>
    %c0_149 = arith.constant 0 : index
    %c0_150 = arith.constant 0 : index
    %165 = vector.load %arg33[%c0_149, %c0_150] : memref<144x99xbf16, #tpu.memory_space<vmem>>, vector<16x99xbf16>
    tpu.vector_store %arg33[%c0_149, %c0_150], %164 {strides = array<i32>} : memref<144x99xbf16, #tpu.memory_space<vmem>>, vector<16x99xbf16>,
    %c0_151 = arith.constant 0 : index
    %c1_152 = arith.constant 1 : index
    %166 = vector.load %arg26[%c0_151, %c1_152] : memref<16x123xbf16, #tpu.memory_space<vmem>>, vector<16x99xbf16>
    %c16_153 = arith.constant 16 : index
    %c0_154 = arith.constant 0 : index
    %167 = vector.load %arg33[%c16_153, %c0_154] : memref<144x99xbf16, #tpu.memory_space<vmem>>, vector<16x99xbf16>
    tpu.vector_store %arg33[%c16_153, %c0_154], %166 {strides = array<i32>} : memref<144x99xbf16, #tpu.memory_space<vmem>>, vector<16x99xbf16>,
    %c0_155 = arith.constant 0 : index
    %c2_156 = arith.constant 2 : index
    %168 = vector.load %arg26[%c0_155, %c2_156] : memref<16x123xbf16, #tpu.memory_space<vmem>>, vector<16x99xbf16>
    %c32_157 = arith.constant 32 : index
    %c0_158 = arith.constant 0 : index
    %169 = vector.load %arg33[%c32_157, %c0_158] : memref<144x99xbf16, #tpu.memory_space<vmem>>, vector<16x99xbf16>
    tpu.vector_store %arg33[%c32_157, %c0_158], %168 {strides = array<i32>} : memref<144x99xbf16, #tpu.memory_space<vmem>>, vector<16x99xbf16>,
    %c0_159 = arith.constant 0 : index
    %c11_160 = arith.constant 11 : index
    %170 = vector.load %arg26[%c0_159, %c11_160] : memref<16x123xbf16, #tpu.memory_space<vmem>>, vector<16x99xbf16>
    %c48_161 = arith.constant 48 : index
    %c0_162 = arith.constant 0 : index
    %171 = vector.load %arg33[%c48_161, %c0_162] : memref<144x99xbf16, #tpu.memory_space<vmem>>, vector<16x99xbf16>
    tpu.vector_store %arg33[%c48_161, %c0_162], %170 {strides = array<i32>} : memref<144x99xbf16, #tpu.memory_space<vmem>>, vector<16x99xbf16>,
    %c0_163 = arith.constant 0 : index
    %c12_164 = arith.constant 12 : index
    %172 = vector.load %arg26[%c0_163, %c12_164] : memref<16x123xbf16, #tpu.memory_space<vmem>>, vector<16x99xbf16>
    %c64_165 = arith.constant 64 : index
    %c0_166 = arith.constant 0 : index
    %173 = vector.load %arg33[%c64_165, %c0_166] : memref<144x99xbf16, #tpu.memory_space<vmem>>, vector<16x99xbf16>
    tpu.vector_store %arg33[%c64_165, %c0_166], %172 {strides = array<i32>} : memref<144x99xbf16, #tpu.memory_space<vmem>>, vector<16x99xbf16>,
    %c0_167 = arith.constant 0 : index
    %c13_168 = arith.constant 13 : index
    %174 = vector.load %arg26[%c0_167, %c13_168] : memref<16x123xbf16, #tpu.memory_space<vmem>>, vector<16x99xbf16>
    %c80_169 = arith.constant 80 : index
    %c0_170 = arith.constant 0 : index
    %175 = vector.load %arg33[%c80_169, %c0_170] : memref<144x99xbf16, #tpu.memory_space<vmem>>, vector<16x99xbf16>
    tpu.vector_store %arg33[%c80_169, %c0_170], %174 {strides = array<i32>} : memref<144x99xbf16, #tpu.memory_space<vmem>>, vector<16x99xbf16>,
    %c0_171 = arith.constant 0 : index
    %c22_172 = arith.constant 22 : index
    %176 = vector.load %arg26[%c0_171, %c22_172] : memref<16x123xbf16, #tpu.memory_space<vmem>>, vector<16x99xbf16>
    %c96_173 = arith.constant 96 : index
    %c0_174 = arith.constant 0 : index
    %177 = vector.load %arg33[%c96_173, %c0_174] : memref<144x99xbf16, #tpu.memory_space<vmem>>, vector<16x99xbf16>
    tpu.vector_store %arg33[%c96_173, %c0_174], %176 {strides = array<i32>} : memref<144x99xbf16, #tpu.memory_space<vmem>>, vector<16x99xbf16>,
    %c0_175 = arith.constant 0 : index
    %c23_176 = arith.constant 23 : index
    %178 = vector.load %arg26[%c0_175, %c23_176] : memref<16x123xbf16, #tpu.memory_space<vmem>>, vector<16x99xbf16>
    %c112_177 = arith.constant 112 : index
    %c0_178 = arith.constant 0 : index
    %179 = vector.load %arg33[%c112_177, %c0_178] : memref<144x99xbf16, #tpu.memory_space<vmem>>, vector<16x99xbf16>
    tpu.vector_store %arg33[%c112_177, %c0_178], %178 {strides = array<i32>} : memref<144x99xbf16, #tpu.memory_space<vmem>>, vector<16x99xbf16>,
    %c0_179 = arith.constant 0 : index
    %c24_180 = arith.constant 24 : index
    %180 = vector.load %arg26[%c0_179, %c24_180] : memref<16x123xbf16, #tpu.memory_space<vmem>>, vector<16x99xbf16>
    %c128_181 = arith.constant 128 : index
    %c0_182 = arith.constant 0 : index
    %181 = vector.load %arg33[%c128_181, %c0_182] : memref<144x99xbf16, #tpu.memory_space<vmem>>, vector<16x99xbf16>
    tpu.vector_store %arg33[%c128_181, %c0_182], %180 {strides = array<i32>} : memref<144x99xbf16, #tpu.memory_space<vmem>>, vector<16x99xbf16>,
    %c0_183 = arith.constant 0 : index
    %c0_184 = arith.constant 0 : index
    %182 = vector.load %arg8[%c0_183, %c0_184] : memref<32x144xbf16, #tpu.memory_space<vmem>>, vector<32x144xbf16>
    %c0_185 = arith.constant 0 : index
    %c0_186 = arith.constant 0 : index
    %183 = vector.load %arg33[%c0_185, %c0_186] : memref<144x99xbf16, #tpu.memory_space<vmem>>, vector<144x99xbf16>
    %cst_187 = arith.constant dense<0.000000e+00> : vector<32x99xf32>
    %184 = tpu.matmul %182, %183, %cst_187 {dimension_numbers = #tpu.dot_dimension_numbers<[1], [0], [0], [1], [0, 0, 1, 1], [], []>} : vector<32x144xbf16>, vector<144x99xbf16>, vector<32x99xf32> -> vector<32x99xf32>
    %c0_188 = arith.constant 0 : index
    %c0_189 = arith.constant 0 : index
    %185 = vector.load %arg9[%c0_188, %c0_189] : memref<32x1xf32, #tpu.memory_space<vmem>>, vector<32x1xf32>
    %186 = vector.broadcast %185 : vector<32x1xf32> to vector<32x99xf32>
    %187 = arith.addf %184, %186 : vector<32x99xf32>
    %cst_190 = arith.constant 0.000000e+00 : f32
    %188 = vector.broadcast %cst_190 : f32 to vector<32x99xf32>
    %189 = arith.maximumf %187, %188 : vector<32x99xf32>
    %c0_191 = arith.constant 0 : index
    %c0_192 = arith.constant 0 : index
    %190 = vector.load %arg17[%c0_191, %c0_192] : memref<1x99xf32, #tpu.memory_space<vmem>>, vector<1x99xf32>
    %191 = vector.broadcast %190 : vector<1x99xf32> to vector<32x99xf32>
    %192 = arith.mulf %189, %191 : vector<32x99xf32>
    %cst_193 = arith.constant 0.000000e+00 : bf16
    %193 = vector.broadcast %cst_193 : bf16 to vector<32x123xbf16>
    %c0_194 = arith.constant 0 : index
    %c0_195 = arith.constant 0 : index
    %194 = vector.load %arg27[%c0_194, %c0_195] : memref<32x123xbf16, #tpu.memory_space<vmem>>, vector<32x123xbf16>
    tpu.vector_store %arg27[%c0_194, %c0_195], %193 {strides = array<i32>} : memref<32x123xbf16, #tpu.memory_space<vmem>>, vector<32x123xbf16>,
    %195 = arith.truncf %192 : vector<32x99xf32> to vector<32x99xbf16>
    %c0_196 = arith.constant 0 : index
    %c12_197 = arith.constant 12 : index
    %196 = vector.load %arg27[%c0_196, %c12_197] : memref<32x123xbf16, #tpu.memory_space<vmem>>, vector<32x99xbf16>
    tpu.vector_store %arg27[%c0_196, %c12_197], %195 {strides = array<i32>} : memref<32x123xbf16, #tpu.memory_space<vmem>>, vector<32x99xbf16>,
    %c0_198 = arith.constant 0 : index
    %c0_199 = arith.constant 0 : index
    %197 = vector.load %arg27[%c0_198, %c0_199] : memref<32x123xbf16, #tpu.memory_space<vmem>>, vector<32x97xbf16>
    %198 = arith.extf %197 : vector<32x97xbf16> to vector<32x97xf32>
    %c0_200 = arith.constant 0 : index
    %c1_201 = arith.constant 1 : index
    %199 = vector.load %arg27[%c0_200, %c1_201] : memref<32x123xbf16, #tpu.memory_space<vmem>>, vector<32x97xbf16>
    %200 = arith.extf %199 : vector<32x97xbf16> to vector<32x97xf32>
    %c0_202 = arith.constant 0 : index
    %c11_203 = arith.constant 11 : index
    %201 = vector.load %arg27[%c0_202, %c11_203] : memref<32x123xbf16, #tpu.memory_space<vmem>>, vector<32x97xbf16>
    %202 = arith.extf %201 : vector<32x97xbf16> to vector<32x97xf32>
    %c0_204 = arith.constant 0 : index
    %c12_205 = arith.constant 12 : index
    %203 = vector.load %arg27[%c0_204, %c12_205] : memref<32x123xbf16, #tpu.memory_space<vmem>>, vector<32x97xbf16>
    %204 = arith.extf %203 : vector<32x97xbf16> to vector<32x97xf32>
    %205 = arith.maximumf %198, %200 : vector<32x97xf32>
    %206 = arith.maximumf %202, %204 : vector<32x97xf32>
    %207 = arith.maximumf %205, %206 : vector<32x97xf32>
    %208 = arith.truncf %207 : vector<32x97xf32> to vector<32x97xbf16>
    %c0_206 = arith.constant 0 : index
    %c0_207 = arith.constant 0 : index
    %209 = vector.load %arg20[%c0_206, %c0_207] : memref<97x51xbf16, #tpu.memory_space<vmem>>, vector<97x51xbf16>
    %cst_208 = arith.constant dense<0.000000e+00> : vector<32x51xf32>
    %210 = tpu.matmul %208, %209, %cst_208 {dimension_numbers = #tpu.dot_dimension_numbers<[1], [0], [0], [1], [0, 0, 1, 1], [], []>} : vector<32x97xbf16>, vector<97x51xbf16>, vector<32x51xf32> -> vector<32x51xf32>
    %211 = arith.truncf %210 : vector<32x51xf32> to vector<32x51xbf16>
    %c0_209 = arith.constant 0 : index
    %c0_210 = arith.constant 0 : index
    %212 = vector.load %arg28[%c0_209, %c0_210] : memref<32x51xbf16, #tpu.memory_space<vmem>>, vector<32x51xbf16>
    tpu.vector_store %arg28[%c0_209, %c0_210], %211 {strides = array<i32>} : memref<32x51xbf16, #tpu.memory_space<vmem>>, vector<32x51xbf16>,
    %c0_211 = arith.constant 0 : index
    %c0_212 = arith.constant 0 : index
    %213 = vector.load %arg28[%c0_211, %c0_212] : memref<32x51xbf16, #tpu.memory_space<vmem>>, vector<32x35xbf16>
    %c0_213 = arith.constant 0 : index
    %c0_214 = arith.constant 0 : index
    %214 = vector.load %arg34[%c0_213, %c0_214] : memref<576x35xbf16, #tpu.memory_space<vmem>>, vector<32x35xbf16>
    tpu.vector_store %arg34[%c0_213, %c0_214], %213 {strides = array<i32>} : memref<576x35xbf16, #tpu.memory_space<vmem>>, vector<32x35xbf16>,
    %c0_215 = arith.constant 0 : index
    %c1_216 = arith.constant 1 : index
    %215 = vector.load %arg28[%c0_215, %c1_216] : memref<32x51xbf16, #tpu.memory_space<vmem>>, vector<32x35xbf16>
    %c32_217 = arith.constant 32 : index
    %c0_218 = arith.constant 0 : index
    %216 = vector.load %arg34[%c32_217, %c0_218] : memref<576x35xbf16, #tpu.memory_space<vmem>>, vector<32x35xbf16>
    tpu.vector_store %arg34[%c32_217, %c0_218], %215 {strides = array<i32>} : memref<576x35xbf16, #tpu.memory_space<vmem>>, vector<32x35xbf16>,
    %c0_219 = arith.constant 0 : index
    %c2_220 = arith.constant 2 : index
    %217 = vector.load %arg28[%c0_219, %c2_220] : memref<32x51xbf16, #tpu.memory_space<vmem>>, vector<32x35xbf16>
    %c64_221 = arith.constant 64 : index
    %c0_222 = arith.constant 0 : index
    %218 = vector.load %arg34[%c64_221, %c0_222] : memref<576x35xbf16, #tpu.memory_space<vmem>>, vector<32x35xbf16>
    tpu.vector_store %arg34[%c64_221, %c0_222], %217 {strides = array<i32>} : memref<576x35xbf16, #tpu.memory_space<vmem>>, vector<32x35xbf16>,
    %c0_223 = arith.constant 0 : index
    %c7_224 = arith.constant 7 : index
    %219 = vector.load %arg28[%c0_223, %c7_224] : memref<32x51xbf16, #tpu.memory_space<vmem>>, vector<32x35xbf16>
    %c96_225 = arith.constant 96 : index
    %c0_226 = arith.constant 0 : index
    %220 = vector.load %arg34[%c96_225, %c0_226] : memref<576x35xbf16, #tpu.memory_space<vmem>>, vector<32x35xbf16>
    tpu.vector_store %arg34[%c96_225, %c0_226], %219 {strides = array<i32>} : memref<576x35xbf16, #tpu.memory_space<vmem>>, vector<32x35xbf16>,
    %c0_227 = arith.constant 0 : index
    %c8_228 = arith.constant 8 : index
    %221 = vector.load %arg28[%c0_227, %c8_228] : memref<32x51xbf16, #tpu.memory_space<vmem>>, vector<32x35xbf16>
    %c128_229 = arith.constant 128 : index
    %c0_230 = arith.constant 0 : index
    %222 = vector.load %arg34[%c128_229, %c0_230] : memref<576x35xbf16, #tpu.memory_space<vmem>>, vector<32x35xbf16>
    tpu.vector_store %arg34[%c128_229, %c0_230], %221 {strides = array<i32>} : memref<576x35xbf16, #tpu.memory_space<vmem>>, vector<32x35xbf16>,
    %c0_231 = arith.constant 0 : index
    %c9 = arith.constant 9 : index
    %223 = vector.load %arg28[%c0_231, %c9] : memref<32x51xbf16, #tpu.memory_space<vmem>>, vector<32x35xbf16>
    %c160 = arith.constant 160 : index
    %c0_232 = arith.constant 0 : index
    %224 = vector.load %arg34[%c160, %c0_232] : memref<576x35xbf16, #tpu.memory_space<vmem>>, vector<32x35xbf16>
    tpu.vector_store %arg34[%c160, %c0_232], %223 {strides = array<i32>} : memref<576x35xbf16, #tpu.memory_space<vmem>>, vector<32x35xbf16>,
    %c0_233 = arith.constant 0 : index
    %c14 = arith.constant 14 : index
    %225 = vector.load %arg28[%c0_233, %c14] : memref<32x51xbf16, #tpu.memory_space<vmem>>, vector<32x35xbf16>
    %c192 = arith.constant 192 : index
    %c0_234 = arith.constant 0 : index
    %226 = vector.load %arg34[%c192, %c0_234] : memref<576x35xbf16, #tpu.memory_space<vmem>>, vector<32x35xbf16>
    tpu.vector_store %arg34[%c192, %c0_234], %225 {strides = array<i32>} : memref<576x35xbf16, #tpu.memory_space<vmem>>, vector<32x35xbf16>,
    %c0_235 = arith.constant 0 : index
    %c15 = arith.constant 15 : index
    %227 = vector.load %arg28[%c0_235, %c15] : memref<32x51xbf16, #tpu.memory_space<vmem>>, vector<32x35xbf16>
    %c224 = arith.constant 224 : index
    %c0_236 = arith.constant 0 : index
    %228 = vector.load %arg34[%c224, %c0_236] : memref<576x35xbf16, #tpu.memory_space<vmem>>, vector<32x35xbf16>
    tpu.vector_store %arg34[%c224, %c0_236], %227 {strides = array<i32>} : memref<576x35xbf16, #tpu.memory_space<vmem>>, vector<32x35xbf16>,
    %c0_237 = arith.constant 0 : index
    %c16_238 = arith.constant 16 : index
    %229 = vector.load %arg28[%c0_237, %c16_238] : memref<32x51xbf16, #tpu.memory_space<vmem>>, vector<32x35xbf16>
    %c256 = arith.constant 256 : index
    %c0_239 = arith.constant 0 : index
    %230 = vector.load %arg34[%c256, %c0_239] : memref<576x35xbf16, #tpu.memory_space<vmem>>, vector<32x35xbf16>
    tpu.vector_store %arg34[%c256, %c0_239], %229 {strides = array<i32>} : memref<576x35xbf16, #tpu.memory_space<vmem>>, vector<32x35xbf16>,
    %c0_240 = arith.constant 0 : index
    %c0_241 = arith.constant 0 : index
    %231 = vector.load %arg10[%c0_240, %c0_241] : memref<64x288xbf16, #tpu.memory_space<vmem>>, vector<64x288xbf16>
    %c0_242 = arith.constant 0 : index
    %c0_243 = arith.constant 0 : index
    %232 = vector.load %arg34[%c0_242, %c0_243] : memref<576x35xbf16, #tpu.memory_space<vmem>>, vector<288x35xbf16>
    %cst_244 = arith.constant dense<0.000000e+00> : vector<64x35xf32>
    %233 = tpu.matmul %231, %232, %cst_244 {dimension_numbers = #tpu.dot_dimension_numbers<[1], [0], [0], [1], [0, 0, 1, 1], [], []>} : vector<64x288xbf16>, vector<288x35xbf16>, vector<64x35xf32> -> vector<64x35xf32>
    %c0_245 = arith.constant 0 : index
    %c0_246 = arith.constant 0 : index
    %234 = vector.load %arg11[%c0_245, %c0_246] : memref<64x1xf32, #tpu.memory_space<vmem>>, vector<64x1xf32>
    %235 = vector.broadcast %234 : vector<64x1xf32> to vector<64x35xf32>
    %236 = arith.addf %233, %235 : vector<64x35xf32>
    %cst_247 = arith.constant 0.000000e+00 : f32
    %237 = vector.broadcast %cst_247 : f32 to vector<64x35xf32>
    %238 = arith.maximumf %236, %237 : vector<64x35xf32>
    %c0_248 = arith.constant 0 : index
    %c0_249 = arith.constant 0 : index
    %239 = vector.load %arg18[%c0_248, %c0_249] : memref<1x35xf32, #tpu.memory_space<vmem>>, vector<1x35xf32>
    %240 = vector.broadcast %239 : vector<1x35xf32> to vector<64x35xf32>
    %241 = arith.mulf %238, %240 : vector<64x35xf32>
    %cst_250 = arith.constant 0.000000e+00 : bf16
    %242 = vector.broadcast %cst_250 : bf16 to vector<64x51xbf16>
    %c0_251 = arith.constant 0 : index
    %c0_252 = arith.constant 0 : index
    %243 = vector.load %arg29[%c0_251, %c0_252] : memref<64x51xbf16, #tpu.memory_space<vmem>>, vector<64x51xbf16>
    tpu.vector_store %arg29[%c0_251, %c0_252], %242 {strides = array<i32>} : memref<64x51xbf16, #tpu.memory_space<vmem>>, vector<64x51xbf16>,
    %244 = arith.truncf %241 : vector<64x35xf32> to vector<64x35xbf16>
    %c0_253 = arith.constant 0 : index
    %c8_254 = arith.constant 8 : index
    %245 = vector.load %arg29[%c0_253, %c8_254] : memref<64x51xbf16, #tpu.memory_space<vmem>>, vector<64x35xbf16>
    tpu.vector_store %arg29[%c0_253, %c8_254], %244 {strides = array<i32>} : memref<64x51xbf16, #tpu.memory_space<vmem>>, vector<64x35xbf16>,
    %c0_255 = arith.constant 0 : index
    %c0_256 = arith.constant 0 : index
    %246 = vector.load %arg29[%c0_255, %c0_256] : memref<64x51xbf16, #tpu.memory_space<vmem>>, vector<64x35xbf16>
    %c0_257 = arith.constant 0 : index
    %c0_258 = arith.constant 0 : index
    %247 = vector.load %arg34[%c0_257, %c0_258] : memref<576x35xbf16, #tpu.memory_space<vmem>>, vector<64x35xbf16>
    tpu.vector_store %arg34[%c0_257, %c0_258], %246 {strides = array<i32>} : memref<576x35xbf16, #tpu.memory_space<vmem>>, vector<64x35xbf16>,
    %c0_259 = arith.constant 0 : index
    %c1_260 = arith.constant 1 : index
    %248 = vector.load %arg29[%c0_259, %c1_260] : memref<64x51xbf16, #tpu.memory_space<vmem>>, vector<64x35xbf16>
    %c64_261 = arith.constant 64 : index
    %c0_262 = arith.constant 0 : index
    %249 = vector.load %arg34[%c64_261, %c0_262] : memref<576x35xbf16, #tpu.memory_space<vmem>>, vector<64x35xbf16>
    tpu.vector_store %arg34[%c64_261, %c0_262], %248 {strides = array<i32>} : memref<576x35xbf16, #tpu.memory_space<vmem>>, vector<64x35xbf16>,
    %c0_263 = arith.constant 0 : index
    %c2_264 = arith.constant 2 : index
    %250 = vector.load %arg29[%c0_263, %c2_264] : memref<64x51xbf16, #tpu.memory_space<vmem>>, vector<64x35xbf16>
    %c128_265 = arith.constant 128 : index
    %c0_266 = arith.constant 0 : index
    %251 = vector.load %arg34[%c128_265, %c0_266] : memref<576x35xbf16, #tpu.memory_space<vmem>>, vector<64x35xbf16>
    tpu.vector_store %arg34[%c128_265, %c0_266], %250 {strides = array<i32>} : memref<576x35xbf16, #tpu.memory_space<vmem>>, vector<64x35xbf16>,
    %c0_267 = arith.constant 0 : index
    %c7_268 = arith.constant 7 : index
    %252 = vector.load %arg29[%c0_267, %c7_268] : memref<64x51xbf16, #tpu.memory_space<vmem>>, vector<64x35xbf16>
    %c192_269 = arith.constant 192 : index
    %c0_270 = arith.constant 0 : index
    %253 = vector.load %arg34[%c192_269, %c0_270] : memref<576x35xbf16, #tpu.memory_space<vmem>>, vector<64x35xbf16>
    tpu.vector_store %arg34[%c192_269, %c0_270], %252 {strides = array<i32>} : memref<576x35xbf16, #tpu.memory_space<vmem>>, vector<64x35xbf16>,
    %c0_271 = arith.constant 0 : index
    %c8_272 = arith.constant 8 : index
    %254 = vector.load %arg29[%c0_271, %c8_272] : memref<64x51xbf16, #tpu.memory_space<vmem>>, vector<64x35xbf16>
    %c256_273 = arith.constant 256 : index
    %c0_274 = arith.constant 0 : index
    %255 = vector.load %arg34[%c256_273, %c0_274] : memref<576x35xbf16, #tpu.memory_space<vmem>>, vector<64x35xbf16>
    tpu.vector_store %arg34[%c256_273, %c0_274], %254 {strides = array<i32>} : memref<576x35xbf16, #tpu.memory_space<vmem>>, vector<64x35xbf16>,
    %c0_275 = arith.constant 0 : index
    %c9_276 = arith.constant 9 : index
    %256 = vector.load %arg29[%c0_275, %c9_276] : memref<64x51xbf16, #tpu.memory_space<vmem>>, vector<64x35xbf16>
    %c320 = arith.constant 320 : index
    %c0_277 = arith.constant 0 : index
    %257 = vector.load %arg34[%c320, %c0_277] : memref<576x35xbf16, #tpu.memory_space<vmem>>, vector<64x35xbf16>
    tpu.vector_store %arg34[%c320, %c0_277], %256 {strides = array<i32>} : memref<576x35xbf16, #tpu.memory_space<vmem>>, vector<64x35xbf16>,
    %c0_278 = arith.constant 0 : index
    %c14_279 = arith.constant 14 : index
    %258 = vector.load %arg29[%c0_278, %c14_279] : memref<64x51xbf16, #tpu.memory_space<vmem>>, vector<64x35xbf16>
    %c384 = arith.constant 384 : index
    %c0_280 = arith.constant 0 : index
    %259 = vector.load %arg34[%c384, %c0_280] : memref<576x35xbf16, #tpu.memory_space<vmem>>, vector<64x35xbf16>
    tpu.vector_store %arg34[%c384, %c0_280], %258 {strides = array<i32>} : memref<576x35xbf16, #tpu.memory_space<vmem>>, vector<64x35xbf16>,
    %c0_281 = arith.constant 0 : index
    %c15_282 = arith.constant 15 : index
    %260 = vector.load %arg29[%c0_281, %c15_282] : memref<64x51xbf16, #tpu.memory_space<vmem>>, vector<64x35xbf16>
    %c448 = arith.constant 448 : index
    %c0_283 = arith.constant 0 : index
    %261 = vector.load %arg34[%c448, %c0_283] : memref<576x35xbf16, #tpu.memory_space<vmem>>, vector<64x35xbf16>
    tpu.vector_store %arg34[%c448, %c0_283], %260 {strides = array<i32>} : memref<576x35xbf16, #tpu.memory_space<vmem>>, vector<64x35xbf16>,
    %c0_284 = arith.constant 0 : index
    %c16_285 = arith.constant 16 : index
    %262 = vector.load %arg29[%c0_284, %c16_285] : memref<64x51xbf16, #tpu.memory_space<vmem>>, vector<64x35xbf16>
    %c512 = arith.constant 512 : index
    %c0_286 = arith.constant 0 : index
    %263 = vector.load %arg34[%c512, %c0_286] : memref<576x35xbf16, #tpu.memory_space<vmem>>, vector<64x35xbf16>
    tpu.vector_store %arg34[%c512, %c0_286], %262 {strides = array<i32>} : memref<576x35xbf16, #tpu.memory_space<vmem>>, vector<64x35xbf16>,
    %c0_287 = arith.constant 0 : index
    %c0_288 = arith.constant 0 : index
    %264 = vector.load %arg12[%c0_287, %c0_288] : memref<64x576xbf16, #tpu.memory_space<vmem>>, vector<64x576xbf16>
    %c0_289 = arith.constant 0 : index
    %c0_290 = arith.constant 0 : index
    %265 = vector.load %arg34[%c0_289, %c0_290] : memref<576x35xbf16, #tpu.memory_space<vmem>>, vector<576x35xbf16>
    %cst_291 = arith.constant dense<0.000000e+00> : vector<64x35xf32>
    %266 = tpu.matmul %264, %265, %cst_291 {dimension_numbers = #tpu.dot_dimension_numbers<[1], [0], [0], [1], [0, 0, 1, 1], [], []>} : vector<64x576xbf16>, vector<576x35xbf16>, vector<64x35xf32> -> vector<64x35xf32>
    %c0_292 = arith.constant 0 : index
    %c0_293 = arith.constant 0 : index
    %267 = vector.load %arg13[%c0_292, %c0_293] : memref<64x1xf32, #tpu.memory_space<vmem>>, vector<64x1xf32>
    %268 = vector.broadcast %267 : vector<64x1xf32> to vector<64x35xf32>
    %269 = arith.addf %266, %268 : vector<64x35xf32>
    %cst_294 = arith.constant 0.000000e+00 : f32
    %270 = vector.broadcast %cst_294 : f32 to vector<64x35xf32>
    %271 = arith.maximumf %269, %270 : vector<64x35xf32>
    %c0_295 = arith.constant 0 : index
    %c0_296 = arith.constant 0 : index
    %272 = vector.load %arg18[%c0_295, %c0_296] : memref<1x35xf32, #tpu.memory_space<vmem>>, vector<1x35xf32>
    %273 = vector.broadcast %272 : vector<1x35xf32> to vector<64x35xf32>
    %274 = arith.mulf %271, %273 : vector<64x35xf32>
    %cst_297 = arith.constant 0.000000e+00 : bf16
    %275 = vector.broadcast %cst_297 : bf16 to vector<64x51xbf16>
    %c0_298 = arith.constant 0 : index
    %c0_299 = arith.constant 0 : index
    %276 = vector.load %arg30[%c0_298, %c0_299] : memref<64x51xbf16, #tpu.memory_space<vmem>>, vector<64x51xbf16>
    tpu.vector_store %arg30[%c0_298, %c0_299], %275 {strides = array<i32>} : memref<64x51xbf16, #tpu.memory_space<vmem>>, vector<64x51xbf16>,
    %277 = arith.truncf %274 : vector<64x35xf32> to vector<64x35xbf16>
    %c0_300 = arith.constant 0 : index
    %c8_301 = arith.constant 8 : index
    %278 = vector.load %arg30[%c0_300, %c8_301] : memref<64x51xbf16, #tpu.memory_space<vmem>>, vector<64x35xbf16>
    tpu.vector_store %arg30[%c0_300, %c8_301], %277 {strides = array<i32>} : memref<64x51xbf16, #tpu.memory_space<vmem>>, vector<64x35xbf16>,
    %c0_302 = arith.constant 0 : index
    %c0_303 = arith.constant 0 : index
    %279 = vector.load %arg30[%c0_302, %c0_303] : memref<64x51xbf16, #tpu.memory_space<vmem>>, vector<64x35xbf16>
    %c0_304 = arith.constant 0 : index
    %c0_305 = arith.constant 0 : index
    %280 = vector.load %arg34[%c0_304, %c0_305] : memref<576x35xbf16, #tpu.memory_space<vmem>>, vector<64x35xbf16>
    tpu.vector_store %arg34[%c0_304, %c0_305], %279 {strides = array<i32>} : memref<576x35xbf16, #tpu.memory_space<vmem>>, vector<64x35xbf16>,
    %c0_306 = arith.constant 0 : index
    %c1_307 = arith.constant 1 : index
    %281 = vector.load %arg30[%c0_306, %c1_307] : memref<64x51xbf16, #tpu.memory_space<vmem>>, vector<64x35xbf16>
    %c64_308 = arith.constant 64 : index
    %c0_309 = arith.constant 0 : index
    %282 = vector.load %arg34[%c64_308, %c0_309] : memref<576x35xbf16, #tpu.memory_space<vmem>>, vector<64x35xbf16>
    tpu.vector_store %arg34[%c64_308, %c0_309], %281 {strides = array<i32>} : memref<576x35xbf16, #tpu.memory_space<vmem>>, vector<64x35xbf16>,
    %c0_310 = arith.constant 0 : index
    %c2_311 = arith.constant 2 : index
    %283 = vector.load %arg30[%c0_310, %c2_311] : memref<64x51xbf16, #tpu.memory_space<vmem>>, vector<64x35xbf16>
    %c128_312 = arith.constant 128 : index
    %c0_313 = arith.constant 0 : index
    %284 = vector.load %arg34[%c128_312, %c0_313] : memref<576x35xbf16, #tpu.memory_space<vmem>>, vector<64x35xbf16>
    tpu.vector_store %arg34[%c128_312, %c0_313], %283 {strides = array<i32>} : memref<576x35xbf16, #tpu.memory_space<vmem>>, vector<64x35xbf16>,
    %c0_314 = arith.constant 0 : index
    %c7_315 = arith.constant 7 : index
    %285 = vector.load %arg30[%c0_314, %c7_315] : memref<64x51xbf16, #tpu.memory_space<vmem>>, vector<64x35xbf16>
    %c192_316 = arith.constant 192 : index
    %c0_317 = arith.constant 0 : index
    %286 = vector.load %arg34[%c192_316, %c0_317] : memref<576x35xbf16, #tpu.memory_space<vmem>>, vector<64x35xbf16>
    tpu.vector_store %arg34[%c192_316, %c0_317], %285 {strides = array<i32>} : memref<576x35xbf16, #tpu.memory_space<vmem>>, vector<64x35xbf16>,
    %c0_318 = arith.constant 0 : index
    %c8_319 = arith.constant 8 : index
    %287 = vector.load %arg30[%c0_318, %c8_319] : memref<64x51xbf16, #tpu.memory_space<vmem>>, vector<64x35xbf16>
    %c256_320 = arith.constant 256 : index
    %c0_321 = arith.constant 0 : index
    %288 = vector.load %arg34[%c256_320, %c0_321] : memref<576x35xbf16, #tpu.memory_space<vmem>>, vector<64x35xbf16>
    tpu.vector_store %arg34[%c256_320, %c0_321], %287 {strides = array<i32>} : memref<576x35xbf16, #tpu.memory_space<vmem>>, vector<64x35xbf16>,
    %c0_322 = arith.constant 0 : index
    %c9_323 = arith.constant 9 : index
    %289 = vector.load %arg30[%c0_322, %c9_323] : memref<64x51xbf16, #tpu.memory_space<vmem>>, vector<64x35xbf16>
    %c320_324 = arith.constant 320 : index
    %c0_325 = arith.constant 0 : index
    %290 = vector.load %arg34[%c320_324, %c0_325] : memref<576x35xbf16, #tpu.memory_space<vmem>>, vector<64x35xbf16>
    tpu.vector_store %arg34[%c320_324, %c0_325], %289 {strides = array<i32>} : memref<576x35xbf16, #tpu.memory_space<vmem>>, vector<64x35xbf16>,
    %c0_326 = arith.constant 0 : index
    %c14_327 = arith.constant 14 : index
    %291 = vector.load %arg30[%c0_326, %c14_327] : memref<64x51xbf16, #tpu.memory_space<vmem>>, vector<64x35xbf16>
    %c384_328 = arith.constant 384 : index
    %c0_329 = arith.constant 0 : index
    %292 = vector.load %arg34[%c384_328, %c0_329] : memref<576x35xbf16, #tpu.memory_space<vmem>>, vector<64x35xbf16>
    tpu.vector_store %arg34[%c384_328, %c0_329], %291 {strides = array<i32>} : memref<576x35xbf16, #tpu.memory_space<vmem>>, vector<64x35xbf16>,
    %c0_330 = arith.constant 0 : index
    %c15_331 = arith.constant 15 : index
    %293 = vector.load %arg30[%c0_330, %c15_331] : memref<64x51xbf16, #tpu.memory_space<vmem>>, vector<64x35xbf16>
    %c448_332 = arith.constant 448 : index
    %c0_333 = arith.constant 0 : index
    %294 = vector.load %arg34[%c448_332, %c0_333] : memref<576x35xbf16, #tpu.memory_space<vmem>>, vector<64x35xbf16>
    tpu.vector_store %arg34[%c448_332, %c0_333], %293 {strides = array<i32>} : memref<576x35xbf16, #tpu.memory_space<vmem>>, vector<64x35xbf16>,
    %c0_334 = arith.constant 0 : index
    %c16_335 = arith.constant 16 : index
    %295 = vector.load %arg30[%c0_334, %c16_335] : memref<64x51xbf16, #tpu.memory_space<vmem>>, vector<64x35xbf16>
    %c512_336 = arith.constant 512 : index
    %c0_337 = arith.constant 0 : index
    %296 = vector.load %arg34[%c512_336, %c0_337] : memref<576x35xbf16, #tpu.memory_space<vmem>>, vector<64x35xbf16>
    tpu.vector_store %arg34[%c512_336, %c0_337], %295 {strides = array<i32>} : memref<576x35xbf16, #tpu.memory_space<vmem>>, vector<64x35xbf16>,
    %c0_338 = arith.constant 0 : index
    %c0_339 = arith.constant 0 : index
    %297 = vector.load %arg14[%c0_338, %c0_339] : memref<64x576xbf16, #tpu.memory_space<vmem>>, vector<64x576xbf16>
    %c0_340 = arith.constant 0 : index
    %c0_341 = arith.constant 0 : index
    %298 = vector.load %arg34[%c0_340, %c0_341] : memref<576x35xbf16, #tpu.memory_space<vmem>>, vector<576x35xbf16>
    %cst_342 = arith.constant dense<0.000000e+00> : vector<64x35xf32>
    %299 = tpu.matmul %297, %298, %cst_342 {dimension_numbers = #tpu.dot_dimension_numbers<[1], [0], [0], [1], [0, 0, 1, 1], [], []>} : vector<64x576xbf16>, vector<576x35xbf16>, vector<64x35xf32> -> vector<64x35xf32>
    %c0_343 = arith.constant 0 : index
    %c0_344 = arith.constant 0 : index
    %300 = vector.load %arg15[%c0_343, %c0_344] : memref<64x1xf32, #tpu.memory_space<vmem>>, vector<64x1xf32>
    %301 = vector.broadcast %300 : vector<64x1xf32> to vector<64x35xf32>
    %302 = arith.addf %299, %301 : vector<64x35xf32>
    %cst_345 = arith.constant 0.000000e+00 : f32
    %303 = vector.broadcast %cst_345 : f32 to vector<64x35xf32>
    %304 = arith.maximumf %302, %303 : vector<64x35xf32>
    %c0_346 = arith.constant 0 : index
    %c0_347 = arith.constant 0 : index
    %305 = vector.load %arg18[%c0_346, %c0_347] : memref<1x35xf32, #tpu.memory_space<vmem>>, vector<1x35xf32>
    %306 = vector.broadcast %305 : vector<1x35xf32> to vector<64x35xf32>
    %307 = arith.mulf %304, %306 : vector<64x35xf32>
    %cst_348 = arith.constant 0.000000e+00 : bf16
    %308 = vector.broadcast %cst_348 : bf16 to vector<64x51xbf16>
    %c0_349 = arith.constant 0 : index
    %c0_350 = arith.constant 0 : index
    %309 = vector.load %arg31[%c0_349, %c0_350] : memref<64x51xbf16, #tpu.memory_space<vmem>>, vector<64x51xbf16>
    tpu.vector_store %arg31[%c0_349, %c0_350], %308 {strides = array<i32>} : memref<64x51xbf16, #tpu.memory_space<vmem>>, vector<64x51xbf16>,
    %310 = arith.truncf %307 : vector<64x35xf32> to vector<64x35xbf16>
    %c0_351 = arith.constant 0 : index
    %c8_352 = arith.constant 8 : index
    %311 = vector.load %arg31[%c0_351, %c8_352] : memref<64x51xbf16, #tpu.memory_space<vmem>>, vector<64x35xbf16>
    tpu.vector_store %arg31[%c0_351, %c8_352], %310 {strides = array<i32>} : memref<64x51xbf16, #tpu.memory_space<vmem>>, vector<64x35xbf16>,
    %c0_353 = arith.constant 0 : index
    %c0_354 = arith.constant 0 : index
    %312 = vector.load %arg31[%c0_353, %c0_354] : memref<64x51xbf16, #tpu.memory_space<vmem>>, vector<64x33xbf16>
    %313 = arith.extf %312 : vector<64x33xbf16> to vector<64x33xf32>
    %c0_355 = arith.constant 0 : index
    %c1_356 = arith.constant 1 : index
    %314 = vector.load %arg31[%c0_355, %c1_356] : memref<64x51xbf16, #tpu.memory_space<vmem>>, vector<64x33xbf16>
    %315 = arith.extf %314 : vector<64x33xbf16> to vector<64x33xf32>
    %c0_357 = arith.constant 0 : index
    %c7_358 = arith.constant 7 : index
    %316 = vector.load %arg31[%c0_357, %c7_358] : memref<64x51xbf16, #tpu.memory_space<vmem>>, vector<64x33xbf16>
    %317 = arith.extf %316 : vector<64x33xbf16> to vector<64x33xf32>
    %c0_359 = arith.constant 0 : index
    %c8_360 = arith.constant 8 : index
    %318 = vector.load %arg31[%c0_359, %c8_360] : memref<64x51xbf16, #tpu.memory_space<vmem>>, vector<64x33xbf16>
    %319 = arith.extf %318 : vector<64x33xbf16> to vector<64x33xf32>
    %320 = arith.maximumf %313, %315 : vector<64x33xf32>
    %321 = arith.maximumf %317, %319 : vector<64x33xf32>
    %322 = arith.maximumf %320, %321 : vector<64x33xf32>
    %323 = arith.truncf %322 : vector<64x33xf32> to vector<64x33xbf16>
    %c0_361 = arith.constant 0 : index
    %c0_362 = arith.constant 0 : index
    %324 = vector.load %arg21[%c0_361, %c0_362] : memref<33x9xbf16, #tpu.memory_space<vmem>>, vector<33x9xbf16>
    %cst_363 = arith.constant dense<0.000000e+00> : vector<64x9xf32>
    %325 = tpu.matmul %323, %324, %cst_363 {dimension_numbers = #tpu.dot_dimension_numbers<[1], [0], [0], [1], [0, 0, 1, 1], [], []>} : vector<64x33xbf16>, vector<33x9xbf16>, vector<64x9xf32> -> vector<64x9xf32>
    %c0_364 = arith.constant 0 : index
    %c0_365 = arith.constant 0 : index
    %c0_366 = arith.constant 0 : index
    %326 = vector.load %arg22[%c0_364, %c0_365, %c0_366] : memref<1x64x9xf32, #tpu.memory_space<vmem>>, vector<1x64x9xf32>
    %327 = vector.shape_cast %326 : vector<1x64x9xf32> to vector<64x9xf32>
    %328 = vector.shape_cast %325 : vector<64x9xf32> to vector<1x64x9xf32>
    tpu.vector_store %arg22[%c0_364, %c0_365, %c0_366], %328 {strides = array<i32>} : memref<1x64x9xf32, #tpu.memory_space<vmem>>, vector<1x64x9xf32>,
    return
  }
  func.func @transform_0(%arg0: i32) -> (i32, i32, i32) {
    %c0_i32 = arith.constant 0 : i32
    %c0_i32_0 = arith.constant 0 : i32
    %c0_i32_1 = arith.constant 0 : i32
    return %arg0, %c0_i32, %c0_i32_0 : i32, i32, i32
  }
  func.func @transform_1(%arg0: i32) -> (i32, i32, i32) {
    %c0_i32 = arith.constant 0 : i32
    %c0_i32_0 = arith.constant 0 : i32
    %c0_i32_1 = arith.constant 0 : i32
    %c0_i32_2 = arith.constant 0 : i32
    return %c0_i32, %c0_i32_0, %c0_i32_1 : i32, i32, i32
  }
  func.func @transform_2(%arg0: i32) -> (i32, i32) {
    %c0_i32 = arith.constant 0 : i32
    %c0_i32_0 = arith.constant 0 : i32
    %c0_i32_1 = arith.constant 0 : i32
    return %c0_i32, %c0_i32_0 : i32, i32
  }
  func.func @transform_3(%arg0: i32) -> (i32, i32) {
    %c0_i32 = arith.constant 0 : i32
    %c0_i32_0 = arith.constant 0 : i32
    %c0_i32_1 = arith.constant 0 : i32
    return %c0_i32, %c0_i32_0 : i32, i32
  }
  func.func @transform_4(%arg0: i32) -> (i32, i32) {
    %c0_i32 = arith.constant 0 : i32
    %c0_i32_0 = arith.constant 0 : i32
    %c0_i32_1 = arith.constant 0 : i32
    return %c0_i32, %c0_i32_0 : i32, i32
  }
  func.func @transform_5(%arg0: i32) -> (i32, i32) {
    %c0_i32 = arith.constant 0 : i32
    %c0_i32_0 = arith.constant 0 : i32
    %c0_i32_1 = arith.constant 0 : i32
    return %c0_i32, %c0_i32_0 : i32, i32
  }
  func.func @transform_6(%arg0: i32) -> (i32, i32) {
    %c0_i32 = arith.constant 0 : i32
    %c0_i32_0 = arith.constant 0 : i32
    %c0_i32_1 = arith.constant 0 : i32
    return %c0_i32, %c0_i32_0 : i32, i32
  }
  func.func @transform_7(%arg0: i32) -> (i32, i32) {
    %c0_i32 = arith.constant 0 : i32
    %c0_i32_0 = arith.constant 0 : i32
    %c0_i32_1 = arith.constant 0 : i32
    return %c0_i32, %c0_i32_0 : i32, i32
  }
  func.func @transform_8(%arg0: i32) -> (i32, i32) {
    %c0_i32 = arith.constant 0 : i32
    %c0_i32_0 = arith.constant 0 : i32
    %c0_i32_1 = arith.constant 0 : i32
    return %c0_i32, %c0_i32_0 : i32, i32
  }
  func.func @transform_9(%arg0: i32) -> (i32, i32) {
    %c0_i32 = arith.constant 0 : i32
    %c0_i32_0 = arith.constant 0 : i32
    %c0_i32_1 = arith.constant 0 : i32
    return %c0_i32, %c0_i32_0 : i32, i32
  }
  func.func @transform_10(%arg0: i32) -> (i32, i32) {
    %c0_i32 = arith.constant 0 : i32
    %c0_i32_0 = arith.constant 0 : i32
    %c0_i32_1 = arith.constant 0 : i32
    return %c0_i32, %c0_i32_0 : i32, i32
  }
  func.func @transform_11(%arg0: i32) -> (i32, i32) {
    %c0_i32 = arith.constant 0 : i32
    %c0_i32_0 = arith.constant 0 : i32
    %c0_i32_1 = arith.constant 0 : i32
    return %c0_i32, %c0_i32_0 : i32, i32
  }
  func.func @transform_12(%arg0: i32) -> (i32, i32) {
    %c0_i32 = arith.constant 0 : i32
    %c0_i32_0 = arith.constant 0 : i32
    %c0_i32_1 = arith.constant 0 : i32
    return %c0_i32, %c0_i32_0 : i32, i32
  }
  func.func @transform_13(%arg0: i32) -> (i32, i32) {
    %c0_i32 = arith.constant 0 : i32
    %c0_i32_0 = arith.constant 0 : i32
    %c0_i32_1 = arith.constant 0 : i32
    return %c0_i32, %c0_i32_0 : i32, i32
  }
  func.func @transform_14(%arg0: i32) -> (i32, i32) {
    %c0_i32 = arith.constant 0 : i32
    %c0_i32_0 = arith.constant 0 : i32
    %c0_i32_1 = arith.constant 0 : i32
    return %c0_i32, %c0_i32_0 : i32, i32
  }
  func.func @transform_15(%arg0: i32) -> (i32, i32) {
    %c0_i32 = arith.constant 0 : i32
    %c0_i32_0 = arith.constant 0 : i32
    %c0_i32_1 = arith.constant 0 : i32
    return %c0_i32, %c0_i32_0 : i32, i32
  }
  func.func @transform_16(%arg0: i32) -> (i32, i32) {
    %c0_i32 = arith.constant 0 : i32
    %c0_i32_0 = arith.constant 0 : i32
    %c0_i32_1 = arith.constant 0 : i32
    return %c0_i32, %c0_i32_0 : i32, i32
  }
  func.func @transform_17(%arg0: i32) -> (i32, i32) {
    %c0_i32 = arith.constant 0 : i32
    %c0_i32_0 = arith.constant 0 : i32
    %c0_i32_1 = arith.constant 0 : i32
    return %c0_i32, %c0_i32_0 : i32, i32
  }
  func.func @transform_18(%arg0: i32) -> (i32, i32) {
    %c0_i32 = arith.constant 0 : i32
    %c0_i32_0 = arith.constant 0 : i32
    %c0_i32_1 = arith.constant 0 : i32
    return %c0_i32, %c0_i32_0 : i32, i32
  }
  func.func @transform_19(%arg0: i32) -> (i32, i32) {
    %c0_i32 = arith.constant 0 : i32
    %c0_i32_0 = arith.constant 0 : i32
    %c0_i32_1 = arith.constant 0 : i32
    return %c0_i32, %c0_i32_0 : i32, i32
  }
  func.func @transform_20(%arg0: i32) -> (i32, i32) {
    %c0_i32 = arith.constant 0 : i32
    %c0_i32_0 = arith.constant 0 : i32
    %c0_i32_1 = arith.constant 0 : i32
    return %c0_i32, %c0_i32_0 : i32, i32
  }
  func.func @transform_21(%arg0: i32) -> (i32, i32, i32) {
    %c0_i32 = arith.constant 0 : i32
    %c0_i32_0 = arith.constant 0 : i32
    %c0_i32_1 = arith.constant 0 : i32
    return %arg0, %c0_i32, %c0_i32_0 : i32, i32, i32
  }
}

</mosaic_0001>

<llo_original>
// kernel: custom_cnn2d_forward.1
$region0: #{custom_cnn2d_forward.1}
  #allocation0 [shape = 'u32[]', space=smem, size = 0x4, offset = 0x4, fixed_abs, tag = 'smem constant byte address 0x4 - core index']
  #allocation1 [shape = 'u32[72,128]{1,0:T(1,128)}', space=vmem, size = 0x9000, scoped, tag = 'internal scratch']
  #allocation2 [shape = 'f32[8,326]{1,0:T(8,128)}', space=vmem, size = 0x3000, scoped, tag = 'scratch operand']
  #allocation3 [shape = 'bf16[16,326]{1,0:T(8,128)(2,1)}', space=vmem, size = 0x3000, scoped, tag = 'scratch operand']
  #allocation4 [shape = 'bf16[16,123]{1,0:T(8,128)(2,1)}', space=vmem, size = 0x1000, scoped, tag = 'scratch operand']
  #allocation5 [shape = 'bf16[16,123]{1,0:T(8,128)(2,1)}', space=vmem, size = 0x1000, scoped, tag = 'scratch operand']
  #allocation6 [shape = 'bf16[32,123]{1,0:T(8,128)(2,1)}', space=vmem, size = 0x2000, scoped, tag = 'scratch operand']
  #allocation7 [shape = 'bf16[32,51]{1,0:T(8,128)(2,1)}', space=vmem, size = 0x2000, scoped, tag = 'scratch operand']
  #allocation8 [shape = 'bf16[64,51]{1,0:T(8,128)(2,1)}', space=vmem, size = 0x4000, scoped, tag = 'scratch operand']
  #allocation9 [shape = 'bf16[64,51]{1,0:T(8,128)(2,1)}', space=vmem, size = 0x4000, scoped, tag = 'scratch operand']
  #allocation10 [shape = 'bf16[64,51]{1,0:T(8,128)(2,1)}', space=vmem, size = 0x4000, scoped, tag = 'scratch operand']
  #allocation11 [shape = 'f32[72,288]{1,0:T(8,128)}', space=vmem, size = 0x1b000, scoped, tag = 'scratch operand']
  #allocation12 [shape = 'bf16[144,99]{1,0:T(8,128)(2,1)}', space=vmem, size = 0x9000, scoped, tag = 'scratch operand']
  #allocation13 [shape = 'bf16[576,35]{1,0:T(8,128)(2,1)}', space=vmem, size = 0x24000, scoped, tag = 'scratch operand']
  %s0 = inlined_call_operand.vmem [shape: f32[2,1,326], index: 0, kind: input, shape index: {}]
  %s1 = inlined_call_operand.vmem [shape: f32[9,8,1], index: 1, kind: input, shape index: {}]
  %s2 = inlined_call_operand.vmem [shape: f32[8,1], index: 2, kind: input, shape index: {}]
  %s3 = inlined_call_operand.vmem [shape: f32[16,72], index: 3, kind: input, shape index: {}]
  %s4 = inlined_call_operand.vmem [shape: f32[16,1], index: 4, kind: input, shape index: {}]
  %s5 = inlined_call_operand.vmem [shape: bf16[16,144], index: 5, kind: input, shape index: {}]
  %s6 = inlined_call_operand.vmem [shape: f32[16,1], index: 6, kind: input, shape index: {}]
  %s7 = inlined_call_operand.vmem [shape: bf16[32,144], index: 7, kind: input, shape index: {}]
  %s8 = inlined_call_operand.vmem [shape: f32[32,1], index: 8, kind: input, shape index: {}]
  %s9 = inlined_call_operand.vmem [shape: bf16[64,288], index: 9, kind: input, shape index: {}]
  %s10 = inlined_call_operand.vmem [shape: f32[64,1], index: 10, kind: input, shape index: {}]
  %s11 = inlined_call_operand.vmem [shape: bf16[64,576], index: 11, kind: input, shape index: {}]
  %s12 = inlined_call_operand.vmem [shape: f32[64,1], index: 12, kind: input, shape index: {}]
  %s13 = inlined_call_operand.vmem [shape: bf16[64,576], index: 13, kind: input, shape index: {}]
  %s14 = inlined_call_operand.vmem [shape: f32[64,1], index: 14, kind: input, shape index: {}]
  %s15 = inlined_call_operand.vmem [shape: f32[1,288], index: 15, kind: input, shape index: {}]
  %s16 = inlined_call_operand.vmem [shape: f32[1,99], index: 16, kind: input, shape index: {}]
  %s17 = inlined_call_operand.vmem [shape: f32[1,35], index: 17, kind: input, shape index: {}]
  %s18 = inlined_call_operand.vmem [shape: bf16[305,123], index: 18, kind: input, shape index: {}]
  %s19 = inlined_call_operand.vmem [shape: bf16[97,51], index: 19, kind: input, shape index: {}]
  %s20 = inlined_call_operand.vmem [shape: bf16[33,9], index: 20, kind: input, shape index: {}]
  %s21 = inlined_call_operand.vmem [shape: f32[2,64,9], index: 21, kind: output, shape index: {}]
  %s22 = sld [smem:[#allocation0]]
  $region117: #{custom_cnn2d_forward.1} parent=0
    _
  %s24 = ssub.s32 1, %s22
  %s25 = scalar_select 0, %s24, %s22
  loop: start=0, step=1, limit=4
  $region2: #{custom_cnn2d_forward.1} parent=0 // loop_pre_header
    _
  $region3: #{custom_cnn2d_forward.1} parent=0 // loop_header
    %s27 = sphi 0, %s31
    %p28 = scmp.ge.s32.totalorder %s27, 4
    %s37 = sphi 0, %s39
    %s40 = sphi 0, %s37
    %s41 = sphi 0, %s40
    %s57 = sphi 0, %s41
    %s61 = sphi 0, %s61
    %s63 = sphi 0, %s61
    %s64 = sphi 0, %s63
    %s78 = sphi 0, %s64
    %s82 = sphi 0, %s82
    %s84 = sphi 0, %s82
    %s85 = sphi 0, %s84
    %s99 = sphi 0, %s85
    %s103 = sphi 0, %s103
    %s105 = sphi 0, %s103
    %s106 = sphi 0, %s105
    %s120 = sphi 0, %s106
    %s124 = sphi 0, %s124
    %s126 = sphi 0, %s124
    %s127 = sphi 0, %s126
    %s141 = sphi 0, %s127
    %s145 = sphi 0, %s145
    %s147 = sphi 0, %s145
    %s148 = sphi 0, %s147
    %s162 = sphi 0, %s148
    %s166 = sphi 0, %s166
    %s168 = sphi 0, %s166
    %s169 = sphi 0, %s168
    %s183 = sphi 0, %s169
    %s187 = sphi 0, %s187
    %s189 = sphi 0, %s187
    %s190 = sphi 0, %s189
    %s204 = sphi 0, %s190
    %s208 = sphi 0, %s208
    %s210 = sphi 0, %s208
    %s211 = sphi 0, %s210
    %s225 = sphi 0, %s211
    %s229 = sphi 0, %s229
    %s231 = sphi 0, %s229
    %s232 = sphi 0, %s231
    %s246 = sphi 0, %s232
    %s250 = sphi 0, %s250
    %s252 = sphi 0, %s250
    %s253 = sphi 0, %s252
    %s267 = sphi 0, %s253
    %s271 = sphi 0, %s271
    %s273 = sphi 0, %s271
    %s274 = sphi 0, %s273
    %s288 = sphi 0, %s274
    %s292 = sphi 0, %s292
    %s294 = sphi 0, %s292
    %s295 = sphi 0, %s294
    %s309 = sphi 0, %s295
    %s313 = sphi 0, %s313
    %s315 = sphi 0, %s313
    %s316 = sphi 0, %s315
    %s330 = sphi 0, %s316
    %s334 = sphi 0, %s334
    %s336 = sphi 0, %s334
    %s337 = sphi 0, %s336
    %s351 = sphi 0, %s337
    %s355 = sphi 0, %s355
    %s357 = sphi 0, %s355
    %s358 = sphi 0, %s357
    %s372 = sphi 0, %s358
    %s376 = sphi 0, %s376
    %s378 = sphi 0, %s376
    %s379 = sphi 0, %s378
    %s393 = sphi 0, %s379
    %s397 = sphi 0, %s397
    %s399 = sphi 0, %s397
    %s400 = sphi 0, %s399
    %s414 = sphi 0, %s400
    %s418 = sphi 0, %s418
    %s420 = sphi 0, %s418
    %s421 = sphi 0, %s420
    %s435 = sphi 0, %s421
    %s439 = sphi 0, %s439
    %s441 = sphi 0, %s439
    %s442 = sphi 0, %s441
    %s456 = sphi 0, %s442
    %s460 = sphi 0, %s460
    %s462 = sphi 0, %s460
    %s463 = sphi 0, %s462
    %s477 = sphi 0, %s463
    %s483 = sphi 0, %s485
    %s486 = sphi 0, %s483
    %s487 = sphi 0, %s486
    %s503 = sphi 0, %s487
  $region4: #{custom_cnn2d_forward.1} parent=0 // loop_header_branch
    %30 = sbr.rel (%p28) target = $region8
  $region5: #{custom_cnn2d_forward.1} parent=0 // loop_body
    %s32 = ssub.s32 %s27, 1
    %s33 = ssub.s32 %s27, 2
    %s34 = sadd.s32 %s27, 1
    %s35 = ssub.s32 %s27, %s34
    %p36 = scmp.eq.s32.totalorder %s35, 0
    %s38 = sadd.s32 %s37, 1
    %s39 = scalar_select %p36, %s37, %s38
    %p42 = pneg %p36
    %p43 = scmp.eq.s32.totalorder %s27, 1
    %p44 = por %p42, %p43
    %p45 = scmp.ne.s32.totalorder %s37, %s40
    %p46 = scmp.eq.s32.totalorder %s27, 0
    %p47 = por %p45, %p46
    %p48 = scmp.ne.s32.totalorder %s37, %s40
    %p49 = scmp.eq.s32.totalorder %s32, 1
    %p50 = por %p48, %p49
    %p51 = scmp.ne.s32.totalorder %s40, %s41
    %p52 = scmp.eq.s32.totalorder %s32, 0
    %p53 = por %p51, %p52
    %p54 = scmp.ne.s32.totalorder %s40, %s41
    %p55 = scmp.eq.s32.totalorder %s33, 1
    %p56 = por %p54, %p55
    %p58 = scmp.ne.s32.totalorder %s41, %s57
    %p59 = scmp.eq.s32.totalorder %s33, 0
    %p60 = por %p58, %p59
    %s62 = sadd.s32 %s61, 1
    %p65 = scmp.eq.s32.totalorder %s27, 1
    %p66 = scmp.ne.s32.totalorder %s61, %s63
    %p67 = scmp.eq.s32.totalorder %s27, 0
    %p68 = por %p66, %p67
    %p69 = scmp.ne.s32.totalorder %s61, %s63
    %p70 = scmp.eq.s32.totalorder %s32, 1
    %p71 = por %p69, %p70
    %p72 = scmp.ne.s32.totalorder %s63, %s64
    %p73 = scmp.eq.s32.totalorder %s32, 0
    %p74 = por %p72, %p73
    %p75 = scmp.ne.s32.totalorder %s63, %s64
    %p76 = scmp.eq.s32.totalorder %s33, 1
    %p77 = por %p75, %p76
    %p79 = scmp.ne.s32.totalorder %s64, %s78
    %p80 = scmp.eq.s32.totalorder %s33, 0
    %p81 = por %p79, %p80
    %s83 = sadd.s32 %s82, 1
    %p86 = scmp.eq.s32.totalorder %s27, 1
    %p87 = scmp.ne.s32.totalorder %s82, %s84
    %p88 = scmp.eq.s32.totalorder %s27, 0
    %p89 = por %p87, %p88
    %p90 = scmp.ne.s32.totalorder %s82, %s84
    %p91 = scmp.eq.s32.totalorder %s32, 1
    %p92 = por %p90, %p91
    %p93 = scmp.ne.s32.totalorder %s84, %s85
    %p94 = scmp.eq.s32.totalorder %s32, 0
    %p95 = por %p93, %p94
    %p96 = scmp.ne.s32.totalorder %s84, %s85
    %p97 = scmp.eq.s32.totalorder %s33, 1
    %p98 = por %p96, %p97
    %p100 = scmp.ne.s32.totalorder %s85, %s99
    %p101 = scmp.eq.s32.totalorder %s33, 0
    %p102 = por %p100, %p101
    %s104 = sadd.s32 %s103, 1
    %p107 = scmp.eq.s32.totalorder %s27, 1
    %p108 = scmp.ne.s32.totalorder %s103, %s105
    %p109 = scmp.eq.s32.totalorder %s27, 0
    %p110 = por %p108, %p109
    %p111 = scmp.ne.s32.totalorder %s103, %s105
    %p112 = scmp.eq.s32.totalorder %s32, 1
    %p113 = por %p111, %p112
    %p114 = scmp.ne.s32.totalorder %s105, %s106
    %p115 = scmp.eq.s32.totalorder %s32, 0
    %p116 = por %p114, %p115
    %p117 = scmp.ne.s32.totalorder %s105, %s106
    %p118 = scmp.eq.s32.totalorder %s33, 1
    %p119 = por %p117, %p118
    %p121 = scmp.ne.s32.totalorder %s106, %s120
    %p122 = scmp.eq.s32.totalorder %s33, 0
    %p123 = por %p121, %p122
    %s125 = sadd.s32 %s124, 1
    %p128 = scmp.eq.s32.totalorder %s27, 1
    %p129 = scmp.ne.s32.totalorder %s124, %s126
    %p130 = scmp.eq.s32.totalorder %s27, 0
    %p131 = por %p129, %p130
    %p132 = scmp.ne.s32.totalorder %s124, %s126
    %p133 = scmp.eq.s32.totalorder %s32, 1
    %p134 = por %p132, %p133
    %p135 = scmp.ne.s32.totalorder %s126, %s127
    %p136 = scmp.eq.s32.totalorder %s32, 0
    %p137 = por %p135, %p136
    %p138 = scmp.ne.s32.totalorder %s126, %s127
    %p139 = scmp.eq.s32.totalorder %s33, 1
    %p140 = por %p138, %p139
    %p142 = scmp.ne.s32.totalorder %s127, %s141
    %p143 = scmp.eq.s32.totalorder %s33, 0
    %p144 = por %p142, %p143
    %s146 = sadd.s32 %s145, 1
    %p149 = scmp.eq.s32.totalorder %s27, 1
    %p150 = scmp.ne.s32.totalorder %s145, %s147
    %p151 = scmp.eq.s32.totalorder %s27, 0
    %p152 = por %p150, %p151
    %p153 = scmp.ne.s32.totalorder %s145, %s147
    %p154 = scmp.eq.s32.totalorder %s32, 1
    %p155 = por %p153, %p154
    %p156 = scmp.ne.s32.totalorder %s147, %s148
    %p157 = scmp.eq.s32.totalorder %s32, 0
    %p158 = por %p156, %p157
    %p159 = scmp.ne.s32.totalorder %s147, %s148
    %p160 = scmp.eq.s32.totalorder %s33, 1
    %p161 = por %p159, %p160
    %p163 = scmp.ne.s32.totalorder %s148, %s162
    %p164 = scmp.eq.s32.totalorder %s33, 0
    %p165 = por %p163, %p164
    %s167 = sadd.s32 %s166, 1
    %p170 = scmp.eq.s32.totalorder %s27, 1
    %p171 = scmp.ne.s32.totalorder %s166, %s168
    %p172 = scmp.eq.s32.totalorder %s27, 0
    %p173 = por %p171, %p172
    %p174 = scmp.ne.s32.totalorder %s166, %s168
    %p175 = scmp.eq.s32.totalorder %s32, 1
    %p176 = por %p174, %p175
    %p177 = scmp.ne.s32.totalorder %s168, %s169
    %p178 = scmp.eq.s32.totalorder %s32, 0
    %p179 = por %p177, %p178
    %p180 = scmp.ne.s32.totalorder %s168, %s169
    %p181 = scmp.eq.s32.totalorder %s33, 1
    %p182 = por %p180, %p181
    %p184 = scmp.ne.s32.totalorder %s169, %s183
    %p185 = scmp.eq.s32.totalorder %s33, 0
    %p186 = por %p184, %p185
    %s188 = sadd.s32 %s187, 1
    %p191 = scmp.eq.s32.totalorder %s27, 1
    %p192 = scmp.ne.s32.totalorder %s187, %s189
    %p193 = scmp.eq.s32.totalorder %s27, 0
    %p194 = por %p192, %p193
    %p195 = scmp.ne.s32.totalorder %s187, %s189
    %p196 = scmp.eq.s32.totalorder %s32, 1
    %p197 = por %p195, %p196
    %p198 = scmp.ne.s32.totalorder %s189, %s190
    %p199 = scmp.eq.s32.totalorder %s32, 0
    %p200 = por %p198, %p199
    %p201 = scmp.ne.s32.totalorder %s189, %s190
    %p202 = scmp.eq.s32.totalorder %s33, 1
    %p203 = por %p201, %p202
    %p205 = scmp.ne.s32.totalorder %s190, %s204
    %p206 = scmp.eq.s32.totalorder %s33, 0
    %p207 = por %p205, %p206
    %s209 = sadd.s32 %s208, 1
    %p212 = scmp.eq.s32.totalorder %s27, 1
    %p213 = scmp.ne.s32.totalorder %s208, %s210
    %p214 = scmp.eq.s32.totalorder %s27, 0
    %p215 = por %p213, %p214
    %p216 = scmp.ne.s32.totalorder %s208, %s210
    %p217 = scmp.eq.s32.totalorder %s32, 1
    %p218 = por %p216, %p217
    %p219 = scmp.ne.s32.totalorder %s210, %s211
    %p220 = scmp.eq.s32.totalorder %s32, 0
    %p221 = por %p219, %p220
    %p222 = scmp.ne.s32.totalorder %s210, %s211
    %p223 = scmp.eq.s32.totalorder %s33, 1
    %p224 = por %p222, %p223
    %p226 = scmp.ne.s32.totalorder %s211, %s225
    %p227 = scmp.eq.s32.totalorder %s33, 0
    %p228 = por %p226, %p227
    %s230 = sadd.s32 %s229, 1
    %p233 = scmp.eq.s32.totalorder %s27, 1
    %p234 = scmp.ne.s32.totalorder %s229, %s231
    %p235 = scmp.eq.s32.totalorder %s27, 0
    %p236 = por %p234, %p235
    %p237 = scmp.ne.s32.totalorder %s229, %s231
    %p238 = scmp.eq.s32.totalorder %s32, 1
    %p239 = por %p237, %p238
    %p240 = scmp.ne.s32.totalorder %s231, %s232
    %p241 = scmp.eq.s32.totalorder %s32, 0
    %p242 = por %p240, %p241
    %p243 = scmp.ne.s32.totalorder %s231, %s232
    %p244 = scmp.eq.s32.totalorder %s33, 1
    %p245 = por %p243, %p244
    %p247 = scmp.ne.s32.totalorder %s232, %s246
    %p248 = scmp.eq.s32.totalorder %s33, 0
    %p249 = por %p247, %p248
    %s251 = sadd.s32 %s250, 1
    %p254 = scmp.eq.s32.totalorder %s27, 1
    %p255 = scmp.ne.s32.totalorder %s250, %s252
    %p256 = scmp.eq.s32.totalorder %s27, 0
    %p257 = por %p255, %p256
    %p258 = scmp.ne.s32.totalorder %s250, %s252
    %p259 = scmp.eq.s32.totalorder %s32, 1
    %p260 = por %p258, %p259
    %p261 = scmp.ne.s32.totalorder %s252, %s253
    %p262 = scmp.eq.s32.totalorder %s32, 0
    %p263 = por %p261, %p262
    %p264 = scmp.ne.s32.totalorder %s252, %s253
    %p265 = scmp.eq.s32.totalorder %s33, 1
    %p266 = por %p264, %p265
    %p268 = scmp.ne.s32.totalorder %s253, %s267
    %p269 = scmp.eq.s32.totalorder %s33, 0
    %p270 = por %p268, %p269
    %s272 = sadd.s32 %s271, 1
    %p275 = scmp.eq.s32.totalorder %s27, 1
    %p276 = scmp.ne.s32.totalorder %s271, %s273
    %p277 = scmp.eq.s32.totalorder %s27, 0
    %p278 = por %p276, %p277
    %p279 = scmp.ne.s32.totalorder %s271, %s273
    %p280 = scmp.eq.s32.totalorder %s32, 1
    %p281 = por %p279, %p280
    %p282 = scmp.ne.s32.totalorder %s273, %s274
    %p283 = scmp.eq.s32.totalorder %s32, 0
    %p284 = por %p282, %p283
    %p285 = scmp.ne.s32.totalorder %s273, %s274
    %p286 = scmp.eq.s32.totalorder %s33, 1
    %p287 = por %p285, %p286
    %p289 = scmp.ne.s32.totalorder %s274, %s288
    %p290 = scmp.eq.s32.totalorder %s33, 0
    %p291 = por %p289, %p290
    %s293 = sadd.s32 %s292, 1
    %p296 = scmp.eq.s32.totalorder %s27, 1
    %p297 = scmp.ne.s32.totalorder %s292, %s294
    %p298 = scmp.eq.s32.totalorder %s27, 0
    %p299 = por %p297, %p298
    %p300 = scmp.ne.s32.totalorder %s292, %s294
    %p301 = scmp.eq.s32.totalorder %s32, 1
    %p302 = por %p300, %p301
    %p303 = scmp.ne.s32.totalorder %s294, %s295
    %p304 = scmp.eq.s32.totalorder %s32, 0
    %p305 = por %p303, %p304
    %p306 = scmp.ne.s32.totalorder %s294, %s295
    %p307 = scmp.eq.s32.totalorder %s33, 1
    %p308 = por %p306, %p307
    %p310 = scmp.ne.s32.totalorder %s295, %s309
    %p311 = scmp.eq.s32.totalorder %s33, 0
    %p312 = por %p310, %p311
    %s314 = sadd.s32 %s313, 1
    %p317 = scmp.eq.s32.totalorder %s27, 1
    %p318 = scmp.ne.s32.totalorder %s313, %s315
    %p319 = scmp.eq.s32.totalorder %s27, 0
    %p320 = por %p318, %p319
    %p321 = scmp.ne.s32.totalorder %s313, %s315
    %p322 = scmp.eq.s32.totalorder %s32, 1
    %p323 = por %p321, %p322
    %p324 = scmp.ne.s32.totalorder %s315, %s316
    %p325 = scmp.eq.s32.totalorder %s32, 0
    %p326 = por %p324, %p325
    %p327 = scmp.ne.s32.totalorder %s315, %s316
    %p328 = scmp.eq.s32.totalorder %s33, 1
    %p329 = por %p327, %p328
    %p331 = scmp.ne.s32.totalorder %s316, %s330
    %p332 = scmp.eq.s32.totalorder %s33, 0
    %p333 = por %p331, %p332
    %s335 = sadd.s32 %s334, 1
    %p338 = scmp.eq.s32.totalorder %s27, 1
    %p339 = scmp.ne.s32.totalorder %s334, %s336
    %p340 = scmp.eq.s32.totalorder %s27, 0
    %p341 = por %p339, %p340
    %p342 = scmp.ne.s32.totalorder %s334, %s336
    %p343 = scmp.eq.s32.totalorder %s32, 1
    %p344 = por %p342, %p343
    %p345 = scmp.ne.s32.totalorder %s336, %s337
    %p346 = scmp.eq.s32.totalorder %s32, 0
    %p347 = por %p345, %p346
    %p348 = scmp.ne.s32.totalorder %s336, %s337
    %p349 = scmp.eq.s32.totalorder %s33, 1
    %p350 = por %p348, %p349
    %p352 = scmp.ne.s32.totalorder %s337, %s351
    %p353 = scmp.eq.s32.totalorder %s33, 0
    %p354 = por %p352, %p353
    %s356 = sadd.s32 %s355, 1
    %p359 = scmp.eq.s32.totalorder %s27, 1
    %p360 = scmp.ne.s32.totalorder %s355, %s357
    %p361 = scmp.eq.s32.totalorder %s27, 0
    %p362 = por %p360, %p361
    %p363 = scmp.ne.s32.totalorder %s355, %s357
    %p364 = scmp.eq.s32.totalorder %s32, 1
    %p365 = por %p363, %p364
    %p366 = scmp.ne.s32.totalorder %s357, %s358
    %p367 = scmp.eq.s32.totalorder %s32, 0
    %p368 = por %p366, %p367
    %p369 = scmp.ne.s32.totalorder %s357, %s358
    %p370 = scmp.eq.s32.totalorder %s33, 1
    %p371 = por %p369, %p370
    %p373 = scmp.ne.s32.totalorder %s358, %s372
    %p374 = scmp.eq.s32.totalorder %s33, 0
    %p375 = por %p373, %p374
    %s377 = sadd.s32 %s376, 1
    %p380 = scmp.eq.s32.totalorder %s27, 1
    %p381 = scmp.ne.s32.totalorder %s376, %s378
    %p382 = scmp.eq.s32.totalorder %s27, 0
    %p383 = por %p381, %p382
    %p384 = scmp.ne.s32.totalorder %s376, %s378
    %p385 = scmp.eq.s32.totalorder %s32, 1
    %p386 = por %p384, %p385
    %p387 = scmp.ne.s32.totalorder %s378, %s379
    %p388 = scmp.eq.s32.totalorder %s32, 0
    %p389 = por %p387, %p388
    %p390 = scmp.ne.s32.totalorder %s378, %s379
    %p391 = scmp.eq.s32.totalorder %s33, 1
    %p392 = por %p390, %p391
    %p394 = scmp.ne.s32.totalorder %s379, %s393
    %p395 = scmp.eq.s32.totalorder %s33, 0
    %p396 = por %p394, %p395
    %s398 = sadd.s32 %s397, 1
    %p401 = scmp.eq.s32.totalorder %s27, 1
    %p402 = scmp.ne.s32.totalorder %s397, %s399
    %p403 = scmp.eq.s32.totalorder %s27, 0
    %p404 = por %p402, %p403
    %p405 = scmp.ne.s32.totalorder %s397, %s399
    %p406 = scmp.eq.s32.totalorder %s32, 1
    %p407 = por %p405, %p406
    %p408 = scmp.ne.s32.totalorder %s399, %s400
    %p409 = scmp.eq.s32.totalorder %s32, 0
    %p410 = por %p408, %p409
    %p411 = scmp.ne.s32.totalorder %s399, %s400
    %p412 = scmp.eq.s32.totalorder %s33, 1
    %p413 = por %p411, %p412
    %p415 = scmp.ne.s32.totalorder %s400, %s414
    %p416 = scmp.eq.s32.totalorder %s33, 0
    %p417 = por %p415, %p416
    %s419 = sadd.s32 %s418, 1
    %p422 = scmp.eq.s32.totalorder %s27, 1
    %p423 = scmp.ne.s32.totalorder %s418, %s420
    %p424 = scmp.eq.s32.totalorder %s27, 0
    %p425 = por %p423, %p424
    %p426 = scmp.ne.s32.totalorder %s418, %s420
    %p427 = scmp.eq.s32.totalorder %s32, 1
    %p428 = por %p426, %p427
    %p429 = scmp.ne.s32.totalorder %s420, %s421
    %p430 = scmp.eq.s32.totalorder %s32, 0
    %p431 = por %p429, %p430
    %p432 = scmp.ne.s32.totalorder %s420, %s421
    %p433 = scmp.eq.s32.totalorder %s33, 1
    %p434 = por %p432, %p433
    %p436 = scmp.ne.s32.totalorder %s421, %s435
    %p437 = scmp.eq.s32.totalorder %s33, 0
    %p438 = por %p436, %p437
    %s440 = sadd.s32 %s439, 1
    %p443 = scmp.eq.s32.totalorder %s27, 1
    %p444 = scmp.ne.s32.totalorder %s439, %s441
    %p445 = scmp.eq.s32.totalorder %s27, 0
    %p446 = por %p444, %p445
    %p447 = scmp.ne.s32.totalorder %s439, %s441
    %p448 = scmp.eq.s32.totalorder %s32, 1
    %p449 = por %p447, %p448
    %p450 = scmp.ne.s32.totalorder %s441, %s442
    %p451 = scmp.eq.s32.totalorder %s32, 0
    %p452 = por %p450, %p451
    %p453 = scmp.ne.s32.totalorder %s441, %s442
    %p454 = scmp.eq.s32.totalorder %s33, 1
    %p455 = por %p453, %p454
    %p457 = scmp.ne.s32.totalorder %s442, %s456
    %p458 = scmp.eq.s32.totalorder %s33, 0
    %p459 = por %p457, %p458
    %s461 = sadd.s32 %s460, 1
    %p464 = scmp.eq.s32.totalorder %s27, 1
    %p465 = scmp.ne.s32.totalorder %s460, %s462
    %p466 = scmp.eq.s32.totalorder %s27, 0
    %p467 = por %p465, %p466
    %p468 = scmp.ne.s32.totalorder %s460, %s462
    %p469 = scmp.eq.s32.totalorder %s32, 1
    %p470 = por %p468, %p469
    %p471 = scmp.ne.s32.totalorder %s462, %s463
    %p472 = scmp.eq.s32.totalorder %s32, 0
    %p473 = por %p471, %p472
    %p474 = scmp.ne.s32.totalorder %s462, %s463
    %p475 = scmp.eq.s32.totalorder %s33, 1
    %p476 = por %p474, %p475
    %p478 = scmp.ne.s32.totalorder %s463, %s477
    %p479 = scmp.eq.s32.totalorder %s33, 0
    %p480 = por %p478, %p479
    %s481 = ssub.s32 %s27, %s34
    %p482 = scmp.eq.s32.totalorder %s481, 0
    %s484 = sadd.s32 %s483, 1
    %s485 = scalar_select %p482, %s483, %s484
    %p488 = pneg %p482
    %p489 = scmp.eq.s32.totalorder %s27, 1
    %p490 = por %p488, %p489
    %p491 = scmp.ne.s32.totalorder %s483, %s486
    %p492 = scmp.eq.s32.totalorder %s27, 0
    %p493 = por %p491, %p492
    %p494 = scmp.ne.s32.totalorder %s483, %s486
    %p495 = scmp.eq.s32.totalorder %s32, 1
    %p496 = por %p494, %p495
    %p497 = scmp.ne.s32.totalorder %s486, %s487
    %p498 = scmp.eq.s32.totalorder %s32, 0
    %p499 = por %p497, %p498
    %p500 = scmp.ne.s32.totalorder %s486, %s487
    %p501 = scmp.eq.s32.totalorder %s33, 1
    %p502 = por %p500, %p501
    %p504 = scmp.ne.s32.totalorder %s487, %s503
    %p505 = scmp.eq.s32.totalorder %s33, 0
    %p506 = por %p504, %p505
    %p507 = scmp.le.s32.totalorder 1, %s27
    %p508 = scmp.lt.s32.totalorder %s27, 3
    %p509 = pnand %p507, %p508
    %p510 = pneg %p509
    // Predicated region
    $region9: #{custom_cnn2d_forward.1} parent=5 // pred_check
      _
    $region10: #{custom_cnn2d_forward.1} parent=5 // pred_check_branch
      %512 = sbr.rel (%p509) target = $region12
    $region11: #{custom_cnn2d_forward.1} parent=5 // pred_region
      %s513 = ssub.s32 %s27, 1
      // Predicated region
      $region13: #{custom_cnn2d_forward.1} parent=11 // pred_check
        %p514 = pneg %p74
      $region14: #{custom_cnn2d_forward.1} parent=11 // pred_check_branch
        %516 = sbr.rel (%p514) target = $region16
      $region15: #{custom_cnn2d_forward.1} parent=11 // pred_region
        _
      $region16: #{custom_cnn2d_forward.1} parent=11 // pred_fallthru
        _
      // Predicated region
      $region17: #{custom_cnn2d_forward.1} parent=11 // pred_check
        %p517 = pneg %p95
      $region18: #{custom_cnn2d_forward.1} parent=11 // pred_check_branch
        %519 = sbr.rel (%p517) target = $region20
      $region19: #{custom_cnn2d_forward.1} parent=11 // pred_region
        _
      $region20: #{custom_cnn2d_forward.1} parent=11 // pred_fallthru
        _
      // Predicated region
      $region21: #{custom_cnn2d_forward.1} parent=11 // pred_check
        %p520 = pneg %p116
      $region22: #{custom_cnn2d_forward.1} parent=11 // pred_check_branch
        %522 = sbr.rel (%p520) target = $region24
      $region23: #{custom_cnn2d_forward.1} parent=11 // pred_region
        _
      $region24: #{custom_cnn2d_forward.1} parent=11 // pred_fallthru
        _
      // Predicated region
      $region25: #{custom_cnn2d_forward.1} parent=11 // pred_check
        %p523 = pneg %p137
      $region26: #{custom_cnn2d_forward.1} parent=11 // pred_check_branch
        %525 = sbr.rel (%p523) target = $region28
      $region27: #{custom_cnn2d_forward.1} parent=11 // pred_region
        _
      $region28: #{custom_cnn2d_forward.1} parent=11 // pred_fallthru
        _
      // Predicated region
      $region29: #{custom_cnn2d_forward.1} parent=11 // pred_check
        %p526 = pneg %p158
      $region30: #{custom_cnn2d_forward.1} parent=11 // pred_check_branch
        %528 = sbr.rel (%p526) target = $region32
      $region31: #{custom_cnn2d_forward.1} parent=11 // pred_region
        _
      $region32: #{custom_cnn2d_forward.1} parent=11 // pred_fallthru
        _
      // Predicated region
      $region33: #{custom_cnn2d_forward.1} parent=11 // pred_check
        %p529 = pneg %p179
      $region34: #{custom_cnn2d_forward.1} parent=11 // pred_check_branch
        %531 = sbr.rel (%p529) target = $region36
      $region35: #{custom_cnn2d_forward.1} parent=11 // pred_region
        _
      $region36: #{custom_cnn2d_forward.1} parent=11 // pred_fallthru
        _
      // Predicated region
      $region37: #{custom_cnn2d_forward.1} parent=11 // pred_check
        %p532 = pneg %p200
      $region38: #{custom_cnn2d_forward.1} parent=11 // pred_check_branch
        %534 = sbr.rel (%p532) target = $region40
      $region39: #{custom_cnn2d_forward.1} parent=11 // pred_region
        _
      $region40: #{custom_cnn2d_forward.1} parent=11 // pred_fallthru
        _
      // Predicated region
      $region41: #{custom_cnn2d_forward.1} parent=11 // pred_check
        %p535 = pneg %p221
      $region42: #{custom_cnn2d_forward.1} parent=11 // pred_check_branch
        %537 = sbr.rel (%p535) target = $region44
      $region43: #{custom_cnn2d_forward.1} parent=11 // pred_region
        _
      $region44: #{custom_cnn2d_forward.1} parent=11 // pred_fallthru
        _
      // Predicated region
      $region45: #{custom_cnn2d_forward.1} parent=11 // pred_check
        %p538 = pneg %p242
      $region46: #{custom_cnn2d_forward.1} parent=11 // pred_check_branch
        %540 = sbr.rel (%p538) target = $region48
      $region47: #{custom_cnn2d_forward.1} parent=11 // pred_region
        _
      $region48: #{custom_cnn2d_forward.1} parent=11 // pred_fallthru
        _
      // Predicated region
      $region49: #{custom_cnn2d_forward.1} parent=11 // pred_check
        %p541 = pneg %p263
      $region50: #{custom_cnn2d_forward.1} parent=11 // pred_check_branch
        %543 = sbr.rel (%p541) target = $region52
      $region51: #{custom_cnn2d_forward.1} parent=11 // pred_region
        _
      $region52: #{custom_cnn2d_forward.1} parent=11 // pred_fallthru
        _
      // Predicated region
      $region53: #{custom_cnn2d_forward.1} parent=11 // pred_check
        %p544 = pneg %p284
      $region54: #{custom_cnn2d_forward.1} parent=11 // pred_check_branch
        %546 = sbr.rel (%p544) target = $region56
      $region55: #{custom_cnn2d_forward.1} parent=11 // pred_region
        _
      $region56: #{custom_cnn2d_forward.1} parent=11 // pred_fallthru
        _
      // Predicated region
      $region57: #{custom_cnn2d_forward.1} parent=11 // pred_check
        %p547 = pneg %p305
      $region58: #{custom_cnn2d_forward.1} parent=11 // pred_check_branch
        %549 = sbr.rel (%p547) target = $region60
      $region59: #{custom_cnn2d_forward.1} parent=11 // pred_region
        _
      $region60: #{custom_cnn2d_forward.1} parent=11 // pred_fallthru
        _
      // Predicated region
      $region61: #{custom_cnn2d_forward.1} parent=11 // pred_check
        %p550 = pneg %p326
      $region62: #{custom_cnn2d_forward.1} parent=11 // pred_check_branch
        %552 = sbr.rel (%p550) target = $region64
      $region63: #{custom_cnn2d_forward.1} parent=11 // pred_region
        _
      $region64: #{custom_cnn2d_forward.1} parent=11 // pred_fallthru
        _
      // Predicated region
      $region65: #{custom_cnn2d_forward.1} parent=11 // pred_check
        %p553 = pneg %p347
      $region66: #{custom_cnn2d_forward.1} parent=11 // pred_check_branch
        %555 = sbr.rel (%p553) target = $region68
      $region67: #{custom_cnn2d_forward.1} parent=11 // pred_region
        _
      $region68: #{custom_cnn2d_forward.1} parent=11 // pred_fallthru
        _
      // Predicated region
      $region69: #{custom_cnn2d_forward.1} parent=11 // pred_check
        %p556 = pneg %p368
      $region70: #{custom_cnn2d_forward.1} parent=11 // pred_check_branch
        %558 = sbr.rel (%p556) target = $region72
      $region71: #{custom_cnn2d_forward.1} parent=11 // pred_region
        _
      $region72: #{custom_cnn2d_forward.1} parent=11 // pred_fallthru
        _
      // Predicated region
      $region73: #{custom_cnn2d_forward.1} parent=11 // pred_check
        %p559 = pneg %p389
      $region74: #{custom_cnn2d_forward.1} parent=11 // pred_check_branch
        %561 = sbr.rel (%p559) target = $region76
      $region75: #{custom_cnn2d_forward.1} parent=11 // pred_region
        _
      $region76: #{custom_cnn2d_forward.1} parent=11 // pred_fallthru
        _
      // Predicated region
      $region77: #{custom_cnn2d_forward.1} parent=11 // pred_check
        %p562 = pneg %p410
      $region78: #{custom_cnn2d_forward.1} parent=11 // pred_check_branch
        %564 = sbr.rel (%p562) target = $region80
      $region79: #{custom_cnn2d_forward.1} parent=11 // pred_region
        _
      $region80: #{custom_cnn2d_forward.1} parent=11 // pred_fallthru
        _
      // Predicated region
      $region81: #{custom_cnn2d_forward.1} parent=11 // pred_check
        %p565 = pneg %p431
      $region82: #{custom_cnn2d_forward.1} parent=11 // pred_check_branch
        %567 = sbr.rel (%p565) target = $region84
      $region83: #{custom_cnn2d_forward.1} parent=11 // pred_region
        _
      $region84: #{custom_cnn2d_forward.1} parent=11 // pred_fallthru
        _
      // Predicated region
      $region85: #{custom_cnn2d_forward.1} parent=11 // pred_check
        %p568 = pneg %p452
      $region86: #{custom_cnn2d_forward.1} parent=11 // pred_check_branch
        %570 = sbr.rel (%p568) target = $region88
      $region87: #{custom_cnn2d_forward.1} parent=11 // pred_region
        _
      $region88: #{custom_cnn2d_forward.1} parent=11 // pred_fallthru
        _
      // Predicated region
      $region89: #{custom_cnn2d_forward.1} parent=11 // pred_check
        %p571 = pneg %p473
      $region90: #{custom_cnn2d_forward.1} parent=11 // pred_check_branch
        %573 = sbr.rel (%p571) target = $region92
      $region91: #{custom_cnn2d_forward.1} parent=11 // pred_region
        _
      $region92: #{custom_cnn2d_forward.1} parent=11 // pred_fallthru
        _
    $region12: #{custom_cnn2d_forward.1} parent=5 // pred_fallthru
      _
    %p574 = scmp.lt.s32.totalorder %s27, 2
    // Predicated region
    $region93: #{custom_cnn2d_forward.1} parent=5 // pred_check
      %p575 = pneg %p574
    $region94: #{custom_cnn2d_forward.1} parent=5 // pred_check_branch
      %577 = sbr.rel (%p575) target = $region96
    $region95: #{custom_cnn2d_forward.1} parent=5 // pred_region
      // Predicated region
      $region97: #{custom_cnn2d_forward.1} parent=95 // pred_check
        %p578 = pneg %p47
      $region98: #{custom_cnn2d_forward.1} parent=95 // pred_check_branch
        %580 = sbr.rel (%p578) target = $region100
      $region99: #{custom_cnn2d_forward.1} parent=95 // pred_region
        %p581 = scmp.lt.s32.totalorder %s27, 1
        %s582 = scalar_select %p581, %s27, 1
        %s583 = smul.addr %s582, 3
        %s584 = scalar_lea.vmem %s0, %s583
      $region100: #{custom_cnn2d_forward.1} parent=95 // pred_fallthru
        _
    $region96: #{custom_cnn2d_forward.1} parent=5 // pred_fallthru
      _
    %p585 = scmp.le.s32.totalorder 1, %s27
    %p586 = scmp.lt.s32.totalorder %s27, 3
    %p587 = pnand %p585, %p586
    %p588 = pneg %p587
    // Predicated region
    $region101: #{custom_cnn2d_forward.1} parent=5 // pred_check
      _
    $region102: #{custom_cnn2d_forward.1} parent=5 // pred_check_branch
      %590 = sbr.rel (%p587) target = $region104
    $region103: #{custom_cnn2d_forward.1} parent=5 // pred_region
      %s591 = ssub.s32 %s27, 1
      %p592 = scmp.lt.s32.totalorder %s32, 1
      %s593 = scalar_select %p592, %s32, 1
      %s594 = smul.addr %s593, 3
      %s595 = scalar_lea.vmem %s0, %s594
      %p596 = pneg %p53
      %p597 = pneg %p50
      %p598 = pneg %p74
      %p599 = pneg %p71
      %p600 = pneg %p95
      %p601 = pneg %p92
      %p602 = pneg %p116
      %p603 = pneg %p113
      %p604 = pneg %p137
      %p605 = pneg %p134
      %p606 = pneg %p158
      %p607 = pneg %p155
      %p608 = pneg %p179
      %p609 = pneg %p176
      %p610 = pneg %p200
      %p611 = pneg %p197
      %p612 = pneg %p221
      %p613 = pneg %p218
      %p614 = pneg %p242
      %p615 = pneg %p239
      %p616 = pneg %p263
      %p617 = pneg %p260
      %p618 = pneg %p284
      %p619 = pneg %p281
      %p620 = pneg %p305
      %p621 = pneg %p302
      %p622 = pneg %p326
      %p623 = pneg %p323
      %p624 = pneg %p347
      %p625 = pneg %p344
      %p626 = pneg %p368
      %p627 = pneg %p365
      %p628 = pneg %p389
      %p629 = pneg %p386
      %p630 = pneg %p410
      %p631 = pneg %p407
      %p632 = pneg %p431
      %p633 = pneg %p428
      %p634 = pneg %p452
      %p635 = pneg %p449
      %p636 = pneg %p473
      %p637 = pneg %p470
      %p638 = pneg %p499
      %p639 = pneg %p496
      %p640 = scmp.lt.s32.totalorder %s32, 1
      %s641 = scalar_select %p640, %s32, 1
      %s642 = smul.addr %s641, 8
      %s643 = smul.addr %s642, 8
      %s644 = scalar_lea.vmem %s21, %s643
      %p645 = scmp.lt.s32.totalorder %s32, 1
      %s646 = scalar_select %p645, %s32, 1
      %s647 = smul.addr %s646, 3
      %s648 = scalar_lea.vmem %s0, %s647
      %p649 = scmp.lt.s32.totalorder %s32, 1
      %s650 = scalar_select %p649, %s32, 1
      %s651 = smul.addr %s650, 8
      %s652 = smul.addr %s651, 8
      %s653 = scalar_lea.vmem %s21, %s652
      %655 = vst [vmem:[#allocation2] sm:$0xff] 0.0
      %656 = vst [vmem:[#allocation2 + $0x8] sm:$0xff] 0.0
      %vm657 = vcmask 572416
      %658 = vst.msk [vmem:[#allocation2 + $0x10] sm:$0xff] %vm657, 0.0
      %v659 = vld [vmem:[%s1] sm:$0xff]
      %v660 = vld [vmem:[%s648] sm:$0x7]
      %662 = vset.pattern.permute.xlu0 0
      %663 = vperm.xlu0 %662, %v659
      %v664 = vpop.permute.xlu0 %663
      %v667 = vperm.slane %v660, 0
      %v668 = vperm.slane %v660, 1
      %v669 = vperm.slane %v660, 2
      %v673 = vmul.f32 %v664, %v667
      %v674 = vmul.f32 %v664, %v668
      %v675 = vmul.f32 %v664, %v669
      %s676 = scalar_lea.vmem %s1, 8
      %v677 = vld [vmem:[%s676] sm:$0xff]
      %679 = vset.pattern.permute.xlu0 0
      %680 = vperm.xlu0 %679, %v677
      %v681 = vpop.permute.xlu0 %680
      %v683 = vmul.f32 %v681, %v667
      %v684 = vmul.f32 %v681, %v668
      %v685 = vmul.f32 %v681, %v669
      %689 = vrot.lane.b32.xlu0 %v683, 127
      %v690 = vpop.permute.xlu0 %689
      %691 = vrot.lane.b32.xlu0 %v684, 127
      %v692 = vpop.permute.xlu0 %691
      %693 = vrot.lane.b32.xlu0 %v685, 127
      %v694 = vpop.permute.xlu0 %693
      %vm695 = vcmask 1039360
      %v696 = vsel %vm695, %v690, %v692
      %v697 = vsel %vm695, %v692, %v694
      %v701 = vadd.f32 %v673, %v696
      %v702 = vadd.f32 %v674, %v697
      %v703 = vadd.f32 %v675, %v694
      %s704 = scalar_lea.vmem %s1, 16
      %v705 = vld [vmem:[%s704] sm:$0xff]
      %707 = vset.pattern.permute.xlu0 0
      %708 = vperm.xlu0 %707, %v705
      %v709 = vpop.permute.xlu0 %708
      %v711 = vmul.f32 %v709, %v667
      %v712 = vmul.f32 %v709, %v668
      %v713 = vmul.f32 %v709, %v669
      %717 = vrot.lane.b32.xlu0 %v711, 126
      %v718 = vpop.permute.xlu0 %717
      %719 = vrot.lane.b32.xlu0 %v712, 126
      %v720 = vpop.permute.xlu0 %719
      %721 = vrot.lane.b32.xlu0 %v713, 126
      %v722 = vpop.permute.xlu0 %721
      %vm723 = vcmask 1031168
      %v724 = vsel %vm723, %v718, %v720
      %v725 = vsel %vm723, %v720, %v722
      %v729 = vadd.f32 %v701, %v724
      %v730 = vadd.f32 %v702, %v725
      %v731 = vadd.f32 %v703, %v722
      %s732 = scalar_lea.vmem %s1, 24
      %v733 = vld [vmem:[%s732] sm:$0xff]
      %735 = vset.pattern.permute.xlu0 0
      %736 = vperm.xlu0 %735, %v733
      %v737 = vpop.permute.xlu0 %736
      %v739 = vmul.f32 %v737, %v667
      %v740 = vmul.f32 %v737, %v668
      %v741 = vmul.f32 %v737, %v669
      %745 = vrot.lane.b32.xlu0 %v739, 110
      %v746 = vpop.permute.xlu0 %745
      %747 = vrot.lane.b32.xlu0 %v740, 110
      %v748 = vpop.permute.xlu0 %747
      %749 = vrot.lane.b32.xlu0 %v741, 110
      %v750 = vpop.permute.xlu0 %749
      %vm751 = vcmask 900096
      %v752 = vsel %vm751, %v746, %v748
      %v753 = vsel %vm751, %v748, %v750
      %v757 = vadd.f32 %v729, %v752
      %v758 = vadd.f32 %v730, %v753
      %v759 = vadd.f32 %v731, %v750
      %s760 = scalar_lea.vmem %s1, 32
      %v761 = vld [vmem:[%s760] sm:$0xff]
      %763 = vset.pattern.permute.xlu0 0
      %764 = vperm.xlu0 %763, %v761
      %v765 = vpop.permute.xlu0 %764
      %v767 = vmul.f32 %v765, %v667
      %v768 = vmul.f32 %v765, %v668
      %v769 = vmul.f32 %v765, %v669
      %773 = vrot.lane.b32.xlu0 %v767, 109
      %v774 = vpop.permute.xlu0 %773
      %775 = vrot.lane.b32.xlu0 %v768, 109
      %v776 = vpop.permute.xlu0 %775
      %777 = vrot.lane.b32.xlu0 %v769, 109
      %v778 = vpop.permute.xlu0 %777
      %vm779 = vcmask 891904
      %v780 = vsel %vm779, %v774, %v776
      %v781 = vsel %vm779, %v776, %v778
      %v785 = vadd.f32 %v757, %v780
      %v786 = vadd.f32 %v758, %v781
      %v787 = vadd.f32 %v759, %v778
      %s788 = scalar_lea.vmem %s1, 40
      %v789 = vld [vmem:[%s788] sm:$0xff]
      %791 = vset.pattern.permute.xlu0 0
      %792 = vperm.xlu0 %791, %v789
      %v793 = vpop.permute.xlu0 %792
      %v795 = vmul.f32 %v793, %v667
      %v796 = vmul.f32 %v793, %v668
      %v797 = vmul.f32 %v793, %v669
      %801 = vrot.lane.b32.xlu0 %v795, 108
      %v802 = vpop.permute.xlu0 %801
      %803 = vrot.lane.b32.xlu0 %v796, 108
      %v804 = vpop.permute.xlu0 %803
      %805 = vrot.lane.b32.xlu0 %v797, 108
      %v806 = vpop.permute.xlu0 %805
      %vm807 = vcmask 883712
      %v808 = vsel %vm807, %v802, %v804
      %v809 = vsel %vm807, %v804, %v806
      %v813 = vadd.f32 %v785, %v808
      %v814 = vadd.f32 %v786, %v809
      %v815 = vadd.f32 %v787, %v806
      %s816 = scalar_lea.vmem %s1, 48
      %v817 = vld [vmem:[%s816] sm:$0xff]
      %819 = vset.pattern.permute.xlu0 0
      %820 = vperm.xlu0 %819, %v817
      %v821 = vpop.permute.xlu0 %820
      %v823 = vmul.f32 %v821, %v667
      %v824 = vmul.f32 %v821, %v668
      %v825 = vmul.f32 %v821, %v669
      %829 = vrot.lane.b32.xlu0 %v823, 92
      %v830 = vpop.permute.xlu0 %829
      %831 = vrot.lane.b32.xlu0 %v824, 92
      %v832 = vpop.permute.xlu0 %831
      %833 = vrot.lane.b32.xlu0 %v825, 92
      %v834 = vpop.permute.xlu0 %833
      %vm835 = vcmask 752640
      %v836 = vsel %vm835, %v830, %v832
      %v837 = vsel %vm835, %v832, %v834
      %v841 = vadd.f32 %v813, %v836
      %v842 = vadd.f32 %v814, %v837
      %v843 = vadd.f32 %v815, %v834
      %s844 = scalar_lea.vmem %s1, 56
      %v845 = vld [vmem:[%s844] sm:$0xff]
      %847 = vset.pattern.permute.xlu0 0
      %848 = vperm.xlu0 %847, %v845
      %v849 = vpop.permute.xlu0 %848
      %v851 = vmul.f32 %v849, %v667
      %v852 = vmul.f32 %v849, %v668
      %v853 = vmul.f32 %v849, %v669
      %857 = vrot.lane.b32.xlu0 %v851, 91
      %v858 = vpop.permute.xlu0 %857
      %859 = vrot.lane.b32.xlu0 %v852, 91
      %v860 = vpop.permute.xlu0 %859
      %861 = vrot.lane.b32.xlu0 %v853, 91
      %v862 = vpop.permute.xlu0 %861
      %vm863 = vcmask 744448
      %v864 = vsel %vm863, %v858, %v860
      %v865 = vsel %vm863, %v860, %v862
      %v869 = vadd.f32 %v841, %v864
      %v870 = vadd.f32 %v842, %v865
      %v871 = vadd.f32 %v843, %v862
      %s872 = scalar_lea.vmem %s1, 64
      %v873 = vld [vmem:[%s872] sm:$0xff]
      %875 = vset.pattern.permute.xlu0 0
      %876 = vperm.xlu0 %875, %v873
      %v877 = vpop.permute.xlu0 %876
      %v879 = vmul.f32 %v877, %v667
      %v880 = vmul.f32 %v877, %v668
      %v881 = vmul.f32 %v877, %v669
      %885 = vrot.lane.b32.xlu0 %v879, 90
      %v886 = vpop.permute.xlu0 %885
      %887 = vrot.lane.b32.xlu0 %v880, 90
      %v888 = vpop.permute.xlu0 %887
      %889 = vrot.lane.b32.xlu0 %v881, 90
      %v890 = vpop.permute.xlu0 %889
      %vm891 = vcmask 736256
      %v892 = vsel %vm891, %v886, %v888
      %v893 = vsel %vm891, %v888, %v890
      %v897 = vadd.f32 %v869, %v892
      %v898 = vadd.f32 %v870, %v893
      %v899 = vadd.f32 %v871, %v890
      %v900 = vld [vmem:[%s2] sm:$0xff]
      %902 = vset.pattern.permute.xlu0 0
      %903 = vperm.xlu0 %902, %v900
      %v904 = vpop.permute.xlu0 %903
      %v906 = vadd.f32 %v897, %v904
      %v907 = vadd.f32 %v898, %v904
      %v908 = vadd.f32 %v899, %v904
      %v909 = vmax.f32 %v906, 0.0
      %v910 = vmax.f32 %v907, 0.0
      %v911 = vmax.f32 %v908, 0.0
      %v912 = vld [vmem:[%s15] sm:$0x7]
      %v914 = vperm.slane %v912, 0
      %v915 = vperm.slane %v912, 1
      %v916 = vperm.slane %v912, 2
      %v920 = vmul.f32 %v909, %v914
      %v921 = vmul.f32 %v910, %v915
      %v922 = vmul.f32 %v911, %v916
      %926 = vrot.lane.b32.xlu0 %v920, 19
      %v927 = vpop.permute.xlu0 %926
      %928 = vrot.lane.b32.xlu0 %v921, 19
      %v929 = vpop.permute.xlu0 %928
      %930 = vrot.lane.b32.xlu0 %v922, 19
      %v931 = vpop.permute.xlu0 %930
      %vm932 = vcmask 154624
      %v933 = vsel %vm932, %v927, %v929
      %v934 = vsel %vm932, %v929, %v931
      %vm938 = vcmask 1047704
      %939 = vst.msk [vmem:[#allocation2] sm:$0xff] %vm938, %v927
      %940 = vst [vmem:[#allocation2 + $0x8] sm:$0xff] %v933
      %vm941 = vcmask 416768
      %942 = vst.msk [vmem:[#allocation2 + $0x10] sm:$0xff] %vm941, %v934
      %v943 = vld [vmem:[#allocation2] sm:$0xff]
      %v944 = vld [vmem:[#allocation2 + $0x8] sm:$0xff]
      %v945 = vld [vmem:[#allocation2 + $0x10] sm:$0xff]
      %946 = vst [vmem:[#allocation11] sm:$0xff] %v943
      %947 = vst [vmem:[#allocation11 + $0x8] sm:$0xff] %v944
      %vm948 = vcmask 261120
      %949 = vst.msk [vmem:[#allocation11 + $0x10] sm:$0xff] %vm948, %v945
      %v950 = vld [vmem:[#allocation2] sm:$0xff]
      %v951 = vld [vmem:[#allocation2 + $0x8] sm:$0xff]
      %v952 = vld [vmem:[#allocation2 + $0x10] sm:$0xff]
      %956 = vrot.lane.b32.xlu0 %v950, 127
      %v957 = vpop.permute.xlu0 %956
      %958 = vrot.lane.b32.xlu0 %v951, 127
      %v959 = vpop.permute.xlu0 %958
      %960 = vrot.lane.b32.xlu0 %v952, 127
      %v961 = vpop.permute.xlu0 %960
      %v962 = vsel %vm695, %v957, %v959
      %v963 = vsel %vm695, %v959, %v961
      %967 = vst [vmem:[#allocation11 + $0x18] sm:$0xff] %v962
      %968 = vst [vmem:[#allocation11 + $0x20] sm:$0xff] %v963
      %969 = vst.msk [vmem:[#allocation11 + $0x28] sm:$0xff] %vm948, %v961
      %v970 = vld [vmem:[#allocation2] sm:$0xff]
      %v971 = vld [vmem:[#allocation2 + $0x8] sm:$0xff]
      %v972 = vld [vmem:[#allocation2 + $0x10] sm:$0xff]
      %976 = vrot.lane.b32.xlu0 %v970, 126
      %v977 = vpop.permute.xlu0 %976
      %978 = vrot.lane.b32.xlu0 %v971, 126
      %v979 = vpop.permute.xlu0 %978
      %980 = vrot.lane.b32.xlu0 %v972, 126
      %v981 = vpop.permute.xlu0 %980
      %v982 = vsel %vm723, %v977, %v979
      %v983 = vsel %vm723, %v979, %v981
      %987 = vst [vmem:[#allocation11 + $0x30] sm:$0xff] %v982
      %988 = vst [vmem:[#allocation11 + $0x38] sm:$0xff] %v983
      %989 = vst.msk [vmem:[#allocation11 + $0x40] sm:$0xff] %vm948, %v981
      %v990 = vld [vmem:[#allocation2] sm:$0xff]
      %v991 = vld [vmem:[#allocation2 + $0x8] sm:$0xff]
      %v992 = vld [vmem:[#allocation2 + $0x10] sm:$0xff]
      %996 = vrot.lane.b32.xlu0 %v990, 110
      %v997 = vpop.permute.xlu0 %996
      %998 = vrot.lane.b32.xlu0 %v991, 110
      %v999 = vpop.permute.xlu0 %998
      %1000 = vrot.lane.b32.xlu0 %v992, 110
      %v1001 = vpop.permute.xlu0 %1000
      %v1002 = vsel %vm751, %v997, %v999
      %v1003 = vsel %vm751, %v999, %v1001
      %1007 = vst [vmem:[#allocation11 + $0x48] sm:$0xff] %v1002
      %1008 = vst [vmem:[#allocation11 + $0x50] sm:$0xff] %v1003
      %1009 = vst.msk [vmem:[#allocation11 + $0x58] sm:$0xff] %vm948, %v1001
      %v1010 = vld [vmem:[#allocation2] sm:$0xff]
      %v1011 = vld [vmem:[#allocation2 + $0x8] sm:$0xff]
      %v1012 = vld [vmem:[#allocation2 + $0x10] sm:$0xff]
      %1016 = vrot.lane.b32.xlu0 %v1010, 109
      %v1017 = vpop.permute.xlu0 %1016
      %1018 = vrot.lane.b32.xlu0 %v1011, 109
      %v1019 = vpop.permute.xlu0 %1018
      %1020 = vrot.lane.b32.xlu0 %v1012, 109
      %v1021 = vpop.permute.xlu0 %1020
      %v1022 = vsel %vm779, %v1017, %v1019
      %v1023 = vsel %vm779, %v1019, %v1021
      %1027 = vst [vmem:[#allocation11 + $0x60] sm:$0xff] %v1022
      %1028 = vst [vmem:[#allocation11 + $0x68] sm:$0xff] %v1023
      %1029 = vst.msk [vmem:[#allocation11 + $0x70] sm:$0xff] %vm948, %v1021
      %v1030 = vld [vmem:[#allocation2] sm:$0xff]
      %v1031 = vld [vmem:[#allocation2 + $0x8] sm:$0xff]
      %v1032 = vld [vmem:[#allocation2 + $0x10] sm:$0xff]
      %1036 = vrot.lane.b32.xlu0 %v1030, 108
      %v1037 = vpop.permute.xlu0 %1036
      %1038 = vrot.lane.b32.xlu0 %v1031, 108
      %v1039 = vpop.permute.xlu0 %1038
      %1040 = vrot.lane.b32.xlu0 %v1032, 108
      %v1041 = vpop.permute.xlu0 %1040
      %v1042 = vsel %vm807, %v1037, %v1039
      %v1043 = vsel %vm807, %v1039, %v1041
      %1047 = vst [vmem:[#allocation11 + $0x78] sm:$0xff] %v1042
      %1048 = vst [vmem:[#allocation11 + $0x80] sm:$0xff] %v1043
      %1049 = vst.msk [vmem:[#allocation11 + $0x88] sm:$0xff] %vm948, %v1041
      %v1050 = vld [vmem:[#allocation2] sm:$0xff]
      %v1051 = vld [vmem:[#allocation2 + $0x8] sm:$0xff]
      %v1052 = vld [vmem:[#allocation2 + $0x10] sm:$0xff]
      %1056 = vrot.lane.b32.xlu0 %v1050, 92
      %v1057 = vpop.permute.xlu0 %1056
      %1058 = vrot.lane.b32.xlu0 %v1051, 92
      %v1059 = vpop.permute.xlu0 %1058
      %1060 = vrot.lane.b32.xlu0 %v1052, 92
      %v1061 = vpop.permute.xlu0 %1060
      %v1062 = vsel %vm835, %v1057, %v1059
      %v1063 = vsel %vm835, %v1059, %v1061
      %1067 = vst [vmem:[#allocation11 + $0x90] sm:$0xff] %v1062
      %1068 = vst [vmem:[#allocation11 + $0x98] sm:$0xff] %v1063
      %1069 = vst.msk [vmem:[#allocation11 + $0xa0] sm:$0xff] %vm948, %v1061
      %v1070 = vld [vmem:[#allocation2] sm:$0xff]
      %v1071 = vld [vmem:[#allocation2 + $0x8] sm:$0xff]
      %v1072 = vld [vmem:[#allocation2 + $0x10] sm:$0xff]
      %1076 = vrot.lane.b32.xlu0 %v1070, 91
      %v1077 = vpop.permute.xlu0 %1076
      %1078 = vrot.lane.b32.xlu0 %v1071, 91
      %v1079 = vpop.permute.xlu0 %1078
      %1080 = vrot.lane.b32.xlu0 %v1072, 91
      %v1081 = vpop.permute.xlu0 %1080
      %v1082 = vsel %vm863, %v1077, %v1079
      %v1083 = vsel %vm863, %v1079, %v1081
      %1087 = vst [vmem:[#allocation11 + $0xa8] sm:$0xff] %v1082
      %1088 = vst [vmem:[#allocation11 + $0xb0] sm:$0xff] %v1083
      %1089 = vst.msk [vmem:[#allocation11 + $0xb8] sm:$0xff] %vm948, %v1081
      %v1090 = vld [vmem:[#allocation2] sm:$0xff]
      %v1091 = vld [vmem:[#allocation2 + $0x8] sm:$0xff]
      %v1092 = vld [vmem:[#allocation2 + $0x10] sm:$0xff]
      %1096 = vrot.lane.b32.xlu0 %v1090, 90
      %v1097 = vpop.permute.xlu0 %1096
      %1098 = vrot.lane.b32.xlu0 %v1091, 90
      %v1099 = vpop.permute.xlu0 %1098
      %1100 = vrot.lane.b32.xlu0 %v1092, 90
      %v1101 = vpop.permute.xlu0 %1100
      %v1102 = vsel %vm891, %v1097, %v1099
      %v1103 = vsel %vm891, %v1099, %v1101
      %1107 = vst [vmem:[#allocation11 + $0xc0] sm:$0xff] %v1102
      %1108 = vst [vmem:[#allocation11 + $0xc8] sm:$0xff] %v1103
      %1109 = vst.msk [vmem:[#allocation11 + $0xd0] sm:$0xff] %vm948, %v1101
      %v1110 = vld [vmem:[%s3] sm:$0xff]
      %v1111 = vld [vmem:[%s3 + $0x8] sm:$0xff]
      %v1112 = vld [vmem:[#allocation11] sm:$0xff]
      %v1113 = vld [vmem:[#allocation11 + $0x8] sm:$0xff]
      %v1114 = vld [vmem:[#allocation11 + $0x10] sm:$0xff]
      %v1115 = vld [vmem:[#allocation11 + $0x18] sm:$0xff]
      %v1116 = vld [vmem:[#allocation11 + $0x20] sm:$0xff]
      %v1117 = vld [vmem:[#allocation11 + $0x28] sm:$0xff]
      %v1118 = vld [vmem:[#allocation11 + $0x30] sm:$0xff]
      %v1119 = vld [vmem:[#allocation11 + $0x38] sm:$0xff]
      %v1120 = vld [vmem:[#allocation11 + $0x40] sm:$0xff]
      %v1121 = vld [vmem:[#allocation11 + $0x48] sm:$0xff]
      %v1122 = vld [vmem:[#allocation11 + $0x50] sm:$0xff]
      %v1123 = vld [vmem:[#allocation11 + $0x58] sm:$0xff]
      %v1124 = vld [vmem:[#allocation11 + $0x60] sm:$0xff]
      %v1125 = vld [vmem:[#allocation11 + $0x68] sm:$0xff]
      %v1126 = vld [vmem:[#allocation11 + $0x70] sm:$0xff]
      %v1127 = vld [vmem:[#allocation11 + $0x78] sm:$0xff]
      %v1128 = vld [vmem:[#allocation11 + $0x80] sm:$0xff]
      %v1129 = vld [vmem:[#allocation11 + $0x88] sm:$0xff]
      %v1130 = vld [vmem:[#allocation11 + $0x90] sm:$0xff]
      %v1131 = vld [vmem:[#allocation11 + $0x98] sm:$0xff]
      %v1132 = vld [vmem:[#allocation11 + $0xa0] sm:$0xff]
      %v1133 = vld [vmem:[#allocation11 + $0xa8] sm:$0xff]
      %v1134 = vld [vmem:[#allocation11 + $0xb0] sm:$0xff]
      %v1135 = vld [vmem:[#allocation11 + $0xb8] sm:$0xff]
      %v1136 = vld [vmem:[#allocation11 + $0xc0] sm:$0xff]
      %v1137 = vld [vmem:[#allocation11 + $0xc8] sm:$0xff]
      %v1138 = vld [vmem:[#allocation11 + $0xd0] sm:$0xff]
      %v1139 = vld [vmem:[%s4] sm:$0xff]
      %v1140 = vld [vmem:[%s4 + $0x8] sm:$0xff]
      %1142 = vset.pattern.permute.xlu0 0
      %1143 = vperm.xlu0 %1142, %v1139
      %v1144 = vpop.permute.xlu0 %1143
      %1147 = vset.pattern.permute.xlu0 0
      %1148 = vperm.xlu0 %1147, %v1140
      %v1149 = vpop.permute.xlu0 %1148
      %vm1151 = vcmask 588800
      %v1153 = vsel %vm1151, %v1110, 0
      %v1156 = vsel %vm1151, %v1111, 0
      %1158 = vmatpush.msra.mxu0 0.0
      %1159 = vmatpush.msra.mxu0 0.0
      %1160 = vmatpush.msra.mxu0 0.0
      %1161 = vmatpush.msra.mxu0 0.0
      %1162 = vmatpush.msra.mxu0 0.0
      %1163 = vmatpush.msra.mxu0 0.0
      %1164 = vmatpush.msra.mxu0 0.0
      %1165 = vmatpush.msra.mxu0 %v1136
      %1166 = vmatpush.msra.mxu0 %v1133
      %1167 = vmatpush.msra.mxu0 %v1130
      %1168 = vmatpush.msra.mxu0 %v1127
      %1169 = vmatpush.msra.mxu0 %v1124
      %1170 = vmatpush.msra.mxu0 %v1121
      %1171 = vmatpush.msra.mxu0 %v1118
      %1172 = vmatpush.msra.mxu0 %v1115
      %1173 = vmatpush.msra.mxu0 %v1112
      %1174 = vmatmul.f32.gmra.mxu0 %v1153
      %v1175 = vpop.f32.mrf.mxu0
      %v1176 = vadd.f32 %v1144, %v1175
      %1177 = vmatmul.f32.gmra.mxu0 %v1156
      %v1178 = vpop.f32.mrf.mxu0
      %v1179 = vadd.f32 %v1149, %v1178
      %1180 = vdwg.mxu0
      %1181 = vmatpush.msra.mxu0 0.0
      %1182 = vmatpush.msra.mxu0 0.0
      %1183 = vmatpush.msra.mxu0 0.0
      %1184 = vmatpush.msra.mxu0 0.0
      %1185 = vmatpush.msra.mxu0 0.0
      %1186 = vmatpush.msra.mxu0 0.0
      %1187 = vmatpush.msra.mxu0 0.0
      %1188 = vmatpush.msra.mxu0 %v1137
      %1189 = vmatpush.msra.mxu0 %v1134
      %1190 = vmatpush.msra.mxu0 %v1131
      %1191 = vmatpush.msra.mxu0 %v1128
      %1192 = vmatpush.msra.mxu0 %v1125
      %1193 = vmatpush.msra.mxu0 %v1122
      %1194 = vmatpush.msra.mxu0 %v1119
      %1195 = vmatpush.msra.mxu0 %v1116
      %1196 = vmatpush.msra.mxu0 %v1113
      %1197 = vmatmul.f32.gmra.mxu0 %v1153
      %v1198 = vpop.f32.mrf.mxu0
      %v1199 = vadd.f32 %v1144, %v1198
      %1200 = vmatmul.f32.gmra.mxu0 %v1156
      %v1201 = vpop.f32.mrf.mxu0
      %v1202 = vadd.f32 %v1149, %v1201
      %1203 = vdwg.mxu0
      %1204 = vmatpush.msra.mxu0 0.0
      %1205 = vmatpush.msra.mxu0 0.0
      %1206 = vmatpush.msra.mxu0 0.0
      %1207 = vmatpush.msra.mxu0 0.0
      %1208 = vmatpush.msra.mxu0 0.0
      %1209 = vmatpush.msra.mxu0 0.0
      %1210 = vmatpush.msra.mxu0 0.0
      %1211 = vmatpush.msra.mxu0 %v1138
      %1212 = vmatpush.msra.mxu0 %v1135
      %1213 = vmatpush.msra.mxu0 %v1132
      %1214 = vmatpush.msra.mxu0 %v1129
      %1215 = vmatpush.msra.mxu0 %v1126
      %1216 = vmatpush.msra.mxu0 %v1123
      %1217 = vmatpush.msra.mxu0 %v1120
      %1218 = vmatpush.msra.mxu0 %v1117
      %1219 = vmatpush.msra.mxu0 %v1114
      %1220 = vmatmul.f32.gmra.mxu0 %v1153
      %v1221 = vpop.f32.mrf.mxu0
      %v1222 = vadd.f32 %v1144, %v1221
      %1223 = vmatmul.f32.gmra.mxu0 %v1156
      %v1224 = vpop.f32.mrf.mxu0
      %v1225 = vadd.f32 %v1149, %v1224
      %1226 = vdwg.mxu0
      %v1227 = vmax.f32 %v1176, 0.0
      %v1228 = vmax.f32 %v1199, 0.0
      %v1229 = vmax.f32 %v1222, 0.0
      %v1230 = vmax.f32 %v1179, 0.0
      %v1231 = vmax.f32 %v1202, 0.0
      %v1232 = vmax.f32 %v1225, 0.0
      %v1233 = vld [vmem:[%s15] sm:$0x7]
      %v1235 = vperm.slane %v1233, 0
      %v1236 = vperm.slane %v1233, 1
      %v1237 = vperm.slane %v1233, 2
      %v1241 = vmul.f32 %v1227, %v1235
      %v1242 = vmul.f32 %v1228, %v1236
      %v1243 = vmul.f32 %v1229, %v1237
      %v1244 = vmul.f32 %v1230, %v1235
      %v1245 = vmul.f32 %v1231, %v1236
      %v1246 = vmul.f32 %v1232, %v1237
      %1247 = vst [vmem:[#allocation3] sm:$0xff] 0
      %vm1248 = vcmask 568320
      %1249 = vst.msk [vmem:[#allocation3 + $0x8] sm:$0xf] %vm1248, 0
      %1250 = vst [vmem:[#allocation3 + $0xc] sm:$0xff] 0
      %1251 = vst.msk [vmem:[#allocation3 + $0x14] sm:$0xf] %vm1248, 0
      %v1252 = vpack.c.bf16 %v1242, %v1241
      %v1253 = vpack.c.bf16 %v1243, %v1243
      %v1254 = vpack.c.bf16 %v1245, %v1244
      %v1255 = vpack.c.bf16 %v1246, %v1246
      %1260 = vrot.lane.b32.xlu0 %v1252, 19
      %v1261 = vpop.permute.xlu0 %1260
      %1262 = vrot.lane.b32.xlu0 %v1253, 19
      %v1263 = vpop.permute.xlu0 %1262
      %1264 = vrot.lane.b32.xlu0 %v1254, 19
      %v1265 = vpop.permute.xlu0 %1264
      %1266 = vrot.lane.b32.xlu0 %v1255, 19
      %v1267 = vpop.permute.xlu0 %1266
      %v1268 = vrot.slane %v1261, 4
      %v1269 = vrot.slane %v1265, 4
      %vm1270 = vcmask 154624
      %v1271 = vsel %vm1270, %v1268, %v1261
      %v1272 = vsel %vm1270, %v1268, %v1263
      %v1273 = vsel %vm1270, %v1269, %v1265
      %v1274 = vsel %vm1270, %v1269, %v1267
      %vm1279 = vcmask 1043608
      %vm1280 = vcmask 1047556
      %vm1281 = vmor %vm1280, %vm1279
      %1282 = vst.msk [vmem:[#allocation3] sm:$0xff] %vm1281, %v1271
      %vm1283 = vcmask 412672
      %1284 = vst.msk [vmem:[#allocation3 + $0x8] sm:$0xf] %vm1283, %v1272
      %1285 = vst.msk [vmem:[#allocation3 + $0xc] sm:$0xff] %vm1281, %v1273
      %1286 = vst.msk [vmem:[#allocation3 + $0x14] sm:$0xf] %vm1283, %v1274
      %v1287 = vld [vmem:[#allocation3] sm:$0xff]
      %v1288 = vld [vmem:[#allocation3 + $0x8] sm:$0xf]
      %v1289 = vld [vmem:[#allocation3 + $0xc] sm:$0xff]
      %v1290 = vld [vmem:[#allocation3 + $0x14] sm:$0xf]
      %v1291 = vunpack.c.l.bf16 %v1287
      %v1292 = vunpack.c.h.bf16 %v1287
      %v1293 = vunpack.c.l.bf16 %v1288
      %v1294 = vunpack.c.l.bf16 %v1289
      %v1295 = vunpack.c.h.bf16 %v1289
      %v1296 = vunpack.c.l.bf16 %v1290
      %1303 = vrot.lane.b32.xlu0 %v1291, 127
      %v1304 = vpop.permute.xlu0 %1303
      %1305 = vrot.lane.b32.xlu0 %v1292, 127
      %v1306 = vpop.permute.xlu0 %1305
      %1307 = vrot.lane.b32.xlu0 %v1293, 127
      %v1308 = vpop.permute.xlu0 %1307
      %1309 = vrot.lane.b32.xlu0 %v1294, 127
      %v1310 = vpop.permute.xlu0 %1309
      %1311 = vrot.lane.b32.xlu0 %v1295, 127
      %v1312 = vpop.permute.xlu0 %1311
      %1313 = vrot.lane.b32.xlu0 %v1296, 127
      %v1314 = vpop.permute.xlu0 %1313
      %v1315 = vsel %vm695, %v1304, %v1306
      %v1316 = vsel %vm695, %v1306, %v1308
      %v1317 = vsel %vm695, %v1310, %v1312
      %v1318 = vsel %vm695, %v1312, %v1314
      %v1325 = vmax.f32 %v1291, %v1315
      %v1326 = vmax.f32 %v1292, %v1316
      %v1327 = vmax.f32 %v1293, %v1308
      %v1328 = vmax.f32 %v1294, %v1317
      %v1329 = vmax.f32 %v1295, %v1318
      %v1330 = vmax.f32 %v1296, %v1314
      %1337 = vrot.lane.b32.xlu0 %v1325, 110
      %v1338 = vpop.permute.xlu0 %1337
      %1339 = vrot.lane.b32.xlu0 %v1326, 110
      %v1340 = vpop.permute.xlu0 %1339
      %1341 = vrot.lane.b32.xlu0 %v1327, 110
      %v1342 = vpop.permute.xlu0 %1341
      %1343 = vrot.lane.b32.xlu0 %v1328, 110
      %v1344 = vpop.permute.xlu0 %1343
      %1345 = vrot.lane.b32.xlu0 %v1329, 110
      %v1346 = vpop.permute.xlu0 %1345
      %1347 = vrot.lane.b32.xlu0 %v1330, 110
      %v1348 = vpop.permute.xlu0 %1347
      %v1349 = vsel %vm751, %v1338, %v1340
      %v1350 = vsel %vm751, %v1340, %v1342
      %v1351 = vsel %vm751, %v1344, %v1346
      %v1352 = vsel %vm751, %v1346, %v1348
      %v1359 = vmax.f32 %v1325, %v1349
      %v1360 = vmax.f32 %v1326, %v1350
      %v1361 = vmax.f32 %v1327, %v1342
      %v1362 = vmax.f32 %v1328, %v1351
      %v1363 = vmax.f32 %v1329, %v1352
      %v1364 = vmax.f32 %v1330, %v1348
      %v1365 = vpack.c.bf16 %v1362, %v1359
      %v1366 = vpack.c.bf16 %v1363, %v1360
      %v1367 = vpack.c.bf16 %v1364, %v1361
      %v1368 = vld [vmem:[%s18] sm:$0xf]
      %v1369 = vld [vmem:[%s18 + $0x4] sm:$0xf]
      %v1370 = vld [vmem:[%s18 + $0x8] sm:$0xf]
      %v1371 = vld [vmem:[%s18 + $0xc] sm:$0xf]
      %v1372 = vld [vmem:[%s18 + $0x10] sm:$0xf]
      %v1373 = vld [vmem:[%s18 + $0x14] sm:$0xf]
      %v1374 = vld [vmem:[%s18 + $0x18] sm:$0xf]
      %v1375 = vld [vmem:[%s18 + $0x1c] sm:$0xf]
      %v1376 = vld [vmem:[%s18 + $0x20] sm:$0xf]
      %v1377 = vld [vmem:[%s18 + $0x24] sm:$0xf]
      %v1378 = vld [vmem:[%s18 + $0x28] sm:$0xf]
      %v1379 = vld [vmem:[%s18 + $0x2c] sm:$0xf]
      %v1380 = vld [vmem:[%s18 + $0x30] sm:$0xf]
      %v1381 = vld [vmem:[%s18 + $0x34] sm:$0xf]
      %v1382 = vld [vmem:[%s18 + $0x38] sm:$0xf]
      %v1383 = vld [vmem:[%s18 + $0x3c] sm:$0xf]
      %v1384 = vld [vmem:[%s18 + $0x40] sm:$0xf]
      %v1385 = vld [vmem:[%s18 + $0x44] sm:$0xf]
      %v1386 = vld [vmem:[%s18 + $0x48] sm:$0xf]
      %v1387 = vld [vmem:[%s18 + $0x4c] sm:$0xf]
      %v1388 = vld [vmem:[%s18 + $0x50] sm:$0xf]
      %v1389 = vld [vmem:[%s18 + $0x54] sm:$0xf]
      %v1390 = vld [vmem:[%s18 + $0x58] sm:$0xf]
      %v1391 = vld [vmem:[%s18 + $0x5c] sm:$0xf]
      %v1392 = vld [vmem:[%s18 + $0x60] sm:$0xf]
      %v1393 = vld [vmem:[%s18 + $0x64] sm:$0xf]
      %v1394 = vld [vmem:[%s18 + $0x68] sm:$0xf]
      %v1395 = vld [vmem:[%s18 + $0x6c] sm:$0xf]
      %v1396 = vld [vmem:[%s18 + $0x70] sm:$0xf]
      %v1397 = vld [vmem:[%s18 + $0x74] sm:$0xf]
      %v1398 = vld [vmem:[%s18 + $0x78] sm:$0xf]
      %v1399 = vld [vmem:[%s18 + $0x7c] sm:$0xf]
      %v1400 = vld [vmem:[%s18 + $0x80] sm:$0xf]
      %v1401 = vld [vmem:[%s18 + $0x84] sm:$0xf]
      %v1402 = vld [vmem:[%s18 + $0x88] sm:$0xf]
      %v1403 = vld [vmem:[%s18 + $0x8c] sm:$0xf]
      %v1404 = vld [vmem:[%s18 + $0x90] sm:$0xf]
      %v1405 = vld [vmem:[%s18 + $0x94] sm:$0xf]
      %v1406 = vld [vmem:[%s18 + $0x98] sm:$0x1]
      %v1446 = vunpack.c.l.b16 %v1368
      %v1447 = vunpack.c.l.b16 %v1369
      %v1448 = vunpack.c.l.b16 %v1370
      %v1449 = vunpack.c.l.b16 %v1371
      %v1450 = vunpack.c.l.b16 %v1372
      %v1451 = vunpack.c.l.b16 %v1373
      %v1452 = vunpack.c.l.b16 %v1374
      %v1453 = vunpack.c.l.b16 %v1375
      %v1454 = vunpack.c.l.b16 %v1376
      %v1455 = vunpack.c.l.b16 %v1377
      %v1456 = vunpack.c.l.b16 %v1378
      %v1457 = vunpack.c.l.b16 %v1379
      %v1458 = vunpack.c.l.b16 %v1380
      %v1459 = vunpack.c.l.b16 %v1381
      %v1460 = vunpack.c.l.b16 %v1382
      %v1461 = vunpack.c.l.b16 %v1383
      %v1462 = vunpack.c.l.b16 %v1384
      %v1463 = vunpack.c.l.b16 %v1385
      %v1464 = vunpack.c.l.b16 %v1386
      %v1465 = vunpack.c.l.b16 %v1387
      %v1466 = vunpack.c.l.b16 %v1388
      %v1467 = vunpack.c.l.b16 %v1389
      %v1468 = vunpack.c.l.b16 %v1390
      %v1469 = vunpack.c.l.b16 %v1391
      %v1470 = vunpack.c.l.b16 %v1392
      %v1471 = vunpack.c.l.b16 %v1393
      %v1472 = vunpack.c.l.b16 %v1394
      %v1473 = vunpack.c.l.b16 %v1395
      %v1474 = vunpack.c.l.b16 %v1396
      %v1475 = vunpack.c.l.b16 %v1397
      %v1476 = vunpack.c.l.b16 %v1398
      %v1477 = vunpack.c.l.b16 %v1399
      %v1478 = vunpack.c.l.b16 %v1400
      %v1479 = vunpack.c.l.b16 %v1401
      %v1480 = vunpack.c.l.b16 %v1402
      %v1481 = vunpack.c.l.b16 %v1403
      %v1482 = vunpack.c.l.b16 %v1404
      %v1483 = vunpack.c.l.b16 %v1405
      %v1484 = vunpack.c.l.b16 %v1406
      %v1485 = vpack.c.b16 %v1447, %v1446
      %v1486 = vpack.c.b16 %v1449, %v1448
      %v1487 = vpack.c.b16 %v1451, %v1450
      %v1488 = vpack.c.b16 %v1453, %v1452
      %v1489 = vpack.c.b16 %v1455, %v1454
      %v1490 = vpack.c.b16 %v1457, %v1456
      %v1491 = vpack.c.b16 %v1459, %v1458
      %v1492 = vpack.c.b16 %v1461, %v1460
      %v1493 = vpack.c.b16 %v1463, %v1462
      %v1494 = vpack.c.b16 %v1465, %v1464
      %v1495 = vpack.c.b16 %v1467, %v1466
      %v1496 = vpack.c.b16 %v1469, %v1468
      %v1497 = vpack.c.b16 %v1471, %v1470
      %v1498 = vpack.c.b16 %v1473, %v1472
      %v1499 = vpack.c.b16 %v1475, %v1474
      %v1500 = vpack.c.b16 %v1477, %v1476
      %v1501 = vpack.c.b16 %v1479, %v1478
      %v1502 = vpack.c.b16 %v1481, %v1480
      %v1503 = vpack.c.b16 %v1483, %v1482
      %v1504 = vpack.c.b16 %v1484, %v1484
      %vm1524 = vcmask 400384
      %v1526 = vsel %vm1524, %v1367, 0
      %vm1528 = vcmask 1040384
      %v1529 = vsel 0, 4294967295, 65535
      %v1530 = vsel %vm1528, %v1529, 0
      %v1532 = vand.u32 %v1504, %v1530
      %1534 = vmatpush.bf16.msra.mxu0 %v1492
      %1535 = vmatpush.bf16.msra.mxu0 %v1491
      %1536 = vmatpush.bf16.msra.mxu0 %v1490
      %1537 = vmatpush.bf16.msra.mxu0 %v1489
      %1538 = vmatpush.bf16.msra.mxu0 %v1488
      %1539 = vmatpush.bf16.msra.mxu0 %v1487
      %1540 = vmatpush.bf16.msra.mxu0 %v1486
      %1541 = vmatpush.bf16.msra.mxu0 %v1485
      %1542 = vmatmul.bf16.gmra.mxu0 %v1365
      %v1543 = vpop.f32.mrf.mxu0
      %v1544 = vadd.f32 0.0, %v1543
      %v1545 = vpop.f32.mrf.mxu0
      %v1546 = vadd.f32 0.0, %v1545
      %1547 = vdwg.mxu0
      %1548 = vmatpush.bf16.msra.mxu0 %v1500
      %1549 = vmatpush.bf16.msra.mxu0 %v1499
      %1550 = vmatpush.bf16.msra.mxu0 %v1498
      %1551 = vmatpush.bf16.msra.mxu0 %v1497
      %1552 = vmatpush.bf16.msra.mxu0 %v1496
      %1553 = vmatpush.bf16.msra.mxu0 %v1495
      %1554 = vmatpush.bf16.msra.mxu0 %v1494
      %1555 = vmatpush.bf16.msra.mxu0 %v1493
      %1556 = vmatmul.bf16.gmra.mxu0 %v1366
      %v1557 = vpop.f32.mrf.mxu0
      %v1558 = vadd.f32 %v1544, %v1557
      %v1559 = vpop.f32.mrf.mxu0
      %v1560 = vadd.f32 %v1546, %v1559
      %1561 = vdwg.mxu0
      %1562 = vmatpush.bf16.msra.mxu0 0
      %1563 = vmatpush.bf16.msra.mxu0 0
      %1564 = vmatpush.bf16.msra.mxu0 0
      %1565 = vmatpush.bf16.msra.mxu0 0
      %1566 = vmatpush.bf16.msra.mxu0 %v1532
      %1567 = vmatpush.bf16.msra.mxu0 %v1503
      %1568 = vmatpush.bf16.msra.mxu0 %v1502
      %1569 = vmatpush.bf16.msra.mxu0 %v1501
      %1570 = vmatmul.bf16.gmra.mxu0 %v1526
      %v1571 = vpop.f32.mrf.mxu0
      %v1572 = vadd.f32 %v1558, %v1571
      %v1573 = vpop.f32.mrf.mxu0
      %v1574 = vadd.f32 %v1560, %v1573
      %1575 = vdwg.mxu0
      %v1576 = vpack.c.bf16 %v1572, %v1572
      %v1577 = vpack.c.bf16 %v1574, %v1574
      %vm1578 = vcmask 1002496
      %1579 = vst.msk [vmem:[#allocation4] sm:$0xf] %vm1578, %v1576
      %1580 = vst.msk [vmem:[#allocation4 + $0x4] sm:$0xf] %vm1578, %v1577
      %v1581 = vld [vmem:[#allocation4] sm:$0xf]
      %v1582 = vld [vmem:[#allocation4 + $0x4] sm:$0xf]
      %vm1583 = vcmask 805888
      %1584 = vst.msk [vmem:[#allocation12] sm:$0xf] %vm1583, %v1581
      %1585 = vst.msk [vmem:[#allocation12 + $0x4] sm:$0xf] %vm1583, %v1582
      %v1586 = vld [vmem:[#allocation4] sm:$0xf]
      %v1587 = vld [vmem:[#allocation4 + $0x4] sm:$0xf]
      %1590 = vrot.lane.b32.xlu0 %v1586, 127
      %v1591 = vpop.permute.xlu0 %1590
      %1592 = vrot.lane.b32.xlu0 %v1587, 127
      %v1593 = vpop.permute.xlu0 %1592
      %1596 = vst.msk [vmem:[#allocation12 + $0x8] sm:$0xf] %vm1583, %v1591
      %1597 = vst.msk [vmem:[#allocation12 + $0xc] sm:$0xf] %vm1583, %v1593
      %v1598 = vld [vmem:[#allocation4] sm:$0xf]
      %v1599 = vld [vmem:[#allocation4 + $0x4] sm:$0xf]
      %1602 = vrot.lane.b32.xlu0 %v1598, 126
      %v1603 = vpop.permute.xlu0 %1602
      %1604 = vrot.lane.b32.xlu0 %v1599, 126
      %v1605 = vpop.permute.xlu0 %1604
      %1608 = vst.msk [vmem:[#allocation12 + $0x10] sm:$0xf] %vm1583, %v1603
      %1609 = vst.msk [vmem:[#allocation12 + $0x14] sm:$0xf] %vm1583, %v1605
      %v1610 = vld [vmem:[#allocation4] sm:$0xf]
      %v1611 = vld [vmem:[#allocation4 + $0x4] sm:$0xf]
      %1614 = vrot.lane.b32.xlu0 %v1610, 117
      %v1615 = vpop.permute.xlu0 %1614
      %1616 = vrot.lane.b32.xlu0 %v1611, 117
      %v1617 = vpop.permute.xlu0 %1616
      %1620 = vst.msk [vmem:[#allocation12 + $0x18] sm:$0xf] %vm1583, %v1615
      %1621 = vst.msk [vmem:[#allocation12 + $0x1c] sm:$0xf] %vm1583, %v1617
      %v1622 = vld [vmem:[#allocation4] sm:$0xf]
      %v1623 = vld [vmem:[#allocation4 + $0x4] sm:$0xf]
      %1626 = vrot.lane.b32.xlu0 %v1622, 116
      %v1627 = vpop.permute.xlu0 %1626
      %1628 = vrot.lane.b32.xlu0 %v1623, 116
      %v1629 = vpop.permute.xlu0 %1628
      %1632 = vst.msk [vmem:[#allocation12 + $0x20] sm:$0xf] %vm1583, %v1627
      %1633 = vst.msk [vmem:[#allocation12 + $0x24] sm:$0xf] %vm1583, %v1629
      %v1634 = vld [vmem:[#allocation4] sm:$0xf]
      %v1635 = vld [vmem:[#allocation4 + $0x4] sm:$0xf]
      %1638 = vrot.lane.b32.xlu0 %v1634, 115
      %v1639 = vpop.permute.xlu0 %1638
      %1640 = vrot.lane.b32.xlu0 %v1635, 115
      %v1641 = vpop.permute.xlu0 %1640
      %1644 = vst.msk [vmem:[#allocation12 + $0x28] sm:$0xf] %vm1583, %v1639
      %1645 = vst.msk [vmem:[#allocation12 + $0x2c] sm:$0xf] %vm1583, %v1641
      %v1646 = vld [vmem:[#allocation4] sm:$0xf]
      %v1647 = vld [vmem:[#allocation4 + $0x4] sm:$0xf]
      %1650 = vrot.lane.b32.xlu0 %v1646, 106
      %v1651 = vpop.permute.xlu0 %1650
      %1652 = vrot.lane.b32.xlu0 %v1647, 106
      %v1653 = vpop.permute.xlu0 %1652
      %1656 = vst.msk [vmem:[#allocation12 + $0x30] sm:$0xf] %vm1583, %v1651
      %1657 = vst.msk [vmem:[#allocation12 + $0x34] sm:$0xf] %vm1583, %v1653
      %v1658 = vld [vmem:[#allocation4] sm:$0xf]
      %v1659 = vld [vmem:[#allocation4 + $0x4] sm:$0xf]
      %1662 = vrot.lane.b32.xlu0 %v1658, 105
      %v1663 = vpop.permute.xlu0 %1662
      %1664 = vrot.lane.b32.xlu0 %v1659, 105
      %v1665 = vpop.permute.xlu0 %1664
      %1668 = vst.msk [vmem:[#allocation12 + $0x38] sm:$0xf] %vm1583, %v1663
      %1669 = vst.msk [vmem:[#allocation12 + $0x3c] sm:$0xf] %vm1583, %v1665
      %v1670 = vld [vmem:[#allocation4] sm:$0xf]
      %v1671 = vld [vmem:[#allocation4 + $0x4] sm:$0xf]
      %1674 = vrot.lane.b32.xlu0 %v1670, 104
      %v1675 = vpop.permute.xlu0 %1674
      %1676 = vrot.lane.b32.xlu0 %v1671, 104
      %v1677 = vpop.permute.xlu0 %1676
      %1680 = vst.msk [vmem:[#allocation12 + $0x40] sm:$0xf] %vm1583, %v1675
      %1681 = vst.msk [vmem:[#allocation12 + $0x44] sm:$0xf] %vm1583, %v1677
      %v1682 = vld [vmem:[%s5] sm:$0xff]
      %v1683 = vld [vmem:[%s5 + $0x8] sm:$0xff]
      %v1684 = vld [vmem:[#allocation12] sm:$0xf]
      %v1685 = vld [vmem:[#allocation12 + $0x4] sm:$0xf]
      %v1686 = vld [vmem:[#allocation12 + $0x8] sm:$0xf]
      %v1687 = vld [vmem:[#allocation12 + $0xc] sm:$0xf]
      %v1688 = vld [vmem:[#allocation12 + $0x10] sm:$0xf]
      %v1689 = vld [vmem:[#allocation12 + $0x14] sm:$0xf]
      %v1690 = vld [vmem:[#allocation12 + $0x18] sm:$0xf]
      %v1691 = vld [vmem:[#allocation12 + $0x1c] sm:$0xf]
      %v1692 = vld [vmem:[#allocation12 + $0x20] sm:$0xf]
      %v1693 = vld [vmem:[#allocation12 + $0x24] sm:$0xf]
      %v1694 = vld [vmem:[#allocation12 + $0x28] sm:$0xf]
      %v1695 = vld [vmem:[#allocation12 + $0x2c] sm:$0xf]
      %v1696 = vld [vmem:[#allocation12 + $0x30] sm:$0xf]
      %v1697 = vld [vmem:[#allocation12 + $0x34] sm:$0xf]
      %v1698 = vld [vmem:[#allocation12 + $0x38] sm:$0xf]
      %v1699 = vld [vmem:[#allocation12 + $0x3c] sm:$0xf]
      %v1700 = vld [vmem:[#allocation12 + $0x40] sm:$0xf]
      %v1701 = vld [vmem:[#allocation12 + $0x44] sm:$0xf]
      %v1702 = vld [vmem:[%s6] sm:$0xff]
      %v1703 = vld [vmem:[%s6 + $0x8] sm:$0xff]
      %1705 = vset.pattern.permute.xlu0 0
      %1706 = vperm.xlu0 %1705, %v1702
      %v1707 = vpop.permute.xlu0 %1706
      %1710 = vset.pattern.permute.xlu0 0
      %1711 = vperm.xlu0 %1710, %v1703
      %v1712 = vpop.permute.xlu0 %1711
      %v1716 = vunpack.c.l.b16 %v1682
      %v1717 = vunpack.c.h.b16 %v1682
      %v1718 = vunpack.c.l.b16 %v1683
      %v1719 = vunpack.c.h.b16 %v1683
      %v1720 = vpack.c.b16 %v1718, %v1716
      %v1721 = vpack.c.b16 %v1719, %v1717
      %v1741 = vunpack.c.l.b16 %v1684
      %v1742 = vunpack.c.l.b16 %v1685
      %v1743 = vunpack.c.l.b16 %v1686
      %v1744 = vunpack.c.l.b16 %v1687
      %v1745 = vunpack.c.l.b16 %v1688
      %v1746 = vunpack.c.l.b16 %v1689
      %v1747 = vunpack.c.l.b16 %v1690
      %v1748 = vunpack.c.l.b16 %v1691
      %v1749 = vunpack.c.l.b16 %v1692
      %v1750 = vunpack.c.l.b16 %v1693
      %v1751 = vunpack.c.l.b16 %v1694
      %v1752 = vunpack.c.l.b16 %v1695
      %v1753 = vunpack.c.l.b16 %v1696
      %v1754 = vunpack.c.l.b16 %v1697
      %v1755 = vunpack.c.l.b16 %v1698
      %v1756 = vunpack.c.l.b16 %v1699
      %v1757 = vunpack.c.l.b16 %v1700
      %v1758 = vunpack.c.l.b16 %v1701
      %v1759 = vpack.c.b16 %v1742, %v1741
      %v1760 = vpack.c.b16 %v1744, %v1743
      %v1761 = vpack.c.b16 %v1746, %v1745
      %v1762 = vpack.c.b16 %v1748, %v1747
      %v1763 = vpack.c.b16 %v1750, %v1749
      %v1764 = vpack.c.b16 %v1752, %v1751
      %v1765 = vpack.c.b16 %v1754, %v1753
      %v1766 = vpack.c.b16 %v1756, %v1755
      %v1767 = vpack.c.b16 %v1758, %v1757
      %vm1777 = vcmask 130048
      %v1779 = vsel %vm1777, %v1721, 0
      %1781 = vmatpush.bf16.msra.mxu0 %v1766
      %1782 = vmatpush.bf16.msra.mxu0 %v1765
      %1783 = vmatpush.bf16.msra.mxu0 %v1764
      %1784 = vmatpush.bf16.msra.mxu0 %v1763
      %1785 = vmatpush.bf16.msra.mxu0 %v1762
      %1786 = vmatpush.bf16.msra.mxu0 %v1761
      %1787 = vmatpush.bf16.msra.mxu0 %v1760
      %1788 = vmatpush.bf16.msra.mxu0 %v1759
      %1789 = vmatmul.bf16.gmra.mxu0 %v1720
      %v1790 = vpop.f32.mrf.mxu0
      %v1791 = vadd.f32 %v1707, %v1790
      %v1792 = vpop.f32.mrf.mxu0
      %v1793 = vadd.f32 %v1712, %v1792
      %1794 = vdwg.mxu0
      %1795 = vmatpush.bf16.msra.mxu0 0
      %1796 = vmatpush.bf16.msra.mxu0 0
      %1797 = vmatpush.bf16.msra.mxu0 0
      %1798 = vmatpush.bf16.msra.mxu0 0
      %1799 = vmatpush.bf16.msra.mxu0 0
      %1800 = vmatpush.bf16.msra.mxu0 0
      %1801 = vmatpush.bf16.msra.mxu0 0
      %1802 = vmatpush.bf16.msra.mxu0 %v1767
      %1803 = vmatmul.bf16.gmra.mxu0 %v1779
      %v1804 = vpop.f32.mrf.mxu0
      %v1805 = vadd.f32 %v1791, %v1804
      %v1806 = vpop.f32.mrf.mxu0
      %v1807 = vadd.f32 %v1793, %v1806
      %1808 = vdwg.mxu0
      %v1809 = vmax.f32 %v1805, 0.0
      %v1810 = vmax.f32 %v1807, 0.0
      %v1811 = vld [vmem:[%s16] sm:$0x1]
      %v1813 = vperm.slane %v1811, 0
      %v1815 = vmul.f32 %v1809, %v1813
      %v1816 = vmul.f32 %v1810, %v1813
      %1817 = vst.msk [vmem:[#allocation5] sm:$0xf] %vm1578, 0
      %1818 = vst.msk [vmem:[#allocation5 + $0x4] sm:$0xf] %vm1578, 0
      %v1819 = vpack.c.bf16 %v1815, %v1815
      %v1820 = vpack.c.bf16 %v1816, %v1816
      %1823 = vrot.lane.b32.xlu0 %v1819, 12
      %v1824 = vpop.permute.xlu0 %1823
      %1825 = vrot.lane.b32.xlu0 %v1820, 12
      %v1826 = vpop.permute.xlu0 %1825
      %vm1829 = vcmask 904288
      %1830 = vst.msk [vmem:[#allocation5] sm:$0xf] %vm1829, %v1824
      %1831 = vst.msk [vmem:[#allocation5 + $0x4] sm:$0xf] %vm1829, %v1826
      %v1832 = vld [vmem:[#allocation5] sm:$0xf]
      %v1833 = vld [vmem:[#allocation5 + $0x4] sm:$0xf]
      %1834 = vst.msk [vmem:[#allocation12] sm:$0xf] %vm1583, %v1832
      %1835 = vst.msk [vmem:[#allocation12 + $0x4] sm:$0xf] %vm1583, %v1833
      %v1836 = vld [vmem:[#allocation5] sm:$0xf]
      %v1837 = vld [vmem:[#allocation5 + $0x4] sm:$0xf]
      %1840 = vrot.lane.b32.xlu0 %v1836, 127
      %v1841 = vpop.permute.xlu0 %1840
      %1842 = vrot.lane.b32.xlu0 %v1837, 127
      %v1843 = vpop.permute.xlu0 %1842
      %1846 = vst.msk [vmem:[#allocation12 + $0x8] sm:$0xf] %vm1583, %v1841
      %1847 = vst.msk [vmem:[#allocation12 + $0xc] sm:$0xf] %vm1583, %v1843
      %v1848 = vld [vmem:[#allocation5] sm:$0xf]
      %v1849 = vld [vmem:[#allocation5 + $0x4] sm:$0xf]
      %1852 = vrot.lane.b32.xlu0 %v1848, 126
      %v1853 = vpop.permute.xlu0 %1852
      %1854 = vrot.lane.b32.xlu0 %v1849, 126
      %v1855 = vpop.permute.xlu0 %1854
      %1858 = vst.msk [vmem:[#allocation12 + $0x10] sm:$0xf] %vm1583, %v1853
      %1859 = vst.msk [vmem:[#allocation12 + $0x14] sm:$0xf] %vm1583, %v1855
      %v1860 = vld [vmem:[#allocation5] sm:$0xf]
      %v1861 = vld [vmem:[#allocation5 + $0x4] sm:$0xf]
      %1864 = vrot.lane.b32.xlu0 %v1860, 117
      %v1865 = vpop.permute.xlu0 %1864
      %1866 = vrot.lane.b32.xlu0 %v1861, 117
      %v1867 = vpop.permute.xlu0 %1866
      %1870 = vst.msk [vmem:[#allocation12 + $0x18] sm:$0xf] %vm1583, %v1865
      %1871 = vst.msk [vmem:[#allocation12 + $0x1c] sm:$0xf] %vm1583, %v1867
      %v1872 = vld [vmem:[#allocation5] sm:$0xf]
      %v1873 = vld [vmem:[#allocation5 + $0x4] sm:$0xf]
      %1876 = vrot.lane.b32.xlu0 %v1872, 116
      %v1877 = vpop.permute.xlu0 %1876
      %1878 = vrot.lane.b32.xlu0 %v1873, 116
      %v1879 = vpop.permute.xlu0 %1878
      %1882 = vst.msk [vmem:[#allocation12 + $0x20] sm:$0xf] %vm1583, %v1877
      %1883 = vst.msk [vmem:[#allocation12 + $0x24] sm:$0xf] %vm1583, %v1879
      %v1884 = vld [vmem:[#allocation5] sm:$0xf]
      %v1885 = vld [vmem:[#allocation5 + $0x4] sm:$0xf]
      %1888 = vrot.lane.b32.xlu0 %v1884, 115
      %v1889 = vpop.permute.xlu0 %1888
      %1890 = vrot.lane.b32.xlu0 %v1885, 115
      %v1891 = vpop.permute.xlu0 %1890
      %1894 = vst.msk [vmem:[#allocation12 + $0x28] sm:$0xf] %vm1583, %v1889
      %1895 = vst.msk [vmem:[#allocation12 + $0x2c] sm:$0xf] %vm1583, %v1891
      %v1896 = vld [vmem:[#allocation5] sm:$0xf]
      %v1897 = vld [vmem:[#allocation5 + $0x4] sm:$0xf]
      %1900 = vrot.lane.b32.xlu0 %v1896, 106
      %v1901 = vpop.permute.xlu0 %1900
      %1902 = vrot.lane.b32.xlu0 %v1897, 106
      %v1903 = vpop.permute.xlu0 %1902
      %1906 = vst.msk [vmem:[#allocation12 + $0x30] sm:$0xf] %vm1583, %v1901
      %1907 = vst.msk [vmem:[#allocation12 + $0x34] sm:$0xf] %vm1583, %v1903
      %v1908 = vld [vmem:[#allocation5] sm:$0xf]
      %v1909 = vld [vmem:[#allocation5 + $0x4] sm:$0xf]
      %1912 = vrot.lane.b32.xlu0 %v1908, 105
      %v1913 = vpop.permute.xlu0 %1912
      %1914 = vrot.lane.b32.xlu0 %v1909, 105
      %v1915 = vpop.permute.xlu0 %1914
      %1918 = vst.msk [vmem:[#allocation12 + $0x38] sm:$0xf] %vm1583, %v1913
      %1919 = vst.msk [vmem:[#allocation12 + $0x3c] sm:$0xf] %vm1583, %v1915
      %v1920 = vld [vmem:[#allocation5] sm:$0xf]
      %v1921 = vld [vmem:[#allocation5 + $0x4] sm:$0xf]
      %1924 = vrot.lane.b32.xlu0 %v1920, 104
      %v1925 = vpop.permute.xlu0 %1924
      %1926 = vrot.lane.b32.xlu0 %v1921, 104
      %v1927 = vpop.permute.xlu0 %1926
      %1930 = vst.msk [vmem:[#allocation12 + $0x40] sm:$0xf] %vm1583, %v1925
      %1931 = vst.msk [vmem:[#allocation12 + $0x44] sm:$0xf] %vm1583, %v1927
      %v1932 = vld [vmem:[%s7] sm:$0xff]
      %v1933 = vld [vmem:[%s7 + $0x8] sm:$0xff]
      %v1934 = vld [vmem:[%s7 + $0x10] sm:$0xff]
      %v1935 = vld [vmem:[%s7 + $0x18] sm:$0xff]
      %v1936 = vld [vmem:[#allocation12] sm:$0xf]
      %v1937 = vld [vmem:[#allocation12 + $0x4] sm:$0xf]
      %v1938 = vld [vmem:[#allocation12 + $0x8] sm:$0xf]
      %v1939 = vld [vmem:[#allocation12 + $0xc] sm:$0xf]
      %v1940 = vld [vmem:[#allocation12 + $0x10] sm:$0xf]
      %v1941 = vld [vmem:[#allocation12 + $0x14] sm:$0xf]
      %v1942 = vld [vmem:[#allocation12 + $0x18] sm:$0xf]
      %v1943 = vld [vmem:[#allocation12 + $0x1c] sm:$0xf]
      %v1944 = vld [vmem:[#allocation12 + $0x20] sm:$0xf]
      %v1945 = vld [vmem:[#allocation12 + $0x24] sm:$0xf]
      %v1946 = vld [vmem:[#allocation12 + $0x28] sm:$0xf]
      %v1947 = vld [vmem:[#allocation12 + $0x2c] sm:$0xf]
      %v1948 = vld [vmem:[#allocation12 + $0x30] sm:$0xf]
      %v1949 = vld [vmem:[#allocation12 + $0x34] sm:$0xf]
      %v1950 = vld [vmem:[#allocation12 + $0x38] sm:$0xf]
      %v1951 = vld [vmem:[#allocation12 + $0x3c] sm:$0xf]
      %v1952 = vld [vmem:[#allocation12 + $0x40] sm:$0xf]
      %v1953 = vld [vmem:[#allocation12 + $0x44] sm:$0xf]
      %v1954 = vld [vmem:[%s8] sm:$0xff]
      %v1955 = vld [vmem:[%s8 + $0x8] sm:$0xff]
      %v1956 = vld [vmem:[%s8 + $0x10] sm:$0xff]
      %v1957 = vld [vmem:[%s8 + $0x18] sm:$0xff]
      %1959 = vset.pattern.permute.xlu0 0
      %1960 = vperm.xlu0 %1959, %v1954
      %v1961 = vpop.permute.xlu0 %1960
      %1964 = vset.pattern.permute.xlu0 0
      %1965 = vperm.xlu0 %1964, %v1955
      %v1966 = vpop.permute.xlu0 %1965
      %1969 = vset.pattern.permute.xlu0 0
      %1970 = vperm.xlu0 %1969, %v1956
      %v1971 = vpop.permute.xlu0 %1970
      %1974 = vset.pattern.permute.xlu0 0
      %1975 = vperm.xlu0 %1974, %v1957
      %v1976 = vpop.permute.xlu0 %1975
      %v1982 = vunpack.c.l.b16 %v1932
      %v1983 = vunpack.c.h.b16 %v1932
      %v1984 = vunpack.c.l.b16 %v1933
      %v1985 = vunpack.c.h.b16 %v1933
      %v1986 = vunpack.c.l.b16 %v1934
      %v1987 = vunpack.c.h.b16 %v1934
      %v1988 = vunpack.c.l.b16 %v1935
      %v1989 = vunpack.c.h.b16 %v1935
      %v1990 = vpack.c.b16 %v1984, %v1982
      %v1991 = vpack.c.b16 %v1985, %v1983
      %v1992 = vpack.c.b16 %v1988, %v1986
      %v1993 = vpack.c.b16 %v1989, %v1987
      %v2014 = vunpack.c.l.b16 %v1936
      %v2015 = vunpack.c.l.b16 %v1937
      %v2016 = vunpack.c.l.b16 %v1938
      %v2017 = vunpack.c.l.b16 %v1939
      %v2018 = vunpack.c.l.b16 %v1940
      %v2019 = vunpack.c.l.b16 %v1941
      %v2020 = vunpack.c.l.b16 %v1942
      %v2021 = vunpack.c.l.b16 %v1943
      %v2022 = vunpack.c.l.b16 %v1944
      %v2023 = vunpack.c.l.b16 %v1945
      %v2024 = vunpack.c.l.b16 %v1946
      %v2025 = vunpack.c.l.b16 %v1947
      %v2026 = vunpack.c.l.b16 %v1948
      %v2027 = vunpack.c.l.b16 %v1949
      %v2028 = vunpack.c.l.b16 %v1950
      %v2029 = vunpack.c.l.b16 %v1951
      %v2030 = vunpack.c.l.b16 %v1952
      %v2031 = vunpack.c.l.b16 %v1953
      %v2032 = vpack.c.b16 %v2015, %v2014
      %v2033 = vpack.c.b16 %v2017, %v2016
      %v2034 = vpack.c.b16 %v2019, %v2018
      %v2035 = vpack.c.b16 %v2021, %v2020
      %v2036 = vpack.c.b16 %v2023, %v2022
      %v2037 = vpack.c.b16 %v2025, %v2024
      %v2038 = vpack.c.b16 %v2027, %v2026
      %v2039 = vpack.c.b16 %v2029, %v2028
      %v2040 = vpack.c.b16 %v2031, %v2030
      %v2051 = vsel %vm1777, %v1991, 0
      %v2054 = vsel %vm1777, %v1993, 0
      %2056 = vmatpush.bf16.msra.mxu0 %v2039
      %2057 = vmatpush.bf16.msra.mxu0 %v2038
      %2058 = vmatpush.bf16.msra.mxu0 %v2037
      %2059 = vmatpush.bf16.msra.mxu0 %v2036
      %2060 = vmatpush.bf16.msra.mxu0 %v2035
      %2061 = vmatpush.bf16.msra.mxu0 %v2034
      %2062 = vmatpush.bf16.msra.mxu0 %v2033
      %2063 = vmatpush.bf16.msra.mxu0 %v2032
      %2064 = vmatmul.bf16.gmra.mxu0 %v1990
      %v2065 = vpop.f32.mrf.mxu0
      %v2066 = vadd.f32 %v1961, %v2065
      %v2067 = vpop.f32.mrf.mxu0
      %v2068 = vadd.f32 %v1966, %v2067
      %2069 = vmatmul.bf16.gmra.mxu0 %v1992
      %v2070 = vpop.f32.mrf.mxu0
      %v2071 = vadd.f32 %v1971, %v2070
      %v2072 = vpop.f32.mrf.mxu0
      %v2073 = vadd.f32 %v1976, %v2072
      %2074 = vdwg.mxu0
      %2075 = vmatpush.bf16.msra.mxu0 0
      %2076 = vmatpush.bf16.msra.mxu0 0
      %2077 = vmatpush.bf16.msra.mxu0 0
      %2078 = vmatpush.bf16.msra.mxu0 0
      %2079 = vmatpush.bf16.msra.mxu0 0
      %2080 = vmatpush.bf16.msra.mxu0 0
      %2081 = vmatpush.bf16.msra.mxu0 0
      %2082 = vmatpush.bf16.msra.mxu0 %v2040
      %2083 = vmatmul.bf16.gmra.mxu0 %v2051
      %v2084 = vpop.f32.mrf.mxu0
      %v2085 = vadd.f32 %v2066, %v2084
      %v2086 = vpop.f32.mrf.mxu0
      %v2087 = vadd.f32 %v2068, %v2086
      %2088 = vmatmul.bf16.gmra.mxu0 %v2054
      %v2089 = vpop.f32.mrf.mxu0
      %v2090 = vadd.f32 %v2071, %v2089
      %v2091 = vpop.f32.mrf.mxu0
      %v2092 = vadd.f32 %v2073, %v2091
      %2093 = vdwg.mxu0
      %v2094 = vmax.f32 %v2085, 0.0
      %v2095 = vmax.f32 %v2087, 0.0
      %v2096 = vmax.f32 %v2090, 0.0
      %v2097 = vmax.f32 %v2092, 0.0
      %v2098 = vld [vmem:[%s16] sm:$0x1]
      %v2100 = vperm.slane %v2098, 0
      %v2102 = vmul.f32 %v2094, %v2100
      %v2103 = vmul.f32 %v2095, %v2100
      %v2104 = vmul.f32 %v2096, %v2100
      %v2105 = vmul.f32 %v2097, %v2100
      %2106 = vst.msk [vmem:[#allocation6] sm:$0xf] %vm1578, 0
      %2107 = vst.msk [vmem:[#allocation6 + $0x4] sm:$0xf] %vm1578, 0
      %2108 = vst.msk [vmem:[#allocation6 + $0x8] sm:$0xf] %vm1578, 0
      %2109 = vst.msk [vmem:[#allocation6 + $0xc] sm:$0xf] %vm1578, 0
      %v2110 = vpack.c.bf16 %v2102, %v2102
      %v2111 = vpack.c.bf16 %v2103, %v2103
      %v2112 = vpack.c.bf16 %v2104, %v2104
      %v2113 = vpack.c.bf16 %v2105, %v2105
      %2118 = vrot.lane.b32.xlu0 %v2110, 12
      %v2119 = vpop.permute.xlu0 %2118
      %2120 = vrot.lane.b32.xlu0 %v2111, 12
      %v2121 = vpop.permute.xlu0 %2120
      %2122 = vrot.lane.b32.xlu0 %v2112, 12
      %v2123 = vpop.permute.xlu0 %2122
      %2124 = vrot.lane.b32.xlu0 %v2113, 12
      %v2125 = vpop.permute.xlu0 %2124
      %2130 = vst.msk [vmem:[#allocation6] sm:$0xf] %vm1829, %v2119
      %2131 = vst.msk [vmem:[#allocation6 + $0x4] sm:$0xf] %vm1829, %v2121
      %2132 = vst.msk [vmem:[#allocation6 + $0x8] sm:$0xf] %vm1829, %v2123
      %2133 = vst.msk [vmem:[#allocation6 + $0xc] sm:$0xf] %vm1829, %v2125
      %v2134 = vld [vmem:[#allocation6] sm:$0xf]
      %v2135 = vld [vmem:[#allocation6 + $0x4] sm:$0xf]
      %v2136 = vld [vmem:[#allocation6 + $0x8] sm:$0xf]
      %v2137 = vld [vmem:[#allocation6 + $0xc] sm:$0xf]
      %v2138 = vunpack.c.l.bf16 %v2134
      %v2139 = vunpack.c.l.bf16 %v2135
      %v2140 = vunpack.c.l.bf16 %v2136
      %v2141 = vunpack.c.l.bf16 %v2137
      %2146 = vrot.lane.b32.xlu0 %v2138, 127
      %v2147 = vpop.permute.xlu0 %2146
      %2148 = vrot.lane.b32.xlu0 %v2139, 127
      %v2149 = vpop.permute.xlu0 %2148
      %2150 = vrot.lane.b32.xlu0 %v2140, 127
      %v2151 = vpop.permute.xlu0 %2150
      %2152 = vrot.lane.b32.xlu0 %v2141, 127
      %v2153 = vpop.permute.xlu0 %2152
      %v2158 = vmax.f32 %v2138, %v2147
      %v2159 = vmax.f32 %v2139, %v2149
      %v2160 = vmax.f32 %v2140, %v2151
      %v2161 = vmax.f32 %v2141, %v2153
      %2166 = vrot.lane.b32.xlu0 %v2158, 117
      %v2167 = vpop.permute.xlu0 %2166
      %2168 = vrot.lane.b32.xlu0 %v2159, 117
      %v2169 = vpop.permute.xlu0 %2168
      %2170 = vrot.lane.b32.xlu0 %v2160, 117
      %v2171 = vpop.permute.xlu0 %2170
      %2172 = vrot.lane.b32.xlu0 %v2161, 117
      %v2173 = vpop.permute.xlu0 %2172
      %v2178 = vmax.f32 %v2158, %v2167
      %v2179 = vmax.f32 %v2159, %v2169
      %v2180 = vmax.f32 %v2160, %v2171
      %v2181 = vmax.f32 %v2161, %v2173
      %v2182 = vpack.c.bf16 %v2179, %v2178
      %v2183 = vpack.c.bf16 %v2181, %v2180
      %v2184 = vld [vmem:[%s19] sm:$0xf]
      %v2185 = vld [vmem:[%s19 + $0x4] sm:$0xf]
      %v2186 = vld [vmem:[%s19 + $0x8] sm:$0xf]
      %v2187 = vld [vmem:[%s19 + $0xc] sm:$0xf]
      %v2188 = vld [vmem:[%s19 + $0x10] sm:$0xf]
      %v2189 = vld [vmem:[%s19 + $0x14] sm:$0xf]
      %v2190 = vld [vmem:[%s19 + $0x18] sm:$0xf]
      %v2191 = vld [vmem:[%s19 + $0x1c] sm:$0xf]
      %v2192 = vld [vmem:[%s19 + $0x20] sm:$0xf]
      %v2193 = vld [vmem:[%s19 + $0x24] sm:$0xf]
      %v2194 = vld [vmem:[%s19 + $0x28] sm:$0xf]
      %v2195 = vld [vmem:[%s19 + $0x2c] sm:$0xf]
      %v2196 = vld [vmem:[%s19 + $0x30] sm:$0x1]
      %v2210 = vunpack.c.l.b16 %v2184
      %v2211 = vunpack.c.l.b16 %v2185
      %v2212 = vunpack.c.l.b16 %v2186
      %v2213 = vunpack.c.l.b16 %v2187
      %v2214 = vunpack.c.l.b16 %v2188
      %v2215 = vunpack.c.l.b16 %v2189
      %v2216 = vunpack.c.l.b16 %v2190
      %v2217 = vunpack.c.l.b16 %v2191
      %v2218 = vunpack.c.l.b16 %v2192
      %v2219 = vunpack.c.l.b16 %v2193
      %v2220 = vunpack.c.l.b16 %v2194
      %v2221 = vunpack.c.l.b16 %v2195
      %v2222 = vunpack.c.l.b16 %v2196
      %v2223 = vpack.c.b16 %v2211, %v2210
      %v2224 = vpack.c.b16 %v2213, %v2212
      %v2225 = vpack.c.b16 %v2215, %v2214
      %v2226 = vpack.c.b16 %v2217, %v2216
      %v2227 = vpack.c.b16 %v2219, %v2218
      %v2228 = vpack.c.b16 %v2221, %v2220
      %v2229 = vpack.c.b16 %v2222, %v2222
      %vm2236 = vcmask 793600
      %v2238 = vsel %vm2236, %v2182, 0
      %v2241 = vsel %vm2236, %v2183, 0
      %v2244 = vand.u32 %v2229, %v1530
      %2246 = vmatpush.bf16.msra.mxu0 0
      %2247 = vmatpush.bf16.msra.mxu0 %v2244
      %2248 = vmatpush.bf16.msra.mxu0 %v2228
      %2249 = vmatpush.bf16.msra.mxu0 %v2227
      %2250 = vmatpush.bf16.msra.mxu0 %v2226
      %2251 = vmatpush.bf16.msra.mxu0 %v2225
      %2252 = vmatpush.bf16.msra.mxu0 %v2224
      %2253 = vmatpush.bf16.msra.mxu0 %v2223
      %2254 = vmatmul.bf16.gmra.mxu0 %v2238
      %v2255 = vpop.f32.mrf.mxu0
      %v2256 = vadd.f32 0.0, %v2255
      %v2257 = vpop.f32.mrf.mxu0
      %v2258 = vadd.f32 0.0, %v2257
      %2259 = vmatmul.bf16.gmra.mxu0 %v2241
      %v2260 = vpop.f32.mrf.mxu0
      %v2261 = vadd.f32 0.0, %v2260
      %v2262 = vpop.f32.mrf.mxu0
      %v2263 = vadd.f32 0.0, %v2262
      %2264 = vdwg.mxu0
      %v2265 = vpack.c.bf16 %v2256, %v2256
      %v2266 = vpack.c.bf16 %v2258, %v2258
      %v2267 = vpack.c.bf16 %v2261, %v2261
      %v2268 = vpack.c.bf16 %v2263, %v2263
      %2269 = vst.msk [vmem:[#allocation7] sm:$0xf] %vm1283, %v2265
      %2270 = vst.msk [vmem:[#allocation7 + $0x4] sm:$0xf] %vm1283, %v2266
      %2271 = vst.msk [vmem:[#allocation7 + $0x8] sm:$0xf] %vm1283, %v2267
      %2272 = vst.msk [vmem:[#allocation7 + $0xc] sm:$0xf] %vm1283, %v2268
      %v2273 = vld [vmem:[#allocation7] sm:$0xf]
      %v2274 = vld [vmem:[#allocation7 + $0x4] sm:$0xf]
      %v2275 = vld [vmem:[#allocation7 + $0x8] sm:$0xf]
      %v2276 = vld [vmem:[#allocation7 + $0xc] sm:$0xf]
      %vm2277 = vcmask 281600
      %2278 = vst.msk [vmem:[#allocation13] sm:$0xf] %vm2277, %v2273
      %2279 = vst.msk [vmem:[#allocation13 + $0x4] sm:$0xf] %vm2277, %v2274
      %2280 = vst.msk [vmem:[#allocation13 + $0x8] sm:$0xf] %vm2277, %v2275
      %2281 = vst.msk [vmem:[#allocation13 + $0xc] sm:$0xf] %vm2277, %v2276
      %v2282 = vld [vmem:[#allocation7] sm:$0xf]
      %v2283 = vld [vmem:[#allocation7 + $0x4] sm:$0xf]
      %v2284 = vld [vmem:[#allocation7 + $0x8] sm:$0xf]
      %v2285 = vld [vmem:[#allocation7 + $0xc] sm:$0xf]
      %2290 = vrot.lane.b32.xlu0 %v2282, 127
      %v2291 = vpop.permute.xlu0 %2290
      %2292 = vrot.lane.b32.xlu0 %v2283, 127
      %v2293 = vpop.permute.xlu0 %2292
      %2294 = vrot.lane.b32.xlu0 %v2284, 127
      %v2295 = vpop.permute.xlu0 %2294
      %2296 = vrot.lane.b32.xlu0 %v2285, 127
      %v2297 = vpop.permute.xlu0 %2296
      %2302 = vst.msk [vmem:[#allocation13 + $0x10] sm:$0xf] %vm2277, %v2291
      %2303 = vst.msk [vmem:[#allocation13 + $0x14] sm:$0xf] %vm2277, %v2293
      %2304 = vst.msk [vmem:[#allocation13 + $0x18] sm:$0xf] %vm2277, %v2295
      %2305 = vst.msk [vmem:[#allocation13 + $0x1c] sm:$0xf] %vm2277, %v2297
      %v2306 = vld [vmem:[#allocation7] sm:$0xf]
      %v2307 = vld [vmem:[#allocation7 + $0x4] sm:$0xf]
      %v2308 = vld [vmem:[#allocation7 + $0x8] sm:$0xf]
      %v2309 = vld [vmem:[#allocation7 + $0xc] sm:$0xf]
      %2314 = vrot.lane.b32.xlu0 %v2306, 126
      %v2315 = vpop.permute.xlu0 %2314
      %2316 = vrot.lane.b32.xlu0 %v2307, 126
      %v2317 = vpop.permute.xlu0 %2316
      %2318 = vrot.lane.b32.xlu0 %v2308, 126
      %v2319 = vpop.permute.xlu0 %2318
      %2320 = vrot.lane.b32.xlu0 %v2309, 126
      %v2321 = vpop.permute.xlu0 %2320
      %2326 = vst.msk [vmem:[#allocation13 + $0x20] sm:$0xf] %vm2277, %v2315
      %2327 = vst.msk [vmem:[#allocation13 + $0x24] sm:$0xf] %vm2277, %v2317
      %2328 = vst.msk [vmem:[#allocation13 + $0x28] sm:$0xf] %vm2277, %v2319
      %2329 = vst.msk [vmem:[#allocation13 + $0x2c] sm:$0xf] %vm2277, %v2321
      %v2330 = vld [vmem:[#allocation7] sm:$0xf]
      %v2331 = vld [vmem:[#allocation7 + $0x4] sm:$0xf]
      %v2332 = vld [vmem:[#allocation7 + $0x8] sm:$0xf]
      %v2333 = vld [vmem:[#allocation7 + $0xc] sm:$0xf]
      %2338 = vrot.lane.b32.xlu0 %v2330, 121
      %v2339 = vpop.permute.xlu0 %2338
      %2340 = vrot.lane.b32.xlu0 %v2331, 121
      %v2341 = vpop.permute.xlu0 %2340
      %2342 = vrot.lane.b32.xlu0 %v2332, 121
      %v2343 = vpop.permute.xlu0 %2342
      %2344 = vrot.lane.b32.xlu0 %v2333, 121
      %v2345 = vpop.permute.xlu0 %2344
      %2350 = vst.msk [vmem:[#allocation13 + $0x30] sm:$0xf] %vm2277, %v2339
      %2351 = vst.msk [vmem:[#allocation13 + $0x34] sm:$0xf] %vm2277, %v2341
      %2352 = vst.msk [vmem:[#allocation13 + $0x38] sm:$0xf] %vm2277, %v2343
      %2353 = vst.msk [vmem:[#allocation13 + $0x3c] sm:$0xf] %vm2277, %v2345
      %v2354 = vld [vmem:[#allocation7] sm:$0xf]
      %v2355 = vld [vmem:[#allocation7 + $0x4] sm:$0xf]
      %v2356 = vld [vmem:[#allocation7 + $0x8] sm:$0xf]
      %v2357 = vld [vmem:[#allocation7 + $0xc] sm:$0xf]
      %2362 = vrot.lane.b32.xlu0 %v2354, 120
      %v2363 = vpop.permute.xlu0 %2362
      %2364 = vrot.lane.b32.xlu0 %v2355, 120
      %v2365 = vpop.permute.xlu0 %2364
      %2366 = vrot.lane.b32.xlu0 %v2356, 120
      %v2367 = vpop.permute.xlu0 %2366
      %2368 = vrot.lane.b32.xlu0 %v2357, 120
      %v2369 = vpop.permute.xlu0 %2368
      %2374 = vst.msk [vmem:[#allocation13 + $0x40] sm:$0xf] %vm2277, %v2363
      %2375 = vst.msk [vmem:[#allocation13 + $0x44] sm:$0xf] %vm2277, %v2365
      %2376 = vst.msk [vmem:[#allocation13 + $0x48] sm:$0xf] %vm2277, %v2367
      %2377 = vst.msk [vmem:[#allocation13 + $0x4c] sm:$0xf] %vm2277, %v2369
      %v2378 = vld [vmem:[#allocation7] sm:$0xf]
      %v2379 = vld [vmem:[#allocation7 + $0x4] sm:$0xf]
      %v2380 = vld [vmem:[#allocation7 + $0x8] sm:$0xf]
      %v2381 = vld [vmem:[#allocation7 + $0xc] sm:$0xf]
      %2386 = vrot.lane.b32.xlu0 %v2378, 119
      %v2387 = vpop.permute.xlu0 %2386
      %2388 = vrot.lane.b32.xlu0 %v2379, 119
      %v2389 = vpop.permute.xlu0 %2388
      %2390 = vrot.lane.b32.xlu0 %v2380, 119
      %v2391 = vpop.permute.xlu0 %2390
      %2392 = vrot.lane.b32.xlu0 %v2381, 119
      %v2393 = vpop.permute.xlu0 %2392
      %2398 = vst.msk [vmem:[#allocation13 + $0x50] sm:$0xf] %vm2277, %v2387
      %2399 = vst.msk [vmem:[#allocation13 + $0x54] sm:$0xf] %vm2277, %v2389
      %2400 = vst.msk [vmem:[#allocation13 + $0x58] sm:$0xf] %vm2277, %v2391
      %2401 = vst.msk [vmem:[#allocation13 + $0x5c] sm:$0xf] %vm2277, %v2393
      %v2402 = vld [vmem:[#allocation7] sm:$0xf]
      %v2403 = vld [vmem:[#allocation7 + $0x4] sm:$0xf]
      %v2404 = vld [vmem:[#allocation7 + $0x8] sm:$0xf]
      %v2405 = vld [vmem:[#allocation7 + $0xc] sm:$0xf]
      %2410 = vrot.lane.b32.xlu0 %v2402, 114
      %v2411 = vpop.permute.xlu0 %2410
      %2412 = vrot.lane.b32.xlu0 %v2403, 114
      %v2413 = vpop.permute.xlu0 %2412
      %2414 = vrot.lane.b32.xlu0 %v2404, 114
      %v2415 = vpop.permute.xlu0 %2414
      %2416 = vrot.lane.b32.xlu0 %v2405, 114
      %v2417 = vpop.permute.xlu0 %2416
      %2422 = vst.msk [vmem:[#allocation13 + $0x60] sm:$0xf] %vm2277, %v2411
      %2423 = vst.msk [vmem:[#allocation13 + $0x64] sm:$0xf] %vm2277, %v2413
      %2424 = vst.msk [vmem:[#allocation13 + $0x68] sm:$0xf] %vm2277, %v2415
      %2425 = vst.msk [vmem:[#allocation13 + $0x6c] sm:$0xf] %vm2277, %v2417
      %v2426 = vld [vmem:[#allocation7] sm:$0xf]
      %v2427 = vld [vmem:[#allocation7 + $0x4] sm:$0xf]
      %v2428 = vld [vmem:[#allocation7 + $0x8] sm:$0xf]
      %v2429 = vld [vmem:[#allocation7 + $0xc] sm:$0xf]
      %2434 = vrot.lane.b32.xlu0 %v2426, 113
      %v2435 = vpop.permute.xlu0 %2434
      %2436 = vrot.lane.b32.xlu0 %v2427, 113
      %v2437 = vpop.permute.xlu0 %2436
      %2438 = vrot.lane.b32.xlu0 %v2428, 113
      %v2439 = vpop.permute.xlu0 %2438
      %2440 = vrot.lane.b32.xlu0 %v2429, 113
      %v2441 = vpop.permute.xlu0 %2440
      %2446 = vst.msk [vmem:[#allocation13 + $0x70] sm:$0xf] %vm2277, %v2435
      %2447 = vst.msk [vmem:[#allocation13 + $0x74] sm:$0xf] %vm2277, %v2437
      %2448 = vst.msk [vmem:[#allocation13 + $0x78] sm:$0xf] %vm2277, %v2439
      %2449 = vst.msk [vmem:[#allocation13 + $0x7c] sm:$0xf] %vm2277, %v2441
      %v2450 = vld [vmem:[#allocation7] sm:$0xf]
      %v2451 = vld [vmem:[#allocation7 + $0x4] sm:$0xf]
      %v2452 = vld [vmem:[#allocation7 + $0x8] sm:$0xf]
      %v2453 = vld [vmem:[#allocation7 + $0xc] sm:$0xf]
      %2458 = vrot.lane.b32.xlu0 %v2450, 112
      %v2459 = vpop.permute.xlu0 %2458
      %2460 = vrot.lane.b32.xlu0 %v2451, 112
      %v2461 = vpop.permute.xlu0 %2460
      %2462 = vrot.lane.b32.xlu0 %v2452, 112
      %v2463 = vpop.permute.xlu0 %2462
      %2464 = vrot.lane.b32.xlu0 %v2453, 112
      %v2465 = vpop.permute.xlu0 %2464
      %2470 = vst.msk [vmem:[#allocation13 + $0x80] sm:$0xf] %vm2277, %v2459
      %2471 = vst.msk [vmem:[#allocation13 + $0x84] sm:$0xf] %vm2277, %v2461
      %2472 = vst.msk [vmem:[#allocation13 + $0x88] sm:$0xf] %vm2277, %v2463
      %2473 = vst.msk [vmem:[#allocation13 + $0x8c] sm:$0xf] %vm2277, %v2465
      %v2474 = vld [vmem:[%s9] sm:$0xff]
      %v2475 = vld [vmem:[%s9 + $0x8] sm:$0xf]
      %v2476 = vld [vmem:[%s9 + $0xc] sm:$0xff]
      %v2477 = vld [vmem:[%s9 + $0x14] sm:$0xf]
      %v2478 = vld [vmem:[%s9 + $0x18] sm:$0xff]
      %v2479 = vld [vmem:[%s9 + $0x20] sm:$0xf]
      %v2480 = vld [vmem:[%s9 + $0x24] sm:$0xff]
      %v2481 = vld [vmem:[%s9 + $0x2c] sm:$0xf]
      %v2482 = vld [vmem:[%s9 + $0x30] sm:$0xff]
      %v2483 = vld [vmem:[%s9 + $0x38] sm:$0xf]
      %v2484 = vld [vmem:[%s9 + $0x3c] sm:$0xff]
      %v2485 = vld [vmem:[%s9 + $0x44] sm:$0xf]
      %v2486 = vld [vmem:[%s9 + $0x48] sm:$0xff]
      %v2487 = vld [vmem:[%s9 + $0x50] sm:$0xf]
      %v2488 = vld [vmem:[%s9 + $0x54] sm:$0xff]
      %v2489 = vld [vmem:[%s9 + $0x5c] sm:$0xf]
      %v2490 = vld [vmem:[#allocation13] sm:$0xf]
      %v2491 = vld [vmem:[#allocation13 + $0x4] sm:$0xf]
      %v2492 = vld [vmem:[#allocation13 + $0x8] sm:$0xf]
      %v2493 = vld [vmem:[#allocation13 + $0xc] sm:$0xf]
      %v2494 = vld [vmem:[#allocation13 + $0x10] sm:$0xf]
      %v2495 = vld [vmem:[#allocation13 + $0x14] sm:$0xf]
      %v2496 = vld [vmem:[#allocation13 + $0x18] sm:$0xf]
      %v2497 = vld [vmem:[#allocation13 + $0x1c] sm:$0xf]
      %v2498 = vld [vmem:[#allocation13 + $0x20] sm:$0xf]
      %v2499 = vld [vmem:[#allocation13 + $0x24] sm:$0xf]
      %v2500 = vld [vmem:[#allocation13 + $0x28] sm:$0xf]
      %v2501 = vld [vmem:[#allocation13 + $0x2c] sm:$0xf]
      %v2502 = vld [vmem:[#allocation13 + $0x30] sm:$0xf]
      %v2503 = vld [vmem:[#allocation13 + $0x34] sm:$0xf]
      %v2504 = vld [vmem:[#allocation13 + $0x38] sm:$0xf]
      %v2505 = vld [vmem:[#allocation13 + $0x3c] sm:$0xf]
      %v2506 = vld [vmem:[#allocation13 + $0x40] sm:$0xf]
      %v2507 = vld [vmem:[#allocation13 + $0x44] sm:$0xf]
      %v2508 = vld [vmem:[#allocation13 + $0x48] sm:$0xf]
      %v2509 = vld [vmem:[#allocation13 + $0x4c] sm:$0xf]
      %v2510 = vld [vmem:[#allocation13 + $0x50] sm:$0xf]
      %v2511 = vld [vmem:[#allocation13 + $0x54] sm:$0xf]
      %v2512 = vld [vmem:[#allocation13 + $0x58] sm:$0xf]
      %v2513 = vld [vmem:[#allocation13 + $0x5c] sm:$0xf]
      %v2514 = vld [vmem:[#allocation13 + $0x60] sm:$0xf]
      %v2515 = vld [vmem:[#allocation13 + $0x64] sm:$0xf]
      %v2516 = vld [vmem:[#allocation13 + $0x68] sm:$0xf]
      %v2517 = vld [vmem:[#allocation13 + $0x6c] sm:$0xf]
      %v2518 = vld [vmem:[#allocation13 + $0x70] sm:$0xf]
      %v2519 = vld [vmem:[#allocation13 + $0x74] sm:$0xf]
      %v2520 = vld [vmem:[#allocation13 + $0x78] sm:$0xf]
      %v2521 = vld [vmem:[#allocation13 + $0x7c] sm:$0xf]
      %v2522 = vld [vmem:[#allocation13 + $0x80] sm:$0xf]
      %v2523 = vld [vmem:[#allocation13 + $0x84] sm:$0xf]
      %v2524 = vld [vmem:[#allocation13 + $0x88] sm:$0xf]
      %v2525 = vld [vmem:[#allocation13 + $0x8c] sm:$0xf]
      %v2526 = vld [vmem:[%s10] sm:$0xff]
      %v2527 = vld [vmem:[%s10 + $0x8] sm:$0xff]
      %v2528 = vld [vmem:[%s10 + $0x10] sm:$0xff]
      %v2529 = vld [vmem:[%s10 + $0x18] sm:$0xff]
      %v2530 = vld [vmem:[%s10 + $0x20] sm:$0xff]
      %v2531 = vld [vmem:[%s10 + $0x28] sm:$0xff]
      %v2532 = vld [vmem:[%s10 + $0x30] sm:$0xff]
      %v2533 = vld [vmem:[%s10 + $0x38] sm:$0xff]
      %2535 = vset.pattern.permute.xlu0 0
      %2536 = vperm.xlu0 %2535, %v2526
      %v2537 = vpop.permute.xlu0 %2536
      %2540 = vset.pattern.permute.xlu0 0
      %2541 = vperm.xlu0 %2540, %v2527
      %v2542 = vpop.permute.xlu0 %2541
      %2545 = vset.pattern.permute.xlu0 0
      %2546 = vperm.xlu0 %2545, %v2528
      %v2547 = vpop.permute.xlu0 %2546
      %2550 = vset.pattern.permute.xlu0 0
      %2551 = vperm.xlu0 %2550, %v2529
      %v2552 = vpop.permute.xlu0 %2551
      %2555 = vset.pattern.permute.xlu0 0
      %2556 = vperm.xlu0 %2555, %v2530
      %v2557 = vpop.permute.xlu0 %2556
      %2560 = vset.pattern.permute.xlu0 0
      %2561 = vperm.xlu0 %2560, %v2531
      %v2562 = vpop.permute.xlu0 %2561
      %2565 = vset.pattern.permute.xlu0 0
      %2566 = vperm.xlu0 %2565, %v2532
      %v2567 = vpop.permute.xlu0 %2566
      %2570 = vset.pattern.permute.xlu0 0
      %2571 = vperm.xlu0 %2570, %v2533
      %v2572 = vpop.permute.xlu0 %2571
      %v2590 = vunpack.c.l.b16 %v2474
      %v2591 = vunpack.c.h.b16 %v2474
      %v2592 = vunpack.c.l.b16 %v2475
      %v2593 = vunpack.c.l.b16 %v2476
      %v2594 = vunpack.c.h.b16 %v2476
      %v2595 = vunpack.c.l.b16 %v2477
      %v2596 = vunpack.c.l.b16 %v2478
      %v2597 = vunpack.c.h.b16 %v2478
      %v2598 = vunpack.c.l.b16 %v2479
      %v2599 = vunpack.c.l.b16 %v2480
      %v2600 = vunpack.c.h.b16 %v2480
      %v2601 = vunpack.c.l.b16 %v2481
      %v2602 = vunpack.c.l.b16 %v2482
      %v2603 = vunpack.c.h.b16 %v2482
      %v2604 = vunpack.c.l.b16 %v2483
      %v2605 = vunpack.c.l.b16 %v2484
      %v2606 = vunpack.c.h.b16 %v2484
      %v2607 = vunpack.c.l.b16 %v2485
      %v2608 = vunpack.c.l.b16 %v2486
      %v2609 = vunpack.c.h.b16 %v2486
      %v2610 = vunpack.c.l.b16 %v2487
      %v2611 = vunpack.c.l.b16 %v2488
      %v2612 = vunpack.c.h.b16 %v2488
      %v2613 = vunpack.c.l.b16 %v2489
      %v2614 = vpack.c.b16 %v2593, %v2590
      %v2615 = vpack.c.b16 %v2594, %v2591
      %v2616 = vpack.c.b16 %v2595, %v2592
      %v2617 = vpack.c.b16 %v2599, %v2596
      %v2618 = vpack.c.b16 %v2600, %v2597
      %v2619 = vpack.c.b16 %v2601, %v2598
      %v2620 = vpack.c.b16 %v2605, %v2602
      %v2621 = vpack.c.b16 %v2606, %v2603
      %v2622 = vpack.c.b16 %v2607, %v2604
      %v2623 = vpack.c.b16 %v2611, %v2608
      %v2624 = vpack.c.b16 %v2612, %v2609
      %v2625 = vpack.c.b16 %v2613, %v2610
      %v2670 = vunpack.c.l.b16 %v2490
      %v2671 = vunpack.c.l.b16 %v2491
      %v2672 = vunpack.c.l.b16 %v2492
      %v2673 = vunpack.c.l.b16 %v2493
      %v2674 = vunpack.c.l.b16 %v2494
      %v2675 = vunpack.c.l.b16 %v2495
      %v2676 = vunpack.c.l.b16 %v2496
      %v2677 = vunpack.c.l.b16 %v2497
      %v2678 = vunpack.c.l.b16 %v2498
      %v2679 = vunpack.c.l.b16 %v2499
      %v2680 = vunpack.c.l.b16 %v2500
      %v2681 = vunpack.c.l.b16 %v2501
      %v2682 = vunpack.c.l.b16 %v2502
      %v2683 = vunpack.c.l.b16 %v2503
      %v2684 = vunpack.c.l.b16 %v2504
      %v2685 = vunpack.c.l.b16 %v2505
      %v2686 = vunpack.c.l.b16 %v2506
      %v2687 = vunpack.c.l.b16 %v2507
      %v2688 = vunpack.c.l.b16 %v2508
      %v2689 = vunpack.c.l.b16 %v2509
      %v2690 = vunpack.c.l.b16 %v2510
      %v2691 = vunpack.c.l.b16 %v2511
      %v2692 = vunpack.c.l.b16 %v2512
      %v2693 = vunpack.c.l.b16 %v2513
      %v2694 = vunpack.c.l.b16 %v2514
      %v2695 = vunpack.c.l.b16 %v2515
      %v2696 = vunpack.c.l.b16 %v2516
      %v2697 = vunpack.c.l.b16 %v2517
      %v2698 = vunpack.c.l.b16 %v2518
      %v2699 = vunpack.c.l.b16 %v2519
      %v2700 = vunpack.c.l.b16 %v2520
      %v2701 = vunpack.c.l.b16 %v2521
      %v2702 = vunpack.c.l.b16 %v2522
      %v2703 = vunpack.c.l.b16 %v2523
      %v2704 = vunpack.c.l.b16 %v2524
      %v2705 = vunpack.c.l.b16 %v2525
      %v2706 = vpack.c.b16 %v2671, %v2670
      %v2707 = vpack.c.b16 %v2673, %v2672
      %v2708 = vpack.c.b16 %v2675, %v2674
      %v2709 = vpack.c.b16 %v2677, %v2676
      %v2710 = vpack.c.b16 %v2679, %v2678
      %v2711 = vpack.c.b16 %v2681, %v2680
      %v2712 = vpack.c.b16 %v2683, %v2682
      %v2713 = vpack.c.b16 %v2685, %v2684
      %v2714 = vpack.c.b16 %v2687, %v2686
      %v2715 = vpack.c.b16 %v2689, %v2688
      %v2716 = vpack.c.b16 %v2691, %v2690
      %v2717 = vpack.c.b16 %v2693, %v2692
      %v2718 = vpack.c.b16 %v2695, %v2694
      %v2719 = vpack.c.b16 %v2697, %v2696
      %v2720 = vpack.c.b16 %v2699, %v2698
      %v2721 = vpack.c.b16 %v2701, %v2700
      %v2722 = vpack.c.b16 %v2703, %v2702
      %v2723 = vpack.c.b16 %v2705, %v2704
      %v2743 = vsel %vm948, %v2616, 0
      %v2746 = vsel %vm948, %v2619, 0
      %v2749 = vsel %vm948, %v2622, 0
      %v2752 = vsel %vm948, %v2625, 0
      %2754 = vmatpush.bf16.msra.mxu0 %v2713
      %2755 = vmatpush.bf16.msra.mxu0 %v2712
      %2756 = vmatpush.bf16.msra.mxu0 %v2711
      %2757 = vmatpush.bf16.msra.mxu0 %v2710
      %2758 = vmatpush.bf16.msra.mxu0 %v2709
      %2759 = vmatpush.bf16.msra.mxu0 %v2708
      %2760 = vmatpush.bf16.msra.mxu0 %v2707
      %2761 = vmatpush.bf16.msra.mxu0 %v2706
      %2762 = vmatmul.bf16.gmra.mxu0 %v2614
      %v2763 = vpop.f32.mrf.mxu0
      %v2764 = vadd.f32 %v2537, %v2763
      %v2765 = vpop.f32.mrf.mxu0
      %v2766 = vadd.f32 %v2542, %v2765
      %2767 = vmatmul.bf16.gmra.mxu0 %v2617
      %v2768 = vpop.f32.mrf.mxu0
      %v2769 = vadd.f32 %v2547, %v2768
      %v2770 = vpop.f32.mrf.mxu0
      %v2771 = vadd.f32 %v2552, %v2770
      %2772 = vmatmul.bf16.gmra.mxu0 %v2620
      %v2773 = vpop.f32.mrf.mxu0
      %v2774 = vadd.f32 %v2557, %v2773
      %v2775 = vpop.f32.mrf.mxu0
      %v2776 = vadd.f32 %v2562, %v2775
      %2777 = vmatmul.bf16.gmra.mxu0 %v2623
      %v2778 = vpop.f32.mrf.mxu0
      %v2779 = vadd.f32 %v2567, %v2778
      %v2780 = vpop.f32.mrf.mxu0
      %v2781 = vadd.f32 %v2572, %v2780
      %2782 = vdwg.mxu0
      %2783 = vmatpush.bf16.msra.mxu0 %v2721
      %2784 = vmatpush.bf16.msra.mxu0 %v2720
      %2785 = vmatpush.bf16.msra.mxu0 %v2719
      %2786 = vmatpush.bf16.msra.mxu0 %v2718
      %2787 = vmatpush.bf16.msra.mxu0 %v2717
      %2788 = vmatpush.bf16.msra.mxu0 %v2716
      %2789 = vmatpush.bf16.msra.mxu0 %v2715
      %2790 = vmatpush.bf16.msra.mxu0 %v2714
      %2791 = vmatmul.bf16.gmra.mxu0 %v2615
      %v2792 = vpop.f32.mrf.mxu0
      %v2793 = vadd.f32 %v2764, %v2792
      %v2794 = vpop.f32.mrf.mxu0
      %v2795 = vadd.f32 %v2766, %v2794
      %2796 = vmatmul.bf16.gmra.mxu0 %v2618
      %v2797 = vpop.f32.mrf.mxu0
      %v2798 = vadd.f32 %v2769, %v2797
      %v2799 = vpop.f32.mrf.mxu0
      %v2800 = vadd.f32 %v2771, %v2799
      %2801 = vmatmul.bf16.gmra.mxu0 %v2621
      %v2802 = vpop.f32.mrf.mxu0
      %v2803 = vadd.f32 %v2774, %v2802
      %v2804 = vpop.f32.mrf.mxu0
      %v2805 = vadd.f32 %v2776, %v2804
      %2806 = vmatmul.bf16.gmra.mxu0 %v2624
      %v2807 = vpop.f32.mrf.mxu0
      %v2808 = vadd.f32 %v2779, %v2807
      %v2809 = vpop.f32.mrf.mxu0
      %v2810 = vadd.f32 %v2781, %v2809
      %2811 = vdwg.mxu0
      %2812 = vmatpush.bf16.msra.mxu0 0
      %2813 = vmatpush.bf16.msra.mxu0 0
      %2814 = vmatpush.bf16.msra.mxu0 0
      %2815 = vmatpush.bf16.msra.mxu0 0
      %2816 = vmatpush.bf16.msra.mxu0 0
      %2817 = vmatpush.bf16.msra.mxu0 0
      %2818 = vmatpush.bf16.msra.mxu0 %v2723
      %2819 = vmatpush.bf16.msra.mxu0 %v2722
      %2820 = vmatmul.bf16.gmra.mxu0 %v2743
      %v2821 = vpop.f32.mrf.mxu0
      %v2822 = vadd.f32 %v2793, %v2821
      %v2823 = vpop.f32.mrf.mxu0
      %v2824 = vadd.f32 %v2795, %v2823
      %2825 = vmatmul.bf16.gmra.mxu0 %v2746
      %v2826 = vpop.f32.mrf.mxu0
      %v2827 = vadd.f32 %v2798, %v2826
      %v2828 = vpop.f32.mrf.mxu0
      %v2829 = vadd.f32 %v2800, %v2828
      %2830 = vmatmul.bf16.gmra.mxu0 %v2749
      %v2831 = vpop.f32.mrf.mxu0
      %v2832 = vadd.f32 %v2803, %v2831
      %v2833 = vpop.f32.mrf.mxu0
      %v2834 = vadd.f32 %v2805, %v2833
      %2835 = vmatmul.bf16.gmra.mxu0 %v2752
      %v2836 = vpop.f32.mrf.mxu0
      %v2837 = vadd.f32 %v2808, %v2836
      %v2838 = vpop.f32.mrf.mxu0
      %v2839 = vadd.f32 %v2810, %v2838
      %2840 = vdwg.mxu0
      %v2841 = vmax.f32 %v2822, 0.0
      %v2842 = vmax.f32 %v2824, 0.0
      %v2843 = vmax.f32 %v2827, 0.0
      %v2844 = vmax.f32 %v2829, 0.0
      %v2845 = vmax.f32 %v2832, 0.0
      %v2846 = vmax.f32 %v2834, 0.0
      %v2847 = vmax.f32 %v2837, 0.0
      %v2848 = vmax.f32 %v2839, 0.0
      %v2849 = vld [vmem:[%s17] sm:$0x1]
      %v2851 = vperm.slane %v2849, 0
      %v2853 = vmul.f32 %v2841, %v2851
      %v2854 = vmul.f32 %v2842, %v2851
      %v2855 = vmul.f32 %v2843, %v2851
      %v2856 = vmul.f32 %v2844, %v2851
      %v2857 = vmul.f32 %v2845, %v2851
      %v2858 = vmul.f32 %v2846, %v2851
      %v2859 = vmul.f32 %v2847, %v2851
      %v2860 = vmul.f32 %v2848, %v2851
      %2861 = vst.msk [vmem:[#allocation8] sm:$0xf] %vm1283, 0
      %2862 = vst.msk [vmem:[#allocation8 + $0x4] sm:$0xf] %vm1283, 0
      %2863 = vst.msk [vmem:[#allocation8 + $0x8] sm:$0xf] %vm1283, 0
      %2864 = vst.msk [vmem:[#allocation8 + $0xc] sm:$0xf] %vm1283, 0
      %2865 = vst.msk [vmem:[#allocation8 + $0x10] sm:$0xf] %vm1283, 0
      %2866 = vst.msk [vmem:[#allocation8 + $0x14] sm:$0xf] %vm1283, 0
      %2867 = vst.msk [vmem:[#allocation8 + $0x18] sm:$0xf] %vm1283, 0
      %2868 = vst.msk [vmem:[#allocation8 + $0x1c] sm:$0xf] %vm1283, 0
      %v2869 = vpack.c.bf16 %v2853, %v2853
      %v2870 = vpack.c.bf16 %v2854, %v2854
      %v2871 = vpack.c.bf16 %v2855, %v2855
      %v2872 = vpack.c.bf16 %v2856, %v2856
      %v2873 = vpack.c.bf16 %v2857, %v2857
      %v2874 = vpack.c.bf16 %v2858, %v2858
      %v2875 = vpack.c.bf16 %v2859, %v2859
      %v2876 = vpack.c.bf16 %v2860, %v2860
      %2885 = vrot.lane.b32.xlu0 %v2869, 8
      %v2886 = vpop.permute.xlu0 %2885
      %2887 = vrot.lane.b32.xlu0 %v2870, 8
      %v2888 = vpop.permute.xlu0 %2887
      %2889 = vrot.lane.b32.xlu0 %v2871, 8
      %v2890 = vpop.permute.xlu0 %2889
      %2891 = vrot.lane.b32.xlu0 %v2872, 8
      %v2892 = vpop.permute.xlu0 %2891
      %2893 = vrot.lane.b32.xlu0 %v2873, 8
      %v2894 = vpop.permute.xlu0 %2893
      %2895 = vrot.lane.b32.xlu0 %v2874, 8
      %v2896 = vpop.permute.xlu0 %2895
      %2897 = vrot.lane.b32.xlu0 %v2875, 8
      %v2898 = vpop.permute.xlu0 %2897
      %2899 = vrot.lane.b32.xlu0 %v2876, 8
      %v2900 = vpop.permute.xlu0 %2899
      %vm2909 = vcmask 347200
      %2910 = vst.msk [vmem:[#allocation8] sm:$0xf] %vm2909, %v2886
      %2911 = vst.msk [vmem:[#allocation8 + $0x4] sm:$0xf] %vm2909, %v2888
      %2912 = vst.msk [vmem:[#allocation8 + $0x8] sm:$0xf] %vm2909, %v2890
      %2913 = vst.msk [vmem:[#allocation8 + $0xc] sm:$0xf] %vm2909, %v2892
      %2914 = vst.msk [vmem:[#allocation8 + $0x10] sm:$0xf] %vm2909, %v2894
      %2915 = vst.msk [vmem:[#allocation8 + $0x14] sm:$0xf] %vm2909, %v2896
      %2916 = vst.msk [vmem:[#allocation8 + $0x18] sm:$0xf] %vm2909, %v2898
      %2917 = vst.msk [vmem:[#allocation8 + $0x1c] sm:$0xf] %vm2909, %v2900
      %v2918 = vld [vmem:[#allocation8] sm:$0xf]
      %v2919 = vld [vmem:[#allocation8 + $0x4] sm:$0xf]
      %v2920 = vld [vmem:[#allocation8 + $0x8] sm:$0xf]
      %v2921 = vld [vmem:[#allocation8 + $0xc] sm:$0xf]
      %v2922 = vld [vmem:[#allocation8 + $0x10] sm:$0xf]
      %v2923 = vld [vmem:[#allocation8 + $0x14] sm:$0xf]
      %v2924 = vld [vmem:[#allocation8 + $0x18] sm:$0xf]
      %v2925 = vld [vmem:[#allocation8 + $0x1c] sm:$0xf]
      %2926 = vst.msk [vmem:[#allocation13] sm:$0xf] %vm2277, %v2918
      %2927 = vst.msk [vmem:[#allocation13 + $0x4] sm:$0xf] %vm2277, %v2919
      %2928 = vst.msk [vmem:[#allocation13 + $0x8] sm:$0xf] %vm2277, %v2920
      %2929 = vst.msk [vmem:[#allocation13 + $0xc] sm:$0xf] %vm2277, %v2921
      %2930 = vst.msk [vmem:[#allocation13 + $0x10] sm:$0xf] %vm2277, %v2922
      %2931 = vst.msk [vmem:[#allocation13 + $0x14] sm:$0xf] %vm2277, %v2923
      %2932 = vst.msk [vmem:[#allocation13 + $0x18] sm:$0xf] %vm2277, %v2924
      %2933 = vst.msk [vmem:[#allocation13 + $0x1c] sm:$0xf] %vm2277, %v2925
      %v2934 = vld [vmem:[#allocation8] sm:$0xf]
      %v2935 = vld [vmem:[#allocation8 + $0x4] sm:$0xf]
      %v2936 = vld [vmem:[#allocation8 + $0x8] sm:$0xf]
      %v2937 = vld [vmem:[#allocation8 + $0xc] sm:$0xf]
      %v2938 = vld [vmem:[#allocation8 + $0x10] sm:$0xf]
      %v2939 = vld [vmem:[#allocation8 + $0x14] sm:$0xf]
      %v2940 = vld [vmem:[#allocation8 + $0x18] sm:$0xf]
      %v2941 = vld [vmem:[#allocation8 + $0x1c] sm:$0xf]
      %2950 = vrot.lane.b32.xlu0 %v2934, 127
      %v2951 = vpop.permute.xlu0 %2950
      %2952 = vrot.lane.b32.xlu0 %v2935, 127
      %v2953 = vpop.permute.xlu0 %2952
      %2954 = vrot.lane.b32.xlu0 %v2936, 127
      %v2955 = vpop.permute.xlu0 %2954
      %2956 = vrot.lane.b32.xlu0 %v2937, 127
      %v2957 = vpop.permute.xlu0 %2956
      %2958 = vrot.lane.b32.xlu0 %v2938, 127
      %v2959 = vpop.permute.xlu0 %2958
      %2960 = vrot.lane.b32.xlu0 %v2939, 127
      %v2961 = vpop.permute.xlu0 %2960
      %2962 = vrot.lane.b32.xlu0 %v2940, 127
      %v2963 = vpop.permute.xlu0 %2962
      %2964 = vrot.lane.b32.xlu0 %v2941, 127
      %v2965 = vpop.permute.xlu0 %2964
      %2974 = vst.msk [vmem:[#allocation13 + $0x20] sm:$0xf] %vm2277, %v2951
      %2975 = vst.msk [vmem:[#allocation13 + $0x24] sm:$0xf] %vm2277, %v2953
      %2976 = vst.msk [vmem:[#allocation13 + $0x28] sm:$0xf] %vm2277, %v2955
      %2977 = vst.msk [vmem:[#allocation13 + $0x2c] sm:$0xf] %vm2277, %v2957
      %2978 = vst.msk [vmem:[#allocation13 + $0x30] sm:$0xf] %vm2277, %v2959
      %2979 = vst.msk [vmem:[#allocation13 + $0x34] sm:$0xf] %vm2277, %v2961
      %2980 = vst.msk [vmem:[#allocation13 + $0x38] sm:$0xf] %vm2277, %v2963
      %2981 = vst.msk [vmem:[#allocation13 + $0x3c] sm:$0xf] %vm2277, %v2965
      %v2982 = vld [vmem:[#allocation8] sm:$0xf]
      %v2983 = vld [vmem:[#allocation8 + $0x4] sm:$0xf]
      %v2984 = vld [vmem:[#allocation8 + $0x8] sm:$0xf]
      %v2985 = vld [vmem:[#allocation8 + $0xc] sm:$0xf]
      %v2986 = vld [vmem:[#allocation8 + $0x10] sm:$0xf]
      %v2987 = vld [vmem:[#allocation8 + $0x14] sm:$0xf]
      %v2988 = vld [vmem:[#allocation8 + $0x18] sm:$0xf]
      %v2989 = vld [vmem:[#allocation8 + $0x1c] sm:$0xf]
      %2998 = vrot.lane.b32.xlu0 %v2982, 126
      %v2999 = vpop.permute.xlu0 %2998
      %3000 = vrot.lane.b32.xlu0 %v2983, 126
      %v3001 = vpop.permute.xlu0 %3000
      %3002 = vrot.lane.b32.xlu0 %v2984, 126
      %v3003 = vpop.permute.xlu0 %3002
      %3004 = vrot.lane.b32.xlu0 %v2985, 126
      %v3005 = vpop.permute.xlu0 %3004
      %3006 = vrot.lane.b32.xlu0 %v2986, 126
      %v3007 = vpop.permute.xlu0 %3006
      %3008 = vrot.lane.b32.xlu0 %v2987, 126
      %v3009 = vpop.permute.xlu0 %3008
      %3010 = vrot.lane.b32.xlu0 %v2988, 126
      %v3011 = vpop.permute.xlu0 %3010
      %3012 = vrot.lane.b32.xlu0 %v2989, 126
      %v3013 = vpop.permute.xlu0 %3012
      %3022 = vst.msk [vmem:[#allocation13 + $0x40] sm:$0xf] %vm2277, %v2999
      %3023 = vst.msk [vmem:[#allocation13 + $0x44] sm:$0xf] %vm2277, %v3001
      %3024 = vst.msk [vmem:[#allocation13 + $0x48] sm:$0xf] %vm2277, %v3003
      %3025 = vst.msk [vmem:[#allocation13 + $0x4c] sm:$0xf] %vm2277, %v3005
      %3026 = vst.msk [vmem:[#allocation13 + $0x50] sm:$0xf] %vm2277, %v3007
      %3027 = vst.msk [vmem:[#allocation13 + $0x54] sm:$0xf] %vm2277, %v3009
      %3028 = vst.msk [vmem:[#allocation13 + $0x58] sm:$0xf] %vm2277, %v3011
      %3029 = vst.msk [vmem:[#allocation13 + $0x5c] sm:$0xf] %vm2277, %v3013
      %v3030 = vld [vmem:[#allocation8] sm:$0xf]
      %v3031 = vld [vmem:[#allocation8 + $0x4] sm:$0xf]
      %v3032 = vld [vmem:[#allocation8 + $0x8] sm:$0xf]
      %v3033 = vld [vmem:[#allocation8 + $0xc] sm:$0xf]
      %v3034 = vld [vmem:[#allocation8 + $0x10] sm:$0xf]
      %v3035 = vld [vmem:[#allocation8 + $0x14] sm:$0xf]
      %v3036 = vld [vmem:[#allocation8 + $0x18] sm:$0xf]
      %v3037 = vld [vmem:[#allocation8 + $0x1c] sm:$0xf]
      %3046 = vrot.lane.b32.xlu0 %v3030, 121
      %v3047 = vpop.permute.xlu0 %3046
      %3048 = vrot.lane.b32.xlu0 %v3031, 121
      %v3049 = vpop.permute.xlu0 %3048
      %3050 = vrot.lane.b32.xlu0 %v3032, 121
      %v3051 = vpop.permute.xlu0 %3050
      %3052 = vrot.lane.b32.xlu0 %v3033, 121
      %v3053 = vpop.permute.xlu0 %3052
      %3054 = vrot.lane.b32.xlu0 %v3034, 121
      %v3055 = vpop.permute.xlu0 %3054
      %3056 = vrot.lane.b32.xlu0 %v3035, 121
      %v3057 = vpop.permute.xlu0 %3056
      %3058 = vrot.lane.b32.xlu0 %v3036, 121
      %v3059 = vpop.permute.xlu0 %3058
      %3060 = vrot.lane.b32.xlu0 %v3037, 121
      %v3061 = vpop.permute.xlu0 %3060
      %3070 = vst.msk [vmem:[#allocation13 + $0x60] sm:$0xf] %vm2277, %v3047
      %3071 = vst.msk [vmem:[#allocation13 + $0x64] sm:$0xf] %vm2277, %v3049
      %3072 = vst.msk [vmem:[#allocation13 + $0x68] sm:$0xf] %vm2277, %v3051
      %3073 = vst.msk [vmem:[#allocation13 + $0x6c] sm:$0xf] %vm2277, %v3053
      %3074 = vst.msk [vmem:[#allocation13 + $0x70] sm:$0xf] %vm2277, %v3055
      %3075 = vst.msk [vmem:[#allocation13 + $0x74] sm:$0xf] %vm2277, %v3057
      %3076 = vst.msk [vmem:[#allocation13 + $0x78] sm:$0xf] %vm2277, %v3059
      %3077 = vst.msk [vmem:[#allocation13 + $0x7c] sm:$0xf] %vm2277, %v3061
      %v3078 = vld [vmem:[#allocation8] sm:$0xf]
      %v3079 = vld [vmem:[#allocation8 + $0x4] sm:$0xf]
      %v3080 = vld [vmem:[#allocation8 + $0x8] sm:$0xf]
      %v3081 = vld [vmem:[#allocation8 + $0xc] sm:$0xf]
      %v3082 = vld [vmem:[#allocation8 + $0x10] sm:$0xf]
      %v3083 = vld [vmem:[#allocation8 + $0x14] sm:$0xf]
      %v3084 = vld [vmem:[#allocation8 + $0x18] sm:$0xf]
      %v3085 = vld [vmem:[#allocation8 + $0x1c] sm:$0xf]
      %3094 = vrot.lane.b32.xlu0 %v3078, 120
      %v3095 = vpop.permute.xlu0 %3094
      %3096 = vrot.lane.b32.xlu0 %v3079, 120
      %v3097 = vpop.permute.xlu0 %3096
      %3098 = vrot.lane.b32.xlu0 %v3080, 120
      %v3099 = vpop.permute.xlu0 %3098
      %3100 = vrot.lane.b32.xlu0 %v3081, 120
      %v3101 = vpop.permute.xlu0 %3100
      %3102 = vrot.lane.b32.xlu0 %v3082, 120
      %v3103 = vpop.permute.xlu0 %3102
      %3104 = vrot.lane.b32.xlu0 %v3083, 120
      %v3105 = vpop.permute.xlu0 %3104
      %3106 = vrot.lane.b32.xlu0 %v3084, 120
      %v3107 = vpop.permute.xlu0 %3106
      %3108 = vrot.lane.b32.xlu0 %v3085, 120
      %v3109 = vpop.permute.xlu0 %3108
      %3118 = vst.msk [vmem:[#allocation13 + $0x80] sm:$0xf] %vm2277, %v3095
      %3119 = vst.msk [vmem:[#allocation13 + $0x84] sm:$0xf] %vm2277, %v3097
      %3120 = vst.msk [vmem:[#allocation13 + $0x88] sm:$0xf] %vm2277, %v3099
      %3121 = vst.msk [vmem:[#allocation13 + $0x8c] sm:$0xf] %vm2277, %v3101
      %3122 = vst.msk [vmem:[#allocation13 + $0x90] sm:$0xf] %vm2277, %v3103
      %3123 = vst.msk [vmem:[#allocation13 + $0x94] sm:$0xf] %vm2277, %v3105
      %3124 = vst.msk [vmem:[#allocation13 + $0x98] sm:$0xf] %vm2277, %v3107
      %3125 = vst.msk [vmem:[#allocation13 + $0x9c] sm:$0xf] %vm2277, %v3109
      %v3126 = vld [vmem:[#allocation8] sm:$0xf]
      %v3127 = vld [vmem:[#allocation8 + $0x4] sm:$0xf]
      %v3128 = vld [vmem:[#allocation8 + $0x8] sm:$0xf]
      %v3129 = vld [vmem:[#allocation8 + $0xc] sm:$0xf]
      %v3130 = vld [vmem:[#allocation8 + $0x10] sm:$0xf]
      %v3131 = vld [vmem:[#allocation8 + $0x14] sm:$0xf]
      %v3132 = vld [vmem:[#allocation8 + $0x18] sm:$0xf]
      %v3133 = vld [vmem:[#allocation8 + $0x1c] sm:$0xf]
      %3142 = vrot.lane.b32.xlu0 %v3126, 119
      %v3143 = vpop.permute.xlu0 %3142
      %3144 = vrot.lane.b32.xlu0 %v3127, 119
      %v3145 = vpop.permute.xlu0 %3144
      %3146 = vrot.lane.b32.xlu0 %v3128, 119
      %v3147 = vpop.permute.xlu0 %3146
      %3148 = vrot.lane.b32.xlu0 %v3129, 119
      %v3149 = vpop.permute.xlu0 %3148
      %3150 = vrot.lane.b32.xlu0 %v3130, 119
      %v3151 = vpop.permute.xlu0 %3150
      %3152 = vrot.lane.b32.xlu0 %v3131, 119
      %v3153 = vpop.permute.xlu0 %3152
      %3154 = vrot.lane.b32.xlu0 %v3132, 119
      %v3155 = vpop.permute.xlu0 %3154
      %3156 = vrot.lane.b32.xlu0 %v3133, 119
      %v3157 = vpop.permute.xlu0 %3156
      %3166 = vst.msk [vmem:[#allocation13 + $0xa0] sm:$0xf] %vm2277, %v3143
      %3167 = vst.msk [vmem:[#allocation13 + $0xa4] sm:$0xf] %vm2277, %v3145
      %3168 = vst.msk [vmem:[#allocation13 + $0xa8] sm:$0xf] %vm2277, %v3147
      %3169 = vst.msk [vmem:[#allocation13 + $0xac] sm:$0xf] %vm2277, %v3149
      %3170 = vst.msk [vmem:[#allocation13 + $0xb0] sm:$0xf] %vm2277, %v3151
      %3171 = vst.msk [vmem:[#allocation13 + $0xb4] sm:$0xf] %vm2277, %v3153
      %3172 = vst.msk [vmem:[#allocation13 + $0xb8] sm:$0xf] %vm2277, %v3155
      %3173 = vst.msk [vmem:[#allocation13 + $0xbc] sm:$0xf] %vm2277, %v3157
      %v3174 = vld [vmem:[#allocation8] sm:$0xf]
      %v3175 = vld [vmem:[#allocation8 + $0x4] sm:$0xf]
      %v3176 = vld [vmem:[#allocation8 + $0x8] sm:$0xf]
      %v3177 = vld [vmem:[#allocation8 + $0xc] sm:$0xf]
      %v3178 = vld [vmem:[#allocation8 + $0x10] sm:$0xf]
      %v3179 = vld [vmem:[#allocation8 + $0x14] sm:$0xf]
      %v3180 = vld [vmem:[#allocation8 + $0x18] sm:$0xf]
      %v3181 = vld [vmem:[#allocation8 + $0x1c] sm:$0xf]
      %3190 = vrot.lane.b32.xlu0 %v3174, 114
      %v3191 = vpop.permute.xlu0 %3190
      %3192 = vrot.lane.b32.xlu0 %v3175, 114
      %v3193 = vpop.permute.xlu0 %3192
      %3194 = vrot.lane.b32.xlu0 %v3176, 114
      %v3195 = vpop.permute.xlu0 %3194
      %3196 = vrot.lane.b32.xlu0 %v3177, 114
      %v3197 = vpop.permute.xlu0 %3196
      %3198 = vrot.lane.b32.xlu0 %v3178, 114
      %v3199 = vpop.permute.xlu0 %3198
      %3200 = vrot.lane.b32.xlu0 %v3179, 114
      %v3201 = vpop.permute.xlu0 %3200
      %3202 = vrot.lane.b32.xlu0 %v3180, 114
      %v3203 = vpop.permute.xlu0 %3202
      %3204 = vrot.lane.b32.xlu0 %v3181, 114
      %v3205 = vpop.permute.xlu0 %3204
      %3214 = vst.msk [vmem:[#allocation13 + $0xc0] sm:$0xf] %vm2277, %v3191
      %3215 = vst.msk [vmem:[#allocation13 + $0xc4] sm:$0xf] %vm2277, %v3193
      %3216 = vst.msk [vmem:[#allocation13 + $0xc8] sm:$0xf] %vm2277, %v3195
      %3217 = vst.msk [vmem:[#allocation13 + $0xcc] sm:$0xf] %vm2277, %v3197
      %3218 = vst.msk [vmem:[#allocation13 + $0xd0] sm:$0xf] %vm2277, %v3199
      %3219 = vst.msk [vmem:[#allocation13 + $0xd4] sm:$0xf] %vm2277, %v3201
      %3220 = vst.msk [vmem:[#allocation13 + $0xd8] sm:$0xf] %vm2277, %v3203
      %3221 = vst.msk [vmem:[#allocation13 + $0xdc] sm:$0xf] %vm2277, %v3205
      %v3222 = vld [vmem:[#allocation8] sm:$0xf]
      %v3223 = vld [vmem:[#allocation8 + $0x4] sm:$0xf]
      %v3224 = vld [vmem:[#allocation8 + $0x8] sm:$0xf]
      %v3225 = vld [vmem:[#allocation8 + $0xc] sm:$0xf]
      %v3226 = vld [vmem:[#allocation8 + $0x10] sm:$0xf]
      %v3227 = vld [vmem:[#allocation8 + $0x14] sm:$0xf]
      %v3228 = vld [vmem:[#allocation8 + $0x18] sm:$0xf]
      %v3229 = vld [vmem:[#allocation8 + $0x1c] sm:$0xf]
      %3238 = vrot.lane.b32.xlu0 %v3222, 113
      %v3239 = vpop.permute.xlu0 %3238
      %3240 = vrot.lane.b32.xlu0 %v3223, 113
      %v3241 = vpop.permute.xlu0 %3240
      %3242 = vrot.lane.b32.xlu0 %v3224, 113
      %v3243 = vpop.permute.xlu0 %3242
      %3244 = vrot.lane.b32.xlu0 %v3225, 113
      %v3245 = vpop.permute.xlu0 %3244
      %3246 = vrot.lane.b32.xlu0 %v3226, 113
      %v3247 = vpop.permute.xlu0 %3246
      %3248 = vrot.lane.b32.xlu0 %v3227, 113
      %v3249 = vpop.permute.xlu0 %3248
      %3250 = vrot.lane.b32.xlu0 %v3228, 113
      %v3251 = vpop.permute.xlu0 %3250
      %3252 = vrot.lane.b32.xlu0 %v3229, 113
      %v3253 = vpop.permute.xlu0 %3252
      %3262 = vst.msk [vmem:[#allocation13 + $0xe0] sm:$0xf] %vm2277, %v3239
      %3263 = vst.msk [vmem:[#allocation13 + $0xe4] sm:$0xf] %vm2277, %v3241
      %3264 = vst.msk [vmem:[#allocation13 + $0xe8] sm:$0xf] %vm2277, %v3243
      %3265 = vst.msk [vmem:[#allocation13 + $0xec] sm:$0xf] %vm2277, %v3245
      %3266 = vst.msk [vmem:[#allocation13 + $0xf0] sm:$0xf] %vm2277, %v3247
      %3267 = vst.msk [vmem:[#allocation13 + $0xf4] sm:$0xf] %vm2277, %v3249
      %3268 = vst.msk [vmem:[#allocation13 + $0xf8] sm:$0xf] %vm2277, %v3251
      %3269 = vst.msk [vmem:[#allocation13 + $0xfc] sm:$0xf] %vm2277, %v3253
      %v3270 = vld [vmem:[#allocation8] sm:$0xf]
      %v3271 = vld [vmem:[#allocation8 + $0x4] sm:$0xf]
      %v3272 = vld [vmem:[#allocation8 + $0x8] sm:$0xf]
      %v3273 = vld [vmem:[#allocation8 + $0xc] sm:$0xf]
      %v3274 = vld [vmem:[#allocation8 + $0x10] sm:$0xf]
      %v3275 = vld [vmem:[#allocation8 + $0x14] sm:$0xf]
      %v3276 = vld [vmem:[#allocation8 + $0x18] sm:$0xf]
      %v3277 = vld [vmem:[#allocation8 + $0x1c] sm:$0xf]
      %3286 = vrot.lane.b32.xlu0 %v3270, 112
      %v3287 = vpop.permute.xlu0 %3286
      %3288 = vrot.lane.b32.xlu0 %v3271, 112
      %v3289 = vpop.permute.xlu0 %3288
      %3290 = vrot.lane.b32.xlu0 %v3272, 112
      %v3291 = vpop.permute.xlu0 %3290
      %3292 = vrot.lane.b32.xlu0 %v3273, 112
      %v3293 = vpop.permute.xlu0 %3292
      %3294 = vrot.lane.b32.xlu0 %v3274, 112
      %v3295 = vpop.permute.xlu0 %3294
      %3296 = vrot.lane.b32.xlu0 %v3275, 112
      %v3297 = vpop.permute.xlu0 %3296
      %3298 = vrot.lane.b32.xlu0 %v3276, 112
      %v3299 = vpop.permute.xlu0 %3298
      %3300 = vrot.lane.b32.xlu0 %v3277, 112
      %v3301 = vpop.permute.xlu0 %3300
      %3310 = vst.msk [vmem:[#allocation13 + $0x100] sm:$0xf] %vm2277, %v3287
      %3311 = vst.msk [vmem:[#allocation13 + $0x104] sm:$0xf] %vm2277, %v3289
      %3312 = vst.msk [vmem:[#allocation13 + $0x108] sm:$0xf] %vm2277, %v3291
      %3313 = vst.msk [vmem:[#allocation13 + $0x10c] sm:$0xf] %vm2277, %v3293
      %3314 = vst.msk [vmem:[#allocation13 + $0x110] sm:$0xf] %vm2277, %v3295
      %3315 = vst.msk [vmem:[#allocation13 + $0x114] sm:$0xf] %vm2277, %v3297
      %3316 = vst.msk [vmem:[#allocation13 + $0x118] sm:$0xf] %vm2277, %v3299
      %3317 = vst.msk [vmem:[#allocation13 + $0x11c] sm:$0xf] %vm2277, %v3301
      %v3318 = vld [vmem:[%s11] sm:$0xff]
      %v3319 = vld [vmem:[%s11 + $0x8] sm:$0xff]
      %v3320 = vld [vmem:[%s11 + $0x10] sm:$0xf]
      %v3321 = vld [vmem:[%s11 + $0x14] sm:$0xff]
      %v3322 = vld [vmem:[%s11 + $0x1c] sm:$0xff]
      %v3323 = vld [vmem:[%s11 + $0x24] sm:$0xf]
      %v3324 = vld [vmem:[%s11 + $0x28] sm:$0xff]
      %v3325 = vld [vmem:[%s11 + $0x30] sm:$0xff]
      %v3326 = vld [vmem:[%s11 + $0x38] sm:$0xf]
      %v3327 = vld [vmem:[%s11 + $0x3c] sm:$0xff]
      %v3328 = vld [vmem:[%s11 + $0x44] sm:$0xff]
      %v3329 = vld [vmem:[%s11 + $0x4c] sm:$0xf]
      %v3330 = vld [vmem:[%s11 + $0x50] sm:$0xff]
      %v3331 = vld [vmem:[%s11 + $0x58] sm:$0xff]
      %v3332 = vld [vmem:[%s11 + $0x60] sm:$0xf]
      %v3333 = vld [vmem:[%s11 + $0x64] sm:$0xff]
      %v3334 = vld [vmem:[%s11 + $0x6c] sm:$0xff]
      %v3335 = vld [vmem:[%s11 + $0x74] sm:$0xf]
      %v3336 = vld [vmem:[%s11 + $0x78] sm:$0xff]
      %v3337 = vld [vmem:[%s11 + $0x80] sm:$0xff]
      %v3338 = vld [vmem:[%s11 + $0x88] sm:$0xf]
      %v3339 = vld [vmem:[%s11 + $0x8c] sm:$0xff]
      %v3340 = vld [vmem:[%s11 + $0x94] sm:$0xff]
      %v3341 = vld [vmem:[%s11 + $0x9c] sm:$0xf]
      %v3342 = vld [vmem:[#allocation13] sm:$0xf]
      %v3343 = vld [vmem:[#allocation13 + $0x4] sm:$0xf]
      %v3344 = vld [vmem:[#allocation13 + $0x8] sm:$0xf]
      %v3345 = vld [vmem:[#allocation13 + $0xc] sm:$0xf]
      %v3346 = vld [vmem:[#allocation13 + $0x10] sm:$0xf]
      %v3347 = vld [vmem:[#allocation13 + $0x14] sm:$0xf]
      %v3348 = vld [vmem:[#allocation13 + $0x18] sm:$0xf]
      %v3349 = vld [vmem:[#allocation13 + $0x1c] sm:$0xf]
      %v3350 = vld [vmem:[#allocation13 + $0x20] sm:$0xf]
      %v3351 = vld [vmem:[#allocation13 + $0x24] sm:$0xf]
      %v3352 = vld [vmem:[#allocation13 + $0x28] sm:$0xf]
      %v3353 = vld [vmem:[#allocation13 + $0x2c] sm:$0xf]
      %v3354 = vld [vmem:[#allocation13 + $0x30] sm:$0xf]
      %v3355 = vld [vmem:[#allocation13 + $0x34] sm:$0xf]
      %v3356 = vld [vmem:[#allocation13 + $0x38] sm:$0xf]
      %v3357 = vld [vmem:[#allocation13 + $0x3c] sm:$0xf]
      %v3358 = vld [vmem:[#allocation13 + $0x40] sm:$0xf]
      %v3359 = vld [vmem:[#allocation13 + $0x44] sm:$0xf]
      %v3360 = vld [vmem:[#allocation13 + $0x48] sm:$0xf]
      %v3361 = vld [vmem:[#allocation13 + $0x4c] sm:$0xf]
      %v3362 = vld [vmem:[#allocation13 + $0x50] sm:$0xf]
      %v3363 = vld [vmem:[#allocation13 + $0x54] sm:$0xf]
      %v3364 = vld [vmem:[#allocation13 + $0x58] sm:$0xf]
      %v3365 = vld [vmem:[#allocation13 + $0x5c] sm:$0xf]
      %v3366 = vld [vmem:[#allocation13 + $0x60] sm:$0xf]
      %v3367 = vld [vmem:[#allocation13 + $0x64] sm:$0xf]
      %v3368 = vld [vmem:[#allocation13 + $0x68] sm:$0xf]
      %v3369 = vld [vmem:[#allocation13 + $0x6c] sm:$0xf]
      %v3370 = vld [vmem:[#allocation13 + $0x70] sm:$0xf]
      %v3371 = vld [vmem:[#allocation13 + $0x74] sm:$0xf]
      %v3372 = vld [vmem:[#allocation13 + $0x78] sm:$0xf]
      %v3373 = vld [vmem:[#allocation13 + $0x7c] sm:$0xf]
      %v3374 = vld [vmem:[#allocation13 + $0x80] sm:$0xf]
      %v3375 = vld [vmem:[#allocation13 + $0x84] sm:$0xf]
      %v3376 = vld [vmem:[#allocation13 + $0x88] sm:$0xf]
      %v3377 = vld [vmem:[#allocation13 + $0x8c] sm:$0xf]
      %v3378 = vld [vmem:[#allocation13 + $0x90] sm:$0xf]
      %v3379 = vld [vmem:[#allocation13 + $0x94] sm:$0xf]
      %v3380 = vld [vmem:[#allocation13 + $0x98] sm:$0xf]
      %v3381 = vld [vmem:[#allocation13 + $0x9c] sm:$0xf]
      %v3382 = vld [vmem:[#allocation13 + $0xa0] sm:$0xf]
      %v3383 = vld [vmem:[#allocation13 + $0xa4] sm:$0xf]
      %v3384 = vld [vmem:[#allocation13 + $0xa8] sm:$0xf]
      %v3385 = vld [vmem:[#allocation13 + $0xac] sm:$0xf]
      %v3386 = vld [vmem:[#allocation13 + $0xb0] sm:$0xf]
      %v3387 = vld [vmem:[#allocation13 + $0xb4] sm:$0xf]
      %v3388 = vld [vmem:[#allocation13 + $0xb8] sm:$0xf]
      %v3389 = vld [vmem:[#allocation13 + $0xbc] sm:$0xf]
      %v3390 = vld [vmem:[#allocation13 + $0xc0] sm:$0xf]
      %v3391 = vld [vmem:[#allocation13 + $0xc4] sm:$0xf]
      %v3392 = vld [vmem:[#allocation13 + $0xc8] sm:$0xf]
      %v3393 = vld [vmem:[#allocation13 + $0xcc] sm:$0xf]
      %v3394 = vld [vmem:[#allocation13 + $0xd0] sm:$0xf]
      %v3395 = vld [vmem:[#allocation13 + $0xd4] sm:$0xf]
      %v3396 = vld [vmem:[#allocation13 + $0xd8] sm:$0xf]
      %v3397 = vld [vmem:[#allocation13 + $0xdc] sm:$0xf]
      %v3398 = vld [vmem:[#allocation13 + $0xe0] sm:$0xf]
      %v3399 = vld [vmem:[#allocation13 + $0xe4] sm:$0xf]
      %v3400 = vld [vmem:[#allocation13 + $0xe8] sm:$0xf]
      %v3401 = vld [vmem:[#allocation13 + $0xec] sm:$0xf]
      %v3402 = vld [vmem:[#allocation13 + $0xf0] sm:$0xf]
      %v3403 = vld [vmem:[#allocation13 + $0xf4] sm:$0xf]
      %v3404 = vld [vmem:[#allocation13 + $0xf8] sm:$0xf]
      %v3405 = vld [vmem:[#allocation13 + $0xfc] sm:$0xf]
      %v3406 = vld [vmem:[#allocation13 + $0x100] sm:$0xf]
      %v3407 = vld [vmem:[#allocation13 + $0x104] sm:$0xf]
      %v3408 = vld [vmem:[#allocation13 + $0x108] sm:$0xf]
      %v3409 = vld [vmem:[#allocation13 + $0x10c] sm:$0xf]
      %v3410 = vld [vmem:[#allocation13 + $0x110] sm:$0xf]
      %v3411 = vld [vmem:[#allocation13 + $0x114] sm:$0xf]
      %v3412 = vld [vmem:[#allocation13 + $0x118] sm:$0xf]
      %v3413 = vld [vmem:[#allocation13 + $0x11c] sm:$0xf]
      %v3414 = vld [vmem:[%s12] sm:$0xff]
      %v3415 = vld [vmem:[%s12 + $0x8] sm:$0xff]
      %v3416 = vld [vmem:[%s12 + $0x10] sm:$0xff]
      %v3417 = vld [vmem:[%s12 + $0x18] sm:$0xff]
      %v3418 = vld [vmem:[%s12 + $0x20] sm:$0xff]
      %v3419 = vld [vmem:[%s12 + $0x28] sm:$0xff]
      %v3420 = vld [vmem:[%s12 + $0x30] sm:$0xff]
      %v3421 = vld [vmem:[%s12 + $0x38] sm:$0xff]
      %3423 = vset.pattern.permute.xlu0 0
      %3424 = vperm.xlu0 %3423, %v3414
      %v3425 = vpop.permute.xlu0 %3424
      %3428 = vset.pattern.permute.xlu0 0
      %3429 = vperm.xlu0 %3428, %v3415
      %v3430 = vpop.permute.xlu0 %3429
      %3433 = vset.pattern.permute.xlu0 0
      %3434 = vperm.xlu0 %3433, %v3416
      %v3435 = vpop.permute.xlu0 %3434
      %3438 = vset.pattern.permute.xlu0 0
      %3439 = vperm.xlu0 %3438, %v3417
      %v3440 = vpop.permute.xlu0 %3439
      %3443 = vset.pattern.permute.xlu0 0
      %3444 = vperm.xlu0 %3443, %v3418
      %v3445 = vpop.permute.xlu0 %3444
      %3448 = vset.pattern.permute.xlu0 0
      %3449 = vperm.xlu0 %3448, %v3419
      %v3450 = vpop.permute.xlu0 %3449
      %3453 = vset.pattern.permute.xlu0 0
      %3454 = vperm.xlu0 %3453, %v3420
      %v3455 = vpop.permute.xlu0 %3454
      %3458 = vset.pattern.permute.xlu0 0
      %3459 = vperm.xlu0 %3458, %v3421
      %v3460 = vpop.permute.xlu0 %3459
      %v3486 = vunpack.c.l.b16 %v3318
      %v3487 = vunpack.c.h.b16 %v3318
      %v3488 = vunpack.c.l.b16 %v3319
      %v3489 = vunpack.c.h.b16 %v3319
      %v3490 = vunpack.c.l.b16 %v3320
      %v3491 = vunpack.c.l.b16 %v3321
      %v3492 = vunpack.c.h.b16 %v3321
      %v3493 = vunpack.c.l.b16 %v3322
      %v3494 = vunpack.c.h.b16 %v3322
      %v3495 = vunpack.c.l.b16 %v3323
      %v3496 = vunpack.c.l.b16 %v3324
      %v3497 = vunpack.c.h.b16 %v3324
      %v3498 = vunpack.c.l.b16 %v3325
      %v3499 = vunpack.c.h.b16 %v3325
      %v3500 = vunpack.c.l.b16 %v3326
      %v3501 = vunpack.c.l.b16 %v3327
      %v3502 = vunpack.c.h.b16 %v3327
      %v3503 = vunpack.c.l.b16 %v3328
      %v3504 = vunpack.c.h.b16 %v3328
      %v3505 = vunpack.c.l.b16 %v3329
      %v3506 = vunpack.c.l.b16 %v3330
      %v3507 = vunpack.c.h.b16 %v3330
      %v3508 = vunpack.c.l.b16 %v3331
      %v3509 = vunpack.c.h.b16 %v3331
      %v3510 = vunpack.c.l.b16 %v3332
      %v3511 = vunpack.c.l.b16 %v3333
      %v3512 = vunpack.c.h.b16 %v3333
      %v3513 = vunpack.c.l.b16 %v3334
      %v3514 = vunpack.c.h.b16 %v3334
      %v3515 = vunpack.c.l.b16 %v3335
      %v3516 = vunpack.c.l.b16 %v3336
      %v3517 = vunpack.c.h.b16 %v3336
      %v3518 = vunpack.c.l.b16 %v3337
      %v3519 = vunpack.c.h.b16 %v3337
      %v3520 = vunpack.c.l.b16 %v3338
      %v3521 = vunpack.c.l.b16 %v3339
      %v3522 = vunpack.c.h.b16 %v3339
      %v3523 = vunpack.c.l.b16 %v3340
      %v3524 = vunpack.c.h.b16 %v3340
      %v3525 = vunpack.c.l.b16 %v3341
      %v3526 = vpack.c.b16 %v3491, %v3486
      %v3527 = vpack.c.b16 %v3492, %v3487
      %v3528 = vpack.c.b16 %v3493, %v3488
      %v3529 = vpack.c.b16 %v3494, %v3489
      %v3530 = vpack.c.b16 %v3495, %v3490
      %v3531 = vpack.c.b16 %v3501, %v3496
      %v3532 = vpack.c.b16 %v3502, %v3497
      %v3533 = vpack.c.b16 %v3503, %v3498
      %v3534 = vpack.c.b16 %v3504, %v3499
      %v3535 = vpack.c.b16 %v3505, %v3500
      %v3536 = vpack.c.b16 %v3511, %v3506
      %v3537 = vpack.c.b16 %v3512, %v3507
      %v3538 = vpack.c.b16 %v3513, %v3508
      %v3539 = vpack.c.b16 %v3514, %v3509
      %v3540 = vpack.c.b16 %v3515, %v3510
      %v3541 = vpack.c.b16 %v3521, %v3516
      %v3542 = vpack.c.b16 %v3522, %v3517
      %v3543 = vpack.c.b16 %v3523, %v3518
      %v3544 = vpack.c.b16 %v3524, %v3519
      %v3545 = vpack.c.b16 %v3525, %v3520
      %v3634 = vunpack.c.l.b16 %v3342
      %v3635 = vunpack.c.l.b16 %v3343
      %v3636 = vunpack.c.l.b16 %v3344
      %v3637 = vunpack.c.l.b16 %v3345
      %v3638 = vunpack.c.l.b16 %v3346
      %v3639 = vunpack.c.l.b16 %v3347
      %v3640 = vunpack.c.l.b16 %v3348
      %v3641 = vunpack.c.l.b16 %v3349
      %v3642 = vunpack.c.l.b16 %v3350
      %v3643 = vunpack.c.l.b16 %v3351
      %v3644 = vunpack.c.l.b16 %v3352
      %v3645 = vunpack.c.l.b16 %v3353
      %v3646 = vunpack.c.l.b16 %v3354
      %v3647 = vunpack.c.l.b16 %v3355
      %v3648 = vunpack.c.l.b16 %v3356
      %v3649 = vunpack.c.l.b16 %v3357
      %v3650 = vunpack.c.l.b16 %v3358
      %v3651 = vunpack.c.l.b16 %v3359
      %v3652 = vunpack.c.l.b16 %v3360
      %v3653 = vunpack.c.l.b16 %v3361
      %v3654 = vunpack.c.l.b16 %v3362
      %v3655 = vunpack.c.l.b16 %v3363
      %v3656 = vunpack.c.l.b16 %v3364
      %v3657 = vunpack.c.l.b16 %v3365
      %v3658 = vunpack.c.l.b16 %v3366
      %v3659 = vunpack.c.l.b16 %v3367
      %v3660 = vunpack.c.l.b16 %v3368
      %v3661 = vunpack.c.l.b16 %v3369
      %v3662 = vunpack.c.l.b16 %v3370
      %v3663 = vunpack.c.l.b16 %v3371
      %v3664 = vunpack.c.l.b16 %v3372
      %v3665 = vunpack.c.l.b16 %v3373
      %v3666 = vunpack.c.l.b16 %v3374
      %v3667 = vunpack.c.l.b16 %v3375
      %v3668 = vunpack.c.l.b16 %v3376
      %v3669 = vunpack.c.l.b16 %v3377
      %v3670 = vunpack.c.l.b16 %v3378
      %v3671 = vunpack.c.l.b16 %v3379
      %v3672 = vunpack.c.l.b16 %v3380
      %v3673 = vunpack.c.l.b16 %v3381
      %v3674 = vunpack.c.l.b16 %v3382
      %v3675 = vunpack.c.l.b16 %v3383
      %v3676 = vunpack.c.l.b16 %v3384
      %v3677 = vunpack.c.l.b16 %v3385
      %v3678 = vunpack.c.l.b16 %v3386
      %v3679 = vunpack.c.l.b16 %v3387
      %v3680 = vunpack.c.l.b16 %v3388
      %v3681 = vunpack.c.l.b16 %v3389
      %v3682 = vunpack.c.l.b16 %v3390
      %v3683 = vunpack.c.l.b16 %v3391
      %v3684 = vunpack.c.l.b16 %v3392
      %v3685 = vunpack.c.l.b16 %v3393
      %v3686 = vunpack.c.l.b16 %v3394
      %v3687 = vunpack.c.l.b16 %v3395
      %v3688 = vunpack.c.l.b16 %v3396
      %v3689 = vunpack.c.l.b16 %v3397
      %v3690 = vunpack.c.l.b16 %v3398
      %v3691 = vunpack.c.l.b16 %v3399
      %v3692 = vunpack.c.l.b16 %v3400
      %v3693 = vunpack.c.l.b16 %v3401
      %v3694 = vunpack.c.l.b16 %v3402
      %v3695 = vunpack.c.l.b16 %v3403
      %v3696 = vunpack.c.l.b16 %v3404
      %v3697 = vunpack.c.l.b16 %v3405
      %v3698 = vunpack.c.l.b16 %v3406
      %v3699 = vunpack.c.l.b16 %v3407
      %v3700 = vunpack.c.l.b16 %v3408
      %v3701 = vunpack.c.l.b16 %v3409
      %v3702 = vunpack.c.l.b16 %v3410
      %v3703 = vunpack.c.l.b16 %v3411
      %v3704 = vunpack.c.l.b16 %v3412
      %v3705 = vunpack.c.l.b16 %v3413
      %v3706 = vpack.c.b16 %v3635, %v3634
      %v3707 = vpack.c.b16 %v3637, %v3636
      %v3708 = vpack.c.b16 %v3639, %v3638
      %v3709 = vpack.c.b16 %v3641, %v3640
      %v3710 = vpack.c.b16 %v3643, %v3642
      %v3711 = vpack.c.b16 %v3645, %v3644
      %v3712 = vpack.c.b16 %v3647, %v3646
      %v3713 = vpack.c.b16 %v3649, %v3648
      %v3714 = vpack.c.b16 %v3651, %v3650
      %v3715 = vpack.c.b16 %v3653, %v3652
      %v3716 = vpack.c.b16 %v3655, %v3654
      %v3717 = vpack.c.b16 %v3657, %v3656
      %v3718 = vpack.c.b16 %v3659, %v3658
      %v3719 = vpack.c.b16 %v3661, %v3660
      %v3720 = vpack.c.b16 %v3663, %v3662
      %v3721 = vpack.c.b16 %v3665, %v3664
      %v3722 = vpack.c.b16 %v3667, %v3666
      %v3723 = vpack.c.b16 %v3669, %v3668
      %v3724 = vpack.c.b16 %v3671, %v3670
      %v3725 = vpack.c.b16 %v3673, %v3672
      %v3726 = vpack.c.b16 %v3675, %v3674
      %v3727 = vpack.c.b16 %v3677, %v3676
      %v3728 = vpack.c.b16 %v3679, %v3678
      %v3729 = vpack.c.b16 %v3681, %v3680
      %v3730 = vpack.c.b16 %v3683, %v3682
      %v3731 = vpack.c.b16 %v3685, %v3684
      %v3732 = vpack.c.b16 %v3687, %v3686
      %v3733 = vpack.c.b16 %v3689, %v3688
      %v3734 = vpack.c.b16 %v3691, %v3690
      %v3735 = vpack.c.b16 %v3693, %v3692
      %v3736 = vpack.c.b16 %v3695, %v3694
      %v3737 = vpack.c.b16 %v3697, %v3696
      %v3738 = vpack.c.b16 %v3699, %v3698
      %v3739 = vpack.c.b16 %v3701, %v3700
      %v3740 = vpack.c.b16 %v3703, %v3702
      %v3741 = vpack.c.b16 %v3705, %v3704
      %vm3778 = vcmask 523264
      %v3780 = vsel %vm3778, %v3530, 0
      %v3783 = vsel %vm3778, %v3535, 0
      %v3786 = vsel %vm3778, %v3540, 0
      %v3789 = vsel %vm3778, %v3545, 0
      %3791 = vmatpush.bf16.msra.mxu0 %v3713
      %3792 = vmatpush.bf16.msra.mxu0 %v3712
      %3793 = vmatpush.bf16.msra.mxu0 %v3711
      %3794 = vmatpush.bf16.msra.mxu0 %v3710
      %3795 = vmatpush.bf16.msra.mxu0 %v3709
      %3796 = vmatpush.bf16.msra.mxu0 %v3708
      %3797 = vmatpush.bf16.msra.mxu0 %v3707
      %3798 = vmatpush.bf16.msra.mxu0 %v3706
      %3799 = vmatmul.bf16.gmra.mxu0 %v3526
      %v3800 = vpop.f32.mrf.mxu0
      %v3801 = vadd.f32 %v3425, %v3800
      %v3802 = vpop.f32.mrf.mxu0
      %v3803 = vadd.f32 %v3430, %v3802
      %3804 = vmatmul.bf16.gmra.mxu0 %v3531
      %v3805 = vpop.f32.mrf.mxu0
      %v3806 = vadd.f32 %v3435, %v3805
      %v3807 = vpop.f32.mrf.mxu0
      %v3808 = vadd.f32 %v3440, %v3807
      %3809 = vmatmul.bf16.gmra.mxu0 %v3536
      %v3810 = vpop.f32.mrf.mxu0
      %v3811 = vadd.f32 %v3445, %v3810
      %v3812 = vpop.f32.mrf.mxu0
      %v3813 = vadd.f32 %v3450, %v3812
      %3814 = vmatmul.bf16.gmra.mxu0 %v3541
      %v3815 = vpop.f32.mrf.mxu0
      %v3816 = vadd.f32 %v3455, %v3815
      %v3817 = vpop.f32.mrf.mxu0
      %v3818 = vadd.f32 %v3460, %v3817
      %3819 = vdwg.mxu0
      %3820 = vmatpush.bf16.msra.mxu0 %v3721
      %3821 = vmatpush.bf16.msra.mxu0 %v3720
      %3822 = vmatpush.bf16.msra.mxu0 %v3719
      %3823 = vmatpush.bf16.msra.mxu0 %v3718
      %3824 = vmatpush.bf16.msra.mxu0 %v3717
      %3825 = vmatpush.bf16.msra.mxu0 %v3716
      %3826 = vmatpush.bf16.msra.mxu0 %v3715
      %3827 = vmatpush.bf16.msra.mxu0 %v3714
      %3828 = vmatmul.bf16.gmra.mxu0 %v3527
      %v3829 = vpop.f32.mrf.mxu0
      %v3830 = vadd.f32 %v3801, %v3829
      %v3831 = vpop.f32.mrf.mxu0
      %v3832 = vadd.f32 %v3803, %v3831
      %3833 = vmatmul.bf16.gmra.mxu0 %v3532
      %v3834 = vpop.f32.mrf.mxu0
      %v3835 = vadd.f32 %v3806, %v3834
      %v3836 = vpop.f32.mrf.mxu0
      %v3837 = vadd.f32 %v3808, %v3836
      %3838 = vmatmul.bf16.gmra.mxu0 %v3537
      %v3839 = vpop.f32.mrf.mxu0
      %v3840 = vadd.f32 %v3811, %v3839
      %v3841 = vpop.f32.mrf.mxu0
      %v3842 = vadd.f32 %v3813, %v3841
      %3843 = vmatmul.bf16.gmra.mxu0 %v3542
      %v3844 = vpop.f32.mrf.mxu0
      %v3845 = vadd.f32 %v3816, %v3844
      %v3846 = vpop.f32.mrf.mxu0
      %v3847 = vadd.f32 %v3818, %v3846
      %3848 = vdwg.mxu0
      %3849 = vmatpush.bf16.msra.mxu0 %v3729
      %3850 = vmatpush.bf16.msra.mxu0 %v3728
      %3851 = vmatpush.bf16.msra.mxu0 %v3727
      %3852 = vmatpush.bf16.msra.mxu0 %v3726
      %3853 = vmatpush.bf16.msra.mxu0 %v3725
      %3854 = vmatpush.bf16.msra.mxu0 %v3724
      %3855 = vmatpush.bf16.msra.mxu0 %v3723
      %3856 = vmatpush.bf16.msra.mxu0 %v3722
      %3857 = vmatmul.bf16.gmra.mxu0 %v3528
      %v3858 = vpop.f32.mrf.mxu0
      %v3859 = vadd.f32 %v3830, %v3858
      %v3860 = vpop.f32.mrf.mxu0
      %v3861 = vadd.f32 %v3832, %v3860
      %3862 = vmatmul.bf16.gmra.mxu0 %v3533
      %v3863 = vpop.f32.mrf.mxu0
      %v3864 = vadd.f32 %v3835, %v3863
      %v3865 = vpop.f32.mrf.mxu0
      %v3866 = vadd.f32 %v3837, %v3865
      %3867 = vmatmul.bf16.gmra.mxu0 %v3538
      %v3868 = vpop.f32.mrf.mxu0
      %v3869 = vadd.f32 %v3840, %v3868
      %v3870 = vpop.f32.mrf.mxu0
      %v3871 = vadd.f32 %v3842, %v3870
      %3872 = vmatmul.bf16.gmra.mxu0 %v3543
      %v3873 = vpop.f32.mrf.mxu0
      %v3874 = vadd.f32 %v3845, %v3873
      %v3875 = vpop.f32.mrf.mxu0
      %v3876 = vadd.f32 %v3847, %v3875
      %3877 = vdwg.mxu0
      %3878 = vmatpush.bf16.msra.mxu0 %v3737
      %3879 = vmatpush.bf16.msra.mxu0 %v3736
      %3880 = vmatpush.bf16.msra.mxu0 %v3735
      %3881 = vmatpush.bf16.msra.mxu0 %v3734
      %3882 = vmatpush.bf16.msra.mxu0 %v3733
      %3883 = vmatpush.bf16.msra.mxu0 %v3732
      %3884 = vmatpush.bf16.msra.mxu0 %v3731
      %3885 = vmatpush.bf16.msra.mxu0 %v3730
      %3886 = vmatmul.bf16.gmra.mxu0 %v3529
      %v3887 = vpop.f32.mrf.mxu0
      %v3888 = vadd.f32 %v3859, %v3887
      %v3889 = vpop.f32.mrf.mxu0
      %v3890 = vadd.f32 %v3861, %v3889
      %3891 = vmatmul.bf16.gmra.mxu0 %v3534
      %v3892 = vpop.f32.mrf.mxu0
      %v3893 = vadd.f32 %v3864, %v3892
      %v3894 = vpop.f32.mrf.mxu0
      %v3895 = vadd.f32 %v3866, %v3894
      %3896 = vmatmul.bf16.gmra.mxu0 %v3539
      %v3897 = vpop.f32.mrf.mxu0
      %v3898 = vadd.f32 %v3869, %v3897
      %v3899 = vpop.f32.mrf.mxu0
      %v3900 = vadd.f32 %v3871, %v3899
      %3901 = vmatmul.bf16.gmra.mxu0 %v3544
      %v3902 = vpop.f32.mrf.mxu0
      %v3903 = vadd.f32 %v3874, %v3902
      %v3904 = vpop.f32.mrf.mxu0
      %v3905 = vadd.f32 %v3876, %v3904
      %3906 = vdwg.mxu0
      %3907 = vmatpush.bf16.msra.mxu0 0
      %3908 = vmatpush.bf16.msra.mxu0 0
      %3909 = vmatpush.bf16.msra.mxu0 0
      %3910 = vmatpush.bf16.msra.mxu0 0
      %3911 = vmatpush.bf16.msra.mxu0 %v3741
      %3912 = vmatpush.bf16.msra.mxu0 %v3740
      %3913 = vmatpush.bf16.msra.mxu0 %v3739
      %3914 = vmatpush.bf16.msra.mxu0 %v3738
      %3915 = vmatmul.bf16.gmra.mxu0 %v3780
      %v3916 = vpop.f32.mrf.mxu0
      %v3917 = vadd.f32 %v3888, %v3916
      %v3918 = vpop.f32.mrf.mxu0
      %v3919 = vadd.f32 %v3890, %v3918
      %3920 = vmatmul.bf16.gmra.mxu0 %v3783
      %v3921 = vpop.f32.mrf.mxu0
      %v3922 = vadd.f32 %v3893, %v3921
      %v3923 = vpop.f32.mrf.mxu0
      %v3924 = vadd.f32 %v3895, %v3923
      %3925 = vmatmul.bf16.gmra.mxu0 %v3786
      %v3926 = vpop.f32.mrf.mxu0
      %v3927 = vadd.f32 %v3898, %v3926
      %v3928 = vpop.f32.mrf.mxu0
      %v3929 = vadd.f32 %v3900, %v3928
      %3930 = vmatmul.bf16.gmra.mxu0 %v3789
      %v3931 = vpop.f32.mrf.mxu0
      %v3932 = vadd.f32 %v3903, %v3931
      %v3933 = vpop.f32.mrf.mxu0
      %v3934 = vadd.f32 %v3905, %v3933
      %3935 = vdwg.mxu0
      %v3936 = vmax.f32 %v3917, 0.0
      %v3937 = vmax.f32 %v3919, 0.0
      %v3938 = vmax.f32 %v3922, 0.0
      %v3939 = vmax.f32 %v3924, 0.0
      %v3940 = vmax.f32 %v3927, 0.0
      %v3941 = vmax.f32 %v3929, 0.0
      %v3942 = vmax.f32 %v3932, 0.0
      %v3943 = vmax.f32 %v3934, 0.0
      %v3944 = vld [vmem:[%s17] sm:$0x1]
      %v3946 = vperm.slane %v3944, 0
      %v3948 = vmul.f32 %v3936, %v3946
      %v3949 = vmul.f32 %v3937, %v3946
      %v3950 = vmul.f32 %v3938, %v3946
      %v3951 = vmul.f32 %v3939, %v3946
      %v3952 = vmul.f32 %v3940, %v3946
      %v3953 = vmul.f32 %v3941, %v3946
      %v3954 = vmul.f32 %v3942, %v3946
      %v3955 = vmul.f32 %v3943, %v3946
      %3956 = vst.msk [vmem:[#allocation9] sm:$0xf] %vm1283, 0
      %3957 = vst.msk [vmem:[#allocation9 + $0x4] sm:$0xf] %vm1283, 0
      %3958 = vst.msk [vmem:[#allocation9 + $0x8] sm:$0xf] %vm1283, 0
      %3959 = vst.msk [vmem:[#allocation9 + $0xc] sm:$0xf] %vm1283, 0
      %3960 = vst.msk [vmem:[#allocation9 + $0x10] sm:$0xf] %vm1283, 0
      %3961 = vst.msk [vmem:[#allocation9 + $0x14] sm:$0xf] %vm1283, 0
      %3962 = vst.msk [vmem:[#allocation9 + $0x18] sm:$0xf] %vm1283, 0
      %3963 = vst.msk [vmem:[#allocation9 + $0x1c] sm:$0xf] %vm1283, 0
      %v3964 = vpack.c.bf16 %v3948, %v3948
      %v3965 = vpack.c.bf16 %v3949, %v3949
      %v3966 = vpack.c.bf16 %v3950, %v3950
      %v3967 = vpack.c.bf16 %v3951, %v3951
      %v3968 = vpack.c.bf16 %v3952, %v3952
      %v3969 = vpack.c.bf16 %v3953, %v3953
      %v3970 = vpack.c.bf16 %v3954, %v3954
      %v3971 = vpack.c.bf16 %v3955, %v3955
      %3980 = vrot.lane.b32.xlu0 %v3964, 8
      %v3981 = vpop.permute.xlu0 %3980
      %3982 = vrot.lane.b32.xlu0 %v3965, 8
      %v3983 = vpop.permute.xlu0 %3982
      %3984 = vrot.lane.b32.xlu0 %v3966, 8
      %v3985 = vpop.permute.xlu0 %3984
      %3986 = vrot.lane.b32.xlu0 %v3967, 8
      %v3987 = vpop.permute.xlu0 %3986
      %3988 = vrot.lane.b32.xlu0 %v3968, 8
      %v3989 = vpop.permute.xlu0 %3988
      %3990 = vrot.lane.b32.xlu0 %v3969, 8
      %v3991 = vpop.permute.xlu0 %3990
      %3992 = vrot.lane.b32.xlu0 %v3970, 8
      %v3993 = vpop.permute.xlu0 %3992
      %3994 = vrot.lane.b32.xlu0 %v3971, 8
      %v3995 = vpop.permute.xlu0 %3994
      %4004 = vst.msk [vmem:[#allocation9] sm:$0xf] %vm2909, %v3981
      %4005 = vst.msk [vmem:[#allocation9 + $0x4] sm:$0xf] %vm2909, %v3983
      %4006 = vst.msk [vmem:[#allocation9 + $0x8] sm:$0xf] %vm2909, %v3985
      %4007 = vst.msk [vmem:[#allocation9 + $0xc] sm:$0xf] %vm2909, %v3987
      %4008 = vst.msk [vmem:[#allocation9 + $0x10] sm:$0xf] %vm2909, %v3989
      %4009 = vst.msk [vmem:[#allocation9 + $0x14] sm:$0xf] %vm2909, %v3991
      %4010 = vst.msk [vmem:[#allocation9 + $0x18] sm:$0xf] %vm2909, %v3993
      %4011 = vst.msk [vmem:[#allocation9 + $0x1c] sm:$0xf] %vm2909, %v3995
      %v4012 = vld [vmem:[#allocation9] sm:$0xf]
      %v4013 = vld [vmem:[#allocation9 + $0x4] sm:$0xf]
      %v4014 = vld [vmem:[#allocation9 + $0x8] sm:$0xf]
      %v4015 = vld [vmem:[#allocation9 + $0xc] sm:$0xf]
      %v4016 = vld [vmem:[#allocation9 + $0x10] sm:$0xf]
      %v4017 = vld [vmem:[#allocation9 + $0x14] sm:$0xf]
      %v4018 = vld [vmem:[#allocation9 + $0x18] sm:$0xf]
      %v4019 = vld [vmem:[#allocation9 + $0x1c] sm:$0xf]
      %4020 = vst.msk [vmem:[#allocation13] sm:$0xf] %vm2277, %v4012
      %4021 = vst.msk [vmem:[#allocation13 + $0x4] sm:$0xf] %vm2277, %v4013
      %4022 = vst.msk [vmem:[#allocation13 + $0x8] sm:$0xf] %vm2277, %v4014
      %4023 = vst.msk [vmem:[#allocation13 + $0xc] sm:$0xf] %vm2277, %v4015
      %4024 = vst.msk [vmem:[#allocation13 + $0x10] sm:$0xf] %vm2277, %v4016
      %4025 = vst.msk [vmem:[#allocation13 + $0x14] sm:$0xf] %vm2277, %v4017
      %4026 = vst.msk [vmem:[#allocation13 + $0x18] sm:$0xf] %vm2277, %v4018
      %4027 = vst.msk [vmem:[#allocation13 + $0x1c] sm:$0xf] %vm2277, %v4019
      %v4028 = vld [vmem:[#allocation9] sm:$0xf]
      %v4029 = vld [vmem:[#allocation9 + $0x4] sm:$0xf]
      %v4030 = vld [vmem:[#allocation9 + $0x8] sm:$0xf]
      %v4031 = vld [vmem:[#allocation9 + $0xc] sm:$0xf]
      %v4032 = vld [vmem:[#allocation9 + $0x10] sm:$0xf]
      %v4033 = vld [vmem:[#allocation9 + $0x14] sm:$0xf]
      %v4034 = vld [vmem:[#allocation9 + $0x18] sm:$0xf]
      %v4035 = vld [vmem:[#allocation9 + $0x1c] sm:$0xf]
      %4044 = vrot.lane.b32.xlu0 %v4028, 127
      %v4045 = vpop.permute.xlu0 %4044
      %4046 = vrot.lane.b32.xlu0 %v4029, 127
      %v4047 = vpop.permute.xlu0 %4046
      %4048 = vrot.lane.b32.xlu0 %v4030, 127
      %v4049 = vpop.permute.xlu0 %4048
      %4050 = vrot.lane.b32.xlu0 %v4031, 127
      %v4051 = vpop.permute.xlu0 %4050
      %4052 = vrot.lane.b32.xlu0 %v4032, 127
      %v4053 = vpop.permute.xlu0 %4052
      %4054 = vrot.lane.b32.xlu0 %v4033, 127
      %v4055 = vpop.permute.xlu0 %4054
      %4056 = vrot.lane.b32.xlu0 %v4034, 127
      %v4057 = vpop.permute.xlu0 %4056
      %4058 = vrot.lane.b32.xlu0 %v4035, 127
      %v4059 = vpop.permute.xlu0 %4058
      %4068 = vst.msk [vmem:[#allocation13 + $0x20] sm:$0xf] %vm2277, %v4045
      %4069 = vst.msk [vmem:[#allocation13 + $0x24] sm:$0xf] %vm2277, %v4047
      %4070 = vst.msk [vmem:[#allocation13 + $0x28] sm:$0xf] %vm2277, %v4049
      %4071 = vst.msk [vmem:[#allocation13 + $0x2c] sm:$0xf] %vm2277, %v4051
      %4072 = vst.msk [vmem:[#allocation13 + $0x30] sm:$0xf] %vm2277, %v4053
      %4073 = vst.msk [vmem:[#allocation13 + $0x34] sm:$0xf] %vm2277, %v4055
      %4074 = vst.msk [vmem:[#allocation13 + $0x38] sm:$0xf] %vm2277, %v4057
      %4075 = vst.msk [vmem:[#allocation13 + $0x3c] sm:$0xf] %vm2277, %v4059
      %v4076 = vld [vmem:[#allocation9] sm:$0xf]
      %v4077 = vld [vmem:[#allocation9 + $0x4] sm:$0xf]
      %v4078 = vld [vmem:[#allocation9 + $0x8] sm:$0xf]
      %v4079 = vld [vmem:[#allocation9 + $0xc] sm:$0xf]
      %v4080 = vld [vmem:[#allocation9 + $0x10] sm:$0xf]
      %v4081 = vld [vmem:[#allocation9 + $0x14] sm:$0xf]
      %v4082 = vld [vmem:[#allocation9 + $0x18] sm:$0xf]
      %v4083 = vld [vmem:[#allocation9 + $0x1c] sm:$0xf]
      %4092 = vrot.lane.b32.xlu0 %v4076, 126
      %v4093 = vpop.permute.xlu0 %4092
      %4094 = vrot.lane.b32.xlu0 %v4077, 126
      %v4095 = vpop.permute.xlu0 %4094
      %4096 = vrot.lane.b32.xlu0 %v4078, 126
      %v4097 = vpop.permute.xlu0 %4096
      %4098 = vrot.lane.b32.xlu0 %v4079, 126
      %v4099 = vpop.permute.xlu0 %4098
      %4100 = vrot.lane.b32.xlu0 %v4080, 126
      %v4101 = vpop.permute.xlu0 %4100
      %4102 = vrot.lane.b32.xlu0 %v4081, 126
      %v4103 = vpop.permute.xlu0 %4102
      %4104 = vrot.lane.b32.xlu0 %v4082, 126
      %v4105 = vpop.permute.xlu0 %4104
      %4106 = vrot.lane.b32.xlu0 %v4083, 126
      %v4107 = vpop.permute.xlu0 %4106
      %4116 = vst.msk [vmem:[#allocation13 + $0x40] sm:$0xf] %vm2277, %v4093
      %4117 = vst.msk [vmem:[#allocation13 + $0x44] sm:$0xf] %vm2277, %v4095
      %4118 = vst.msk [vmem:[#allocation13 + $0x48] sm:$0xf] %vm2277, %v4097
      %4119 = vst.msk [vmem:[#allocation13 + $0x4c] sm:$0xf] %vm2277, %v4099
      %4120 = vst.msk [vmem:[#allocation13 + $0x50] sm:$0xf] %vm2277, %v4101
      %4121 = vst.msk [vmem:[#allocation13 + $0x54] sm:$0xf] %vm2277, %v4103
      %4122 = vst.msk [vmem:[#allocation13 + $0x58] sm:$0xf] %vm2277, %v4105
      %4123 = vst.msk [vmem:[#allocation13 + $0x5c] sm:$0xf] %vm2277, %v4107
      %v4124 = vld [vmem:[#allocation9] sm:$0xf]
      %v4125 = vld [vmem:[#allocation9 + $0x4] sm:$0xf]
      %v4126 = vld [vmem:[#allocation9 + $0x8] sm:$0xf]
      %v4127 = vld [vmem:[#allocation9 + $0xc] sm:$0xf]
      %v4128 = vld [vmem:[#allocation9 + $0x10] sm:$0xf]
      %v4129 = vld [vmem:[#allocation9 + $0x14] sm:$0xf]
      %v4130 = vld [vmem:[#allocation9 + $0x18] sm:$0xf]
      %v4131 = vld [vmem:[#allocation9 + $0x1c] sm:$0xf]
      %4140 = vrot.lane.b32.xlu0 %v4124, 121
      %v4141 = vpop.permute.xlu0 %4140
      %4142 = vrot.lane.b32.xlu0 %v4125, 121
      %v4143 = vpop.permute.xlu0 %4142
      %4144 = vrot.lane.b32.xlu0 %v4126, 121
      %v4145 = vpop.permute.xlu0 %4144
      %4146 = vrot.lane.b32.xlu0 %v4127, 121
      %v4147 = vpop.permute.xlu0 %4146
      %4148 = vrot.lane.b32.xlu0 %v4128, 121
      %v4149 = vpop.permute.xlu0 %4148
      %4150 = vrot.lane.b32.xlu0 %v4129, 121
      %v4151 = vpop.permute.xlu0 %4150
      %4152 = vrot.lane.b32.xlu0 %v4130, 121
      %v4153 = vpop.permute.xlu0 %4152
      %4154 = vrot.lane.b32.xlu0 %v4131, 121
      %v4155 = vpop.permute.xlu0 %4154
      %4164 = vst.msk [vmem:[#allocation13 + $0x60] sm:$0xf] %vm2277, %v4141
      %4165 = vst.msk [vmem:[#allocation13 + $0x64] sm:$0xf] %vm2277, %v4143
      %4166 = vst.msk [vmem:[#allocation13 + $0x68] sm:$0xf] %vm2277, %v4145
      %4167 = vst.msk [vmem:[#allocation13 + $0x6c] sm:$0xf] %vm2277, %v4147
      %4168 = vst.msk [vmem:[#allocation13 + $0x70] sm:$0xf] %vm2277, %v4149
      %4169 = vst.msk [vmem:[#allocation13 + $0x74] sm:$0xf] %vm2277, %v4151
      %4170 = vst.msk [vmem:[#allocation13 + $0x78] sm:$0xf] %vm2277, %v4153
      %4171 = vst.msk [vmem:[#allocation13 + $0x7c] sm:$0xf] %vm2277, %v4155
      %v4172 = vld [vmem:[#allocation9] sm:$0xf]
      %v4173 = vld [vmem:[#allocation9 + $0x4] sm:$0xf]
      %v4174 = vld [vmem:[#allocation9 + $0x8] sm:$0xf]
      %v4175 = vld [vmem:[#allocation9 + $0xc] sm:$0xf]
      %v4176 = vld [vmem:[#allocation9 + $0x10] sm:$0xf]
      %v4177 = vld [vmem:[#allocation9 + $0x14] sm:$0xf]
      %v4178 = vld [vmem:[#allocation9 + $0x18] sm:$0xf]
      %v4179 = vld [vmem:[#allocation9 + $0x1c] sm:$0xf]
      %4188 = vrot.lane.b32.xlu0 %v4172, 120
      %v4189 = vpop.permute.xlu0 %4188
      %4190 = vrot.lane.b32.xlu0 %v4173, 120
      %v4191 = vpop.permute.xlu0 %4190
      %4192 = vrot.lane.b32.xlu0 %v4174, 120
      %v4193 = vpop.permute.xlu0 %4192
      %4194 = vrot.lane.b32.xlu0 %v4175, 120
      %v4195 = vpop.permute.xlu0 %4194
      %4196 = vrot.lane.b32.xlu0 %v4176, 120
      %v4197 = vpop.permute.xlu0 %4196
      %4198 = vrot.lane.b32.xlu0 %v4177, 120
      %v4199 = vpop.permute.xlu0 %4198
      %4200 = vrot.lane.b32.xlu0 %v4178, 120
      %v4201 = vpop.permute.xlu0 %4200
      %4202 = vrot.lane.b32.xlu0 %v4179, 120
      %v4203 = vpop.permute.xlu0 %4202
      %4212 = vst.msk [vmem:[#allocation13 + $0x80] sm:$0xf] %vm2277, %v4189
      %4213 = vst.msk [vmem:[#allocation13 + $0x84] sm:$0xf] %vm2277, %v4191
      %4214 = vst.msk [vmem:[#allocation13 + $0x88] sm:$0xf] %vm2277, %v4193
      %4215 = vst.msk [vmem:[#allocation13 + $0x8c] sm:$0xf] %vm2277, %v4195
      %4216 = vst.msk [vmem:[#allocation13 + $0x90] sm:$0xf] %vm2277, %v4197
      %4217 = vst.msk [vmem:[#allocation13 + $0x94] sm:$0xf] %vm2277, %v4199
      %4218 = vst.msk [vmem:[#allocation13 + $0x98] sm:$0xf] %vm2277, %v4201
      %4219 = vst.msk [vmem:[#allocation13 + $0x9c] sm:$0xf] %vm2277, %v4203
      %v4220 = vld [vmem:[#allocation9] sm:$0xf]
      %v4221 = vld [vmem:[#allocation9 + $0x4] sm:$0xf]
      %v4222 = vld [vmem:[#allocation9 + $0x8] sm:$0xf]
      %v4223 = vld [vmem:[#allocation9 + $0xc] sm:$0xf]
      %v4224 = vld [vmem:[#allocation9 + $0x10] sm:$0xf]
      %v4225 = vld [vmem:[#allocation9 + $0x14] sm:$0xf]
      %v4226 = vld [vmem:[#allocation9 + $0x18] sm:$0xf]
      %v4227 = vld [vmem:[#allocation9 + $0x1c] sm:$0xf]
      %4236 = vrot.lane.b32.xlu0 %v4220, 119
      %v4237 = vpop.permute.xlu0 %4236
      %4238 = vrot.lane.b32.xlu0 %v4221, 119
      %v4239 = vpop.permute.xlu0 %4238
      %4240 = vrot.lane.b32.xlu0 %v4222, 119
      %v4241 = vpop.permute.xlu0 %4240
      %4242 = vrot.lane.b32.xlu0 %v4223, 119
      %v4243 = vpop.permute.xlu0 %4242
      %4244 = vrot.lane.b32.xlu0 %v4224, 119
      %v4245 = vpop.permute.xlu0 %4244
      %4246 = vrot.lane.b32.xlu0 %v4225, 119
      %v4247 = vpop.permute.xlu0 %4246
      %4248 = vrot.lane.b32.xlu0 %v4226, 119
      %v4249 = vpop.permute.xlu0 %4248
      %4250 = vrot.lane.b32.xlu0 %v4227, 119
      %v4251 = vpop.permute.xlu0 %4250
      %4260 = vst.msk [vmem:[#allocation13 + $0xa0] sm:$0xf] %vm2277, %v4237
      %4261 = vst.msk [vmem:[#allocation13 + $0xa4] sm:$0xf] %vm2277, %v4239
      %4262 = vst.msk [vmem:[#allocation13 + $0xa8] sm:$0xf] %vm2277, %v4241
      %4263 = vst.msk [vmem:[#allocation13 + $0xac] sm:$0xf] %vm2277, %v4243
      %4264 = vst.msk [vmem:[#allocation13 + $0xb0] sm:$0xf] %vm2277, %v4245
      %4265 = vst.msk [vmem:[#allocation13 + $0xb4] sm:$0xf] %vm2277, %v4247
      %4266 = vst.msk [vmem:[#allocation13 + $0xb8] sm:$0xf] %vm2277, %v4249
      %4267 = vst.msk [vmem:[#allocation13 + $0xbc] sm:$0xf] %vm2277, %v4251
      %v4268 = vld [vmem:[#allocation9] sm:$0xf]
      %v4269 = vld [vmem:[#allocation9 + $0x4] sm:$0xf]
      %v4270 = vld [vmem:[#allocation9 + $0x8] sm:$0xf]
      %v4271 = vld [vmem:[#allocation9 + $0xc] sm:$0xf]
      %v4272 = vld [vmem:[#allocation9 + $0x10] sm:$0xf]
      %v4273 = vld [vmem:[#allocation9 + $0x14] sm:$0xf]
      %v4274 = vld [vmem:[#allocation9 + $0x18] sm:$0xf]
      %v4275 = vld [vmem:[#allocation9 + $0x1c] sm:$0xf]
      %4284 = vrot.lane.b32.xlu0 %v4268, 114
      %v4285 = vpop.permute.xlu0 %4284
      %4286 = vrot.lane.b32.xlu0 %v4269, 114
      %v4287 = vpop.permute.xlu0 %4286
      %4288 = vrot.lane.b32.xlu0 %v4270, 114
      %v4289 = vpop.permute.xlu0 %4288
      %4290 = vrot.lane.b32.xlu0 %v4271, 114
      %v4291 = vpop.permute.xlu0 %4290
      %4292 = vrot.lane.b32.xlu0 %v4272, 114
      %v4293 = vpop.permute.xlu0 %4292
      %4294 = vrot.lane.b32.xlu0 %v4273, 114
      %v4295 = vpop.permute.xlu0 %4294
      %4296 = vrot.lane.b32.xlu0 %v4274, 114
      %v4297 = vpop.permute.xlu0 %4296
      %4298 = vrot.lane.b32.xlu0 %v4275, 114
      %v4299 = vpop.permute.xlu0 %4298
      %4308 = vst.msk [vmem:[#allocation13 + $0xc0] sm:$0xf] %vm2277, %v4285
      %4309 = vst.msk [vmem:[#allocation13 + $0xc4] sm:$0xf] %vm2277, %v4287
      %4310 = vst.msk [vmem:[#allocation13 + $0xc8] sm:$0xf] %vm2277, %v4289
      %4311 = vst.msk [vmem:[#allocation13 + $0xcc] sm:$0xf] %vm2277, %v4291
      %4312 = vst.msk [vmem:[#allocation13 + $0xd0] sm:$0xf] %vm2277, %v4293
      %4313 = vst.msk [vmem:[#allocation13 + $0xd4] sm:$0xf] %vm2277, %v4295
      %4314 = vst.msk [vmem:[#allocation13 + $0xd8] sm:$0xf] %vm2277, %v4297
      %4315 = vst.msk [vmem:[#allocation13 + $0xdc] sm:$0xf] %vm2277, %v4299
      %v4316 = vld [vmem:[#allocation9] sm:$0xf]
      %v4317 = vld [vmem:[#allocation9 + $0x4] sm:$0xf]
      %v4318 = vld [vmem:[#allocation9 + $0x8] sm:$0xf]
      %v4319 = vld [vmem:[#allocation9 + $0xc] sm:$0xf]
      %v4320 = vld [vmem:[#allocation9 + $0x10] sm:$0xf]
      %v4321 = vld [vmem:[#allocation9 + $0x14] sm:$0xf]
      %v4322 = vld [vmem:[#allocation9 + $0x18] sm:$0xf]
      %v4323 = vld [vmem:[#allocation9 + $0x1c] sm:$0xf]
      %4332 = vrot.lane.b32.xlu0 %v4316, 113
      %v4333 = vpop.permute.xlu0 %4332
      %4334 = vrot.lane.b32.xlu0 %v4317, 113
      %v4335 = vpop.permute.xlu0 %4334
      %4336 = vrot.lane.b32.xlu0 %v4318, 113
      %v4337 = vpop.permute.xlu0 %4336
      %4338 = vrot.lane.b32.xlu0 %v4319, 113
      %v4339 = vpop.permute.xlu0 %4338
      %4340 = vrot.lane.b32.xlu0 %v4320, 113
      %v4341 = vpop.permute.xlu0 %4340
      %4342 = vrot.lane.b32.xlu0 %v4321, 113
      %v4343 = vpop.permute.xlu0 %4342
      %4344 = vrot.lane.b32.xlu0 %v4322, 113
      %v4345 = vpop.permute.xlu0 %4344
      %4346 = vrot.lane.b32.xlu0 %v4323, 113
      %v4347 = vpop.permute.xlu0 %4346
      %4356 = vst.msk [vmem:[#allocation13 + $0xe0] sm:$0xf] %vm2277, %v4333
      %4357 = vst.msk [vmem:[#allocation13 + $0xe4] sm:$0xf] %vm2277, %v4335
      %4358 = vst.msk [vmem:[#allocation13 + $0xe8] sm:$0xf] %vm2277, %v4337
      %4359 = vst.msk [vmem:[#allocation13 + $0xec] sm:$0xf] %vm2277, %v4339
      %4360 = vst.msk [vmem:[#allocation13 + $0xf0] sm:$0xf] %vm2277, %v4341
      %4361 = vst.msk [vmem:[#allocation13 + $0xf4] sm:$0xf] %vm2277, %v4343
      %4362 = vst.msk [vmem:[#allocation13 + $0xf8] sm:$0xf] %vm2277, %v4345
      %4363 = vst.msk [vmem:[#allocation13 + $0xfc] sm:$0xf] %vm2277, %v4347
      %v4364 = vld [vmem:[#allocation9] sm:$0xf]
      %v4365 = vld [vmem:[#allocation9 + $0x4] sm:$0xf]
      %v4366 = vld [vmem:[#allocation9 + $0x8] sm:$0xf]
      %v4367 = vld [vmem:[#allocation9 + $0xc] sm:$0xf]
      %v4368 = vld [vmem:[#allocation9 + $0x10] sm:$0xf]
      %v4369 = vld [vmem:[#allocation9 + $0x14] sm:$0xf]
      %v4370 = vld [vmem:[#allocation9 + $0x18] sm:$0xf]
      %v4371 = vld [vmem:[#allocation9 + $0x1c] sm:$0xf]
      %4380 = vrot.lane.b32.xlu0 %v4364, 112
      %v4381 = vpop.permute.xlu0 %4380
      %4382 = vrot.lane.b32.xlu0 %v4365, 112
      %v4383 = vpop.permute.xlu0 %4382
      %4384 = vrot.lane.b32.xlu0 %v4366, 112
      %v4385 = vpop.permute.xlu0 %4384
      %4386 = vrot.lane.b32.xlu0 %v4367, 112
      %v4387 = vpop.permute.xlu0 %4386
      %4388 = vrot.lane.b32.xlu0 %v4368, 112
      %v4389 = vpop.permute.xlu0 %4388
      %4390 = vrot.lane.b32.xlu0 %v4369, 112
      %v4391 = vpop.permute.xlu0 %4390
      %4392 = vrot.lane.b32.xlu0 %v4370, 112
      %v4393 = vpop.permute.xlu0 %4392
      %4394 = vrot.lane.b32.xlu0 %v4371, 112
      %v4395 = vpop.permute.xlu0 %4394
      %4404 = vst.msk [vmem:[#allocation13 + $0x100] sm:$0xf] %vm2277, %v4381
      %4405 = vst.msk [vmem:[#allocation13 + $0x104] sm:$0xf] %vm2277, %v4383
      %4406 = vst.msk [vmem:[#allocation13 + $0x108] sm:$0xf] %vm2277, %v4385
      %4407 = vst.msk [vmem:[#allocation13 + $0x10c] sm:$0xf] %vm2277, %v4387
      %4408 = vst.msk [vmem:[#allocation13 + $0x110] sm:$0xf] %vm2277, %v4389
      %4409 = vst.msk [vmem:[#allocation13 + $0x114] sm:$0xf] %vm2277, %v4391
      %4410 = vst.msk [vmem:[#allocation13 + $0x118] sm:$0xf] %vm2277, %v4393
      %4411 = vst.msk [vmem:[#allocation13 + $0x11c] sm:$0xf] %vm2277, %v4395
      %v4412 = vld [vmem:[%s13] sm:$0xff]
      %v4413 = vld [vmem:[%s13 + $0x8] sm:$0xff]
      %v4414 = vld [vmem:[%s13 + $0x10] sm:$0xf]
      %v4415 = vld [vmem:[%s13 + $0x14] sm:$0xff]
      %v4416 = vld [vmem:[%s13 + $0x1c] sm:$0xff]
      %v4417 = vld [vmem:[%s13 + $0x24] sm:$0xf]
      %v4418 = vld [vmem:[%s13 + $0x28] sm:$0xff]
      %v4419 = vld [vmem:[%s13 + $0x30] sm:$0xff]
      %v4420 = vld [vmem:[%s13 + $0x38] sm:$0xf]
      %v4421 = vld [vmem:[%s13 + $0x3c] sm:$0xff]
      %v4422 = vld [vmem:[%s13 + $0x44] sm:$0xff]
      %v4423 = vld [vmem:[%s13 + $0x4c] sm:$0xf]
      %v4424 = vld [vmem:[%s13 + $0x50] sm:$0xff]
      %v4425 = vld [vmem:[%s13 + $0x58] sm:$0xff]
      %v4426 = vld [vmem:[%s13 + $0x60] sm:$0xf]
      %v4427 = vld [vmem:[%s13 + $0x64] sm:$0xff]
      %v4428 = vld [vmem:[%s13 + $0x6c] sm:$0xff]
      %v4429 = vld [vmem:[%s13 + $0x74] sm:$0xf]
      %v4430 = vld [vmem:[%s13 + $0x78] sm:$0xff]
      %v4431 = vld [vmem:[%s13 + $0x80] sm:$0xff]
      %v4432 = vld [vmem:[%s13 + $0x88] sm:$0xf]
      %v4433 = vld [vmem:[%s13 + $0x8c] sm:$0xff]
      %v4434 = vld [vmem:[%s13 + $0x94] sm:$0xff]
      %v4435 = vld [vmem:[%s13 + $0x9c] sm:$0xf]
      %v4436 = vld [vmem:[#allocation13] sm:$0xf]
      %v4437 = vld [vmem:[#allocation13 + $0x4] sm:$0xf]
      %v4438 = vld [vmem:[#allocation13 + $0x8] sm:$0xf]
      %v4439 = vld [vmem:[#allocation13 + $0xc] sm:$0xf]
      %v4440 = vld [vmem:[#allocation13 + $0x10] sm:$0xf]
      %v4441 = vld [vmem:[#allocation13 + $0x14] sm:$0xf]
      %v4442 = vld [vmem:[#allocation13 + $0x18] sm:$0xf]
      %v4443 = vld [vmem:[#allocation13 + $0x1c] sm:$0xf]
      %v4444 = vld [vmem:[#allocation13 + $0x20] sm:$0xf]
      %v4445 = vld [vmem:[#allocation13 + $0x24] sm:$0xf]
      %v4446 = vld [vmem:[#allocation13 + $0x28] sm:$0xf]
      %v4447 = vld [vmem:[#allocation13 + $0x2c] sm:$0xf]
      %v4448 = vld [vmem:[#allocation13 + $0x30] sm:$0xf]
      %v4449 = vld [vmem:[#allocation13 + $0x34] sm:$0xf]
      %v4450 = vld [vmem:[#allocation13 + $0x38] sm:$0xf]
      %v4451 = vld [vmem:[#allocation13 + $0x3c] sm:$0xf]
      %v4452 = vld [vmem:[#allocation13 + $0x40] sm:$0xf]
      %v4453 = vld [vmem:[#allocation13 + $0x44] sm:$0xf]
      %v4454 = vld [vmem:[#allocation13 + $0x48] sm:$0xf]
      %v4455 = vld [vmem:[#allocation13 + $0x4c] sm:$0xf]
      %v4456 = vld [vmem:[#allocation13 + $0x50] sm:$0xf]
      %v4457 = vld [vmem:[#allocation13 + $0x54] sm:$0xf]
      %v4458 = vld [vmem:[#allocation13 + $0x58] sm:$0xf]
      %v4459 = vld [vmem:[#allocation13 + $0x5c] sm:$0xf]
      %v4460 = vld [vmem:[#allocation13 + $0x60] sm:$0xf]
      %v4461 = vld [vmem:[#allocation13 + $0x64] sm:$0xf]
      %v4462 = vld [vmem:[#allocation13 + $0x68] sm:$0xf]
      %v4463 = vld [vmem:[#allocation13 + $0x6c] sm:$0xf]
      %v4464 = vld [vmem:[#allocation13 + $0x70] sm:$0xf]
      %v4465 = vld [vmem:[#allocation13 + $0x74] sm:$0xf]
      %v4466 = vld [vmem:[#allocation13 + $0x78] sm:$0xf]
      %v4467 = vld [vmem:[#allocation13 + $0x7c] sm:$0xf]
      %v4468 = vld [vmem:[#allocation13 + $0x80] sm:$0xf]
      %v4469 = vld [vmem:[#allocation13 + $0x84] sm:$0xf]
      %v4470 = vld [vmem:[#allocation13 + $0x88] sm:$0xf]
      %v4471 = vld [vmem:[#allocation13 + $0x8c] sm:$0xf]
      %v4472 = vld [vmem:[#allocation13 + $0x90] sm:$0xf]
      %v4473 = vld [vmem:[#allocation13 + $0x94] sm:$0xf]
      %v4474 = vld [vmem:[#allocation13 + $0x98] sm:$0xf]
      %v4475 = vld [vmem:[#allocation13 + $0x9c] sm:$0xf]
      %v4476 = vld [vmem:[#allocation13 + $0xa0] sm:$0xf]
      %v4477 = vld [vmem:[#allocation13 + $0xa4] sm:$0xf]
      %v4478 = vld [vmem:[#allocation13 + $0xa8] sm:$0xf]
      %v4479 = vld [vmem:[#allocation13 + $0xac] sm:$0xf]
      %v4480 = vld [vmem:[#allocation13 + $0xb0] sm:$0xf]
      %v4481 = vld [vmem:[#allocation13 + $0xb4] sm:$0xf]
      %v4482 = vld [vmem:[#allocation13 + $0xb8] sm:$0xf]
      %v4483 = vld [vmem:[#allocation13 + $0xbc] sm:$0xf]
      %v4484 = vld [vmem:[#allocation13 + $0xc0] sm:$0xf]
      %v4485 = vld [vmem:[#allocation13 + $0xc4] sm:$0xf]
      %v4486 = vld [vmem:[#allocation13 + $0xc8] sm:$0xf]
      %v4487 = vld [vmem:[#allocation13 + $0xcc] sm:$0xf]
      %v4488 = vld [vmem:[#allocation13 + $0xd0] sm:$0xf]
      %v4489 = vld [vmem:[#allocation13 + $0xd4] sm:$0xf]
      %v4490 = vld [vmem:[#allocation13 + $0xd8] sm:$0xf]
      %v4491 = vld [vmem:[#allocation13 + $0xdc] sm:$0xf]
      %v4492 = vld [vmem:[#allocation13 + $0xe0] sm:$0xf]
      %v4493 = vld [vmem:[#allocation13 + $0xe4] sm:$0xf]
      %v4494 = vld [vmem:[#allocation13 + $0xe8] sm:$0xf]
      %v4495 = vld [vmem:[#allocation13 + $0xec] sm:$0xf]
      %v4496 = vld [vmem:[#allocation13 + $0xf0] sm:$0xf]
      %v4497 = vld [vmem:[#allocation13 + $0xf4] sm:$0xf]
      %v4498 = vld [vmem:[#allocation13 + $0xf8] sm:$0xf]
      %v4499 = vld [vmem:[#allocation13 + $0xfc] sm:$0xf]
      %v4500 = vld [vmem:[#allocation13 + $0x100] sm:$0xf]
      %v4501 = vld [vmem:[#allocation13 + $0x104] sm:$0xf]
      %v4502 = vld [vmem:[#allocation13 + $0x108] sm:$0xf]
      %v4503 = vld [vmem:[#allocation13 + $0x10c] sm:$0xf]
      %v4504 = vld [vmem:[#allocation13 + $0x110] sm:$0xf]
      %v4505 = vld [vmem:[#allocation13 + $0x114] sm:$0xf]
      %v4506 = vld [vmem:[#allocation13 + $0x118] sm:$0xf]
      %v4507 = vld [vmem:[#allocation13 + $0x11c] sm:$0xf]
      %v4508 = vld [vmem:[%s14] sm:$0xff]
      %v4509 = vld [vmem:[%s14 + $0x8] sm:$0xff]
      %v4510 = vld [vmem:[%s14 + $0x10] sm:$0xff]
      %v4511 = vld [vmem:[%s14 + $0x18] sm:$0xff]
      %v4512 = vld [vmem:[%s14 + $0x20] sm:$0xff]
      %v4513 = vld [vmem:[%s14 + $0x28] sm:$0xff]
      %v4514 = vld [vmem:[%s14 + $0x30] sm:$0xff]
      %v4515 = vld [vmem:[%s14 + $0x38] sm:$0xff]
      %4517 = vset.pattern.permute.xlu0 0
      %4518 = vperm.xlu0 %4517, %v4508
      %v4519 = vpop.permute.xlu0 %4518
      %4522 = vset.pattern.permute.xlu0 0
      %4523 = vperm.xlu0 %4522, %v4509
      %v4524 = vpop.permute.xlu0 %4523
      %4527 = vset.pattern.permute.xlu0 0
      %4528 = vperm.xlu0 %4527, %v4510
      %v4529 = vpop.permute.xlu0 %4528
      %4532 = vset.pattern.permute.xlu0 0
      %4533 = vperm.xlu0 %4532, %v4511
      %v4534 = vpop.permute.xlu0 %4533
      %4537 = vset.pattern.permute.xlu0 0
      %4538 = vperm.xlu0 %4537, %v4512
      %v4539 = vpop.permute.xlu0 %4538
      %4542 = vset.pattern.permute.xlu0 0
      %4543 = vperm.xlu0 %4542, %v4513
      %v4544 = vpop.permute.xlu0 %4543
      %4547 = vset.pattern.permute.xlu0 0
      %4548 = vperm.xlu0 %4547, %v4514
      %v4549 = vpop.permute.xlu0 %4548
      %4552 = vset.pattern.permute.xlu0 0
      %4553 = vperm.xlu0 %4552, %v4515
      %v4554 = vpop.permute.xlu0 %4553
      %v4580 = vunpack.c.l.b16 %v4412
      %v4581 = vunpack.c.h.b16 %v4412
      %v4582 = vunpack.c.l.b16 %v4413
      %v4583 = vunpack.c.h.b16 %v4413
      %v4584 = vunpack.c.l.b16 %v4414
      %v4585 = vunpack.c.l.b16 %v4415
      %v4586 = vunpack.c.h.b16 %v4415
      %v4587 = vunpack.c.l.b16 %v4416
      %v4588 = vunpack.c.h.b16 %v4416
      %v4589 = vunpack.c.l.b16 %v4417
      %v4590 = vunpack.c.l.b16 %v4418
      %v4591 = vunpack.c.h.b16 %v4418
      %v4592 = vunpack.c.l.b16 %v4419
      %v4593 = vunpack.c.h.b16 %v4419
      %v4594 = vunpack.c.l.b16 %v4420
      %v4595 = vunpack.c.l.b16 %v4421
      %v4596 = vunpack.c.h.b16 %v4421
      %v4597 = vunpack.c.l.b16 %v4422
      %v4598 = vunpack.c.h.b16 %v4422
      %v4599 = vunpack.c.l.b16 %v4423
      %v4600 = vunpack.c.l.b16 %v4424
      %v4601 = vunpack.c.h.b16 %v4424
      %v4602 = vunpack.c.l.b16 %v4425
      %v4603 = vunpack.c.h.b16 %v4425
      %v4604 = vunpack.c.l.b16 %v4426
      %v4605 = vunpack.c.l.b16 %v4427
      %v4606 = vunpack.c.h.b16 %v4427
      %v4607 = vunpack.c.l.b16 %v4428
      %v4608 = vunpack.c.h.b16 %v4428
      %v4609 = vunpack.c.l.b16 %v4429
      %v4610 = vunpack.c.l.b16 %v4430
      %v4611 = vunpack.c.h.b16 %v4430
      %v4612 = vunpack.c.l.b16 %v4431
      %v4613 = vunpack.c.h.b16 %v4431
      %v4614 = vunpack.c.l.b16 %v4432
      %v4615 = vunpack.c.l.b16 %v4433
      %v4616 = vunpack.c.h.b16 %v4433
      %v4617 = vunpack.c.l.b16 %v4434
      %v4618 = vunpack.c.h.b16 %v4434
      %v4619 = vunpack.c.l.b16 %v4435
      %v4620 = vpack.c.b16 %v4585, %v4580
      %v4621 = vpack.c.b16 %v4586, %v4581
      %v4622 = vpack.c.b16 %v4587, %v4582
      %v4623 = vpack.c.b16 %v4588, %v4583
      %v4624 = vpack.c.b16 %v4589, %v4584
      %v4625 = vpack.c.b16 %v4595, %v4590
      %v4626 = vpack.c.b16 %v4596, %v4591
      %v4627 = vpack.c.b16 %v4597, %v4592
      %v4628 = vpack.c.b16 %v4598, %v4593
      %v4629 = vpack.c.b16 %v4599, %v4594
      %v4630 = vpack.c.b16 %v4605, %v4600
      %v4631 = vpack.c.b16 %v4606, %v4601
      %v4632 = vpack.c.b16 %v4607, %v4602
      %v4633 = vpack.c.b16 %v4608, %v4603
      %v4634 = vpack.c.b16 %v4609, %v4604
      %v4635 = vpack.c.b16 %v4615, %v4610
      %v4636 = vpack.c.b16 %v4616, %v4611
      %v4637 = vpack.c.b16 %v4617, %v4612
      %v4638 = vpack.c.b16 %v4618, %v4613
      %v4639 = vpack.c.b16 %v4619, %v4614
      %v4728 = vunpack.c.l.b16 %v4436
      %v4729 = vunpack.c.l.b16 %v4437
      %v4730 = vunpack.c.l.b16 %v4438
      %v4731 = vunpack.c.l.b16 %v4439
      %v4732 = vunpack.c.l.b16 %v4440
      %v4733 = vunpack.c.l.b16 %v4441
      %v4734 = vunpack.c.l.b16 %v4442
      %v4735 = vunpack.c.l.b16 %v4443
      %v4736 = vunpack.c.l.b16 %v4444
      %v4737 = vunpack.c.l.b16 %v4445
      %v4738 = vunpack.c.l.b16 %v4446
      %v4739 = vunpack.c.l.b16 %v4447
      %v4740 = vunpack.c.l.b16 %v4448
      %v4741 = vunpack.c.l.b16 %v4449
      %v4742 = vunpack.c.l.b16 %v4450
      %v4743 = vunpack.c.l.b16 %v4451
      %v4744 = vunpack.c.l.b16 %v4452
      %v4745 = vunpack.c.l.b16 %v4453
      %v4746 = vunpack.c.l.b16 %v4454
      %v4747 = vunpack.c.l.b16 %v4455
      %v4748 = vunpack.c.l.b16 %v4456
      %v4749 = vunpack.c.l.b16 %v4457
      %v4750 = vunpack.c.l.b16 %v4458
      %v4751 = vunpack.c.l.b16 %v4459
      %v4752 = vunpack.c.l.b16 %v4460
      %v4753 = vunpack.c.l.b16 %v4461
      %v4754 = vunpack.c.l.b16 %v4462
      %v4755 = vunpack.c.l.b16 %v4463
      %v4756 = vunpack.c.l.b16 %v4464
      %v4757 = vunpack.c.l.b16 %v4465
      %v4758 = vunpack.c.l.b16 %v4466
      %v4759 = vunpack.c.l.b16 %v4467
      %v4760 = vunpack.c.l.b16 %v4468
      %v4761 = vunpack.c.l.b16 %v4469
      %v4762 = vunpack.c.l.b16 %v4470
      %v4763 = vunpack.c.l.b16 %v4471
      %v4764 = vunpack.c.l.b16 %v4472
      %v4765 = vunpack.c.l.b16 %v4473
      %v4766 = vunpack.c.l.b16 %v4474
      %v4767 = vunpack.c.l.b16 %v4475
      %v4768 = vunpack.c.l.b16 %v4476
      %v4769 = vunpack.c.l.b16 %v4477
      %v4770 = vunpack.c.l.b16 %v4478
      %v4771 = vunpack.c.l.b16 %v4479
      %v4772 = vunpack.c.l.b16 %v4480
      %v4773 = vunpack.c.l.b16 %v4481
      %v4774 = vunpack.c.l.b16 %v4482
      %v4775 = vunpack.c.l.b16 %v4483
      %v4776 = vunpack.c.l.b16 %v4484
      %v4777 = vunpack.c.l.b16 %v4485
      %v4778 = vunpack.c.l.b16 %v4486
      %v4779 = vunpack.c.l.b16 %v4487
      %v4780 = vunpack.c.l.b16 %v4488
      %v4781 = vunpack.c.l.b16 %v4489
      %v4782 = vunpack.c.l.b16 %v4490
      %v4783 = vunpack.c.l.b16 %v4491
      %v4784 = vunpack.c.l.b16 %v4492
      %v4785 = vunpack.c.l.b16 %v4493
      %v4786 = vunpack.c.l.b16 %v4494
      %v4787 = vunpack.c.l.b16 %v4495
      %v4788 = vunpack.c.l.b16 %v4496
      %v4789 = vunpack.c.l.b16 %v4497
      %v4790 = vunpack.c.l.b16 %v4498
      %v4791 = vunpack.c.l.b16 %v4499
      %v4792 = vunpack.c.l.b16 %v4500
      %v4793 = vunpack.c.l.b16 %v4501
      %v4794 = vunpack.c.l.b16 %v4502
      %v4795 = vunpack.c.l.b16 %v4503
      %v4796 = vunpack.c.l.b16 %v4504
      %v4797 = vunpack.c.l.b16 %v4505
      %v4798 = vunpack.c.l.b16 %v4506
      %v4799 = vunpack.c.l.b16 %v4507
      %v4800 = vpack.c.b16 %v4729, %v4728
      %v4801 = vpack.c.b16 %v4731, %v4730
      %v4802 = vpack.c.b16 %v4733, %v4732
      %v4803 = vpack.c.b16 %v4735, %v4734
      %v4804 = vpack.c.b16 %v4737, %v4736
      %v4805 = vpack.c.b16 %v4739, %v4738
      %v4806 = vpack.c.b16 %v4741, %v4740
      %v4807 = vpack.c.b16 %v4743, %v4742
      %v4808 = vpack.c.b16 %v4745, %v4744
      %v4809 = vpack.c.b16 %v4747, %v4746
      %v4810 = vpack.c.b16 %v4749, %v4748
      %v4811 = vpack.c.b16 %v4751, %v4750
      %v4812 = vpack.c.b16 %v4753, %v4752
      %v4813 = vpack.c.b16 %v4755, %v4754
      %v4814 = vpack.c.b16 %v4757, %v4756
      %v4815 = vpack.c.b16 %v4759, %v4758
      %v4816 = vpack.c.b16 %v4761, %v4760
      %v4817 = vpack.c.b16 %v4763, %v4762
      %v4818 = vpack.c.b16 %v4765, %v4764
      %v4819 = vpack.c.b16 %v4767, %v4766
      %v4820 = vpack.c.b16 %v4769, %v4768
      %v4821 = vpack.c.b16 %v4771, %v4770
      %v4822 = vpack.c.b16 %v4773, %v4772
      %v4823 = vpack.c.b16 %v4775, %v4774
      %v4824 = vpack.c.b16 %v4777, %v4776
      %v4825 = vpack.c.b16 %v4779, %v4778
      %v4826 = vpack.c.b16 %v4781, %v4780
      %v4827 = vpack.c.b16 %v4783, %v4782
      %v4828 = vpack.c.b16 %v4785, %v4784
      %v4829 = vpack.c.b16 %v4787, %v4786
      %v4830 = vpack.c.b16 %v4789, %v4788
      %v4831 = vpack.c.b16 %v4791, %v4790
      %v4832 = vpack.c.b16 %v4793, %v4792
      %v4833 = vpack.c.b16 %v4795, %v4794
      %v4834 = vpack.c.b16 %v4797, %v4796
      %v4835 = vpack.c.b16 %v4799, %v4798
      %v4873 = vsel %vm3778, %v4624, 0
      %v4876 = vsel %vm3778, %v4629, 0
      %v4879 = vsel %vm3778, %v4634, 0
      %v4882 = vsel %vm3778, %v4639, 0
      %4884 = vmatpush.bf16.msra.mxu0 %v4807
      %4885 = vmatpush.bf16.msra.mxu0 %v4806
      %4886 = vmatpush.bf16.msra.mxu0 %v4805
      %4887 = vmatpush.bf16.msra.mxu0 %v4804
      %4888 = vmatpush.bf16.msra.mxu0 %v4803
      %4889 = vmatpush.bf16.msra.mxu0 %v4802
      %4890 = vmatpush.bf16.msra.mxu0 %v4801
      %4891 = vmatpush.bf16.msra.mxu0 %v4800
      %4892 = vmatmul.bf16.gmra.mxu0 %v4620
      %v4893 = vpop.f32.mrf.mxu0
      %v4894 = vadd.f32 %v4519, %v4893
      %v4895 = vpop.f32.mrf.mxu0
      %v4896 = vadd.f32 %v4524, %v4895
      %4897 = vmatmul.bf16.gmra.mxu0 %v4625
      %v4898 = vpop.f32.mrf.mxu0
      %v4899 = vadd.f32 %v4529, %v4898
      %v4900 = vpop.f32.mrf.mxu0
      %v4901 = vadd.f32 %v4534, %v4900
      %4902 = vmatmul.bf16.gmra.mxu0 %v4630
      %v4903 = vpop.f32.mrf.mxu0
      %v4904 = vadd.f32 %v4539, %v4903
      %v4905 = vpop.f32.mrf.mxu0
      %v4906 = vadd.f32 %v4544, %v4905
      %4907 = vmatmul.bf16.gmra.mxu0 %v4635
      %v4908 = vpop.f32.mrf.mxu0
      %v4909 = vadd.f32 %v4549, %v4908
      %v4910 = vpop.f32.mrf.mxu0
      %v4911 = vadd.f32 %v4554, %v4910
      %4912 = vdwg.mxu0
      %4913 = vmatpush.bf16.msra.mxu0 %v4815
      %4914 = vmatpush.bf16.msra.mxu0 %v4814
      %4915 = vmatpush.bf16.msra.mxu0 %v4813
      %4916 = vmatpush.bf16.msra.mxu0 %v4812
      %4917 = vmatpush.bf16.msra.mxu0 %v4811
      %4918 = vmatpush.bf16.msra.mxu0 %v4810
      %4919 = vmatpush.bf16.msra.mxu0 %v4809
      %4920 = vmatpush.bf16.msra.mxu0 %v4808
      %4921 = vmatmul.bf16.gmra.mxu0 %v4621
      %v4922 = vpop.f32.mrf.mxu0
      %v4923 = vadd.f32 %v4894, %v4922
      %v4924 = vpop.f32.mrf.mxu0
      %v4925 = vadd.f32 %v4896, %v4924
      %4926 = vmatmul.bf16.gmra.mxu0 %v4626
      %v4927 = vpop.f32.mrf.mxu0
      %v4928 = vadd.f32 %v4899, %v4927
      %v4929 = vpop.f32.mrf.mxu0
      %v4930 = vadd.f32 %v4901, %v4929
      %4931 = vmatmul.bf16.gmra.mxu0 %v4631
      %v4932 = vpop.f32.mrf.mxu0
      %v4933 = vadd.f32 %v4904, %v4932
      %v4934 = vpop.f32.mrf.mxu0
      %v4935 = vadd.f32 %v4906, %v4934
      %4936 = vmatmul.bf16.gmra.mxu0 %v4636
      %v4937 = vpop.f32.mrf.mxu0
      %v4938 = vadd.f32 %v4909, %v4937
      %v4939 = vpop.f32.mrf.mxu0
      %v4940 = vadd.f32 %v4911, %v4939
      %4941 = vdwg.mxu0
      %4942 = vmatpush.bf16.msra.mxu0 %v4823
      %4943 = vmatpush.bf16.msra.mxu0 %v4822
      %4944 = vmatpush.bf16.msra.mxu0 %v4821
      %4945 = vmatpush.bf16.msra.mxu0 %v4820
      %4946 = vmatpush.bf16.msra.mxu0 %v4819
      %4947 = vmatpush.bf16.msra.mxu0 %v4818
      %4948 = vmatpush.bf16.msra.mxu0 %v4817
      %4949 = vmatpush.bf16.msra.mxu0 %v4816
      %4950 = vmatmul.bf16.gmra.mxu0 %v4622
      %v4951 = vpop.f32.mrf.mxu0
      %v4952 = vadd.f32 %v4923, %v4951
      %v4953 = vpop.f32.mrf.mxu0
      %v4954 = vadd.f32 %v4925, %v4953
      %4955 = vmatmul.bf16.gmra.mxu0 %v4627
      %v4956 = vpop.f32.mrf.mxu0
      %v4957 = vadd.f32 %v4928, %v4956
      %v4958 = vpop.f32.mrf.mxu0
      %v4959 = vadd.f32 %v4930, %v4958
      %4960 = vmatmul.bf16.gmra.mxu0 %v4632
      %v4961 = vpop.f32.mrf.mxu0
      %v4962 = vadd.f32 %v4933, %v4961
      %v4963 = vpop.f32.mrf.mxu0
      %v4964 = vadd.f32 %v4935, %v4963
      %4965 = vmatmul.bf16.gmra.mxu0 %v4637
      %v4966 = vpop.f32.mrf.mxu0
      %v4967 = vadd.f32 %v4938, %v4966
      %v4968 = vpop.f32.mrf.mxu0
      %v4969 = vadd.f32 %v4940, %v4968
      %4970 = vdwg.mxu0
      %4971 = vmatpush.bf16.msra.mxu0 %v4831
      %4972 = vmatpush.bf16.msra.mxu0 %v4830
      %4973 = vmatpush.bf16.msra.mxu0 %v4829
      %4974 = vmatpush.bf16.msra.mxu0 %v4828
      %4975 = vmatpush.bf16.msra.mxu0 %v4827
      %4976 = vmatpush.bf16.msra.mxu0 %v4826
      %4977 = vmatpush.bf16.msra.mxu0 %v4825
      %4978 = vmatpush.bf16.msra.mxu0 %v4824
      %4979 = vmatmul.bf16.gmra.mxu0 %v4623
      %v4980 = vpop.f32.mrf.mxu0
      %v4981 = vadd.f32 %v4952, %v4980
      %v4982 = vpop.f32.mrf.mxu0
      %v4983 = vadd.f32 %v4954, %v4982
      %4984 = vmatmul.bf16.gmra.mxu0 %v4628
      %v4985 = vpop.f32.mrf.mxu0
      %v4986 = vadd.f32 %v4957, %v4985
      %v4987 = vpop.f32.mrf.mxu0
      %v4988 = vadd.f32 %v4959, %v4987
      %4989 = vmatmul.bf16.gmra.mxu0 %v4633
      %v4990 = vpop.f32.mrf.mxu0
      %v4991 = vadd.f32 %v4962, %v4990
      %v4992 = vpop.f32.mrf.mxu0
      %v4993 = vadd.f32 %v4964, %v4992
      %4994 = vmatmul.bf16.gmra.mxu0 %v4638
      %v4995 = vpop.f32.mrf.mxu0
      %v4996 = vadd.f32 %v4967, %v4995
      %v4997 = vpop.f32.mrf.mxu0
      %v4998 = vadd.f32 %v4969, %v4997
      %4999 = vdwg.mxu0
      %5000 = vmatpush.bf16.msra.mxu0 0
      %5001 = vmatpush.bf16.msra.mxu0 0
      %5002 = vmatpush.bf16.msra.mxu0 0
      %5003 = vmatpush.bf16.msra.mxu0 0
      %5004 = vmatpush.bf16.msra.mxu0 %v4835
      %5005 = vmatpush.bf16.msra.mxu0 %v4834
      %5006 = vmatpush.bf16.msra.mxu0 %v4833
      %5007 = vmatpush.bf16.msra.mxu0 %v4832
      %5008 = vmatmul.bf16.gmra.mxu0 %v4873
      %v5009 = vpop.f32.mrf.mxu0
      %v5010 = vadd.f32 %v4981, %v5009
      %v5011 = vpop.f32.mrf.mxu0
      %v5012 = vadd.f32 %v4983, %v5011
      %5013 = vmatmul.bf16.gmra.mxu0 %v4876
      %v5014 = vpop.f32.mrf.mxu0
      %v5015 = vadd.f32 %v4986, %v5014
      %v5016 = vpop.f32.mrf.mxu0
      %v5017 = vadd.f32 %v4988, %v5016
      %5018 = vmatmul.bf16.gmra.mxu0 %v4879
      %v5019 = vpop.f32.mrf.mxu0
      %v5020 = vadd.f32 %v4991, %v5019
      %v5021 = vpop.f32.mrf.mxu0
      %v5022 = vadd.f32 %v4993, %v5021
      %5023 = vmatmul.bf16.gmra.mxu0 %v4882
      %v5024 = vpop.f32.mrf.mxu0
      %v5025 = vadd.f32 %v4996, %v5024
      %v5026 = vpop.f32.mrf.mxu0
      %v5027 = vadd.f32 %v4998, %v5026
      %5028 = vdwg.mxu0
      %v5029 = vmax.f32 %v5010, 0.0
      %v5030 = vmax.f32 %v5012, 0.0
      %v5031 = vmax.f32 %v5015, 0.0
      %v5032 = vmax.f32 %v5017, 0.0
      %v5033 = vmax.f32 %v5020, 0.0
      %v5034 = vmax.f32 %v5022, 0.0
      %v5035 = vmax.f32 %v5025, 0.0
      %v5036 = vmax.f32 %v5027, 0.0
      %v5037 = vld [vmem:[%s17] sm:$0x1]
      %v5039 = vperm.slane %v5037, 0
      %v5041 = vmul.f32 %v5029, %v5039
      %v5042 = vmul.f32 %v5030, %v5039
      %v5043 = vmul.f32 %v5031, %v5039
      %v5044 = vmul.f32 %v5032, %v5039
      %v5045 = vmul.f32 %v5033, %v5039
      %v5046 = vmul.f32 %v5034, %v5039
      %v5047 = vmul.f32 %v5035, %v5039
      %v5048 = vmul.f32 %v5036, %v5039
      %5049 = vst.msk [vmem:[#allocation10] sm:$0xf] %vm1283, 0
      %5050 = vst.msk [vmem:[#allocation10 + $0x4] sm:$0xf] %vm1283, 0
      %5051 = vst.msk [vmem:[#allocation10 + $0x8] sm:$0xf] %vm1283, 0
      %5052 = vst.msk [vmem:[#allocation10 + $0xc] sm:$0xf] %vm1283, 0
      %5053 = vst.msk [vmem:[#allocation10 + $0x10] sm:$0xf] %vm1283, 0
      %5054 = vst.msk [vmem:[#allocation10 + $0x14] sm:$0xf] %vm1283, 0
      %5055 = vst.msk [vmem:[#allocation10 + $0x18] sm:$0xf] %vm1283, 0
      %5056 = vst.msk [vmem:[#allocation10 + $0x1c] sm:$0xf] %vm1283, 0
      %v5057 = vpack.c.bf16 %v5041, %v5041
      %v5058 = vpack.c.bf16 %v5042, %v5042
      %v5059 = vpack.c.bf16 %v5043, %v5043
      %v5060 = vpack.c.bf16 %v5044, %v5044
      %v5061 = vpack.c.bf16 %v5045, %v5045
      %v5062 = vpack.c.bf16 %v5046, %v5046
      %v5063 = vpack.c.bf16 %v5047, %v5047
      %v5064 = vpack.c.bf16 %v5048, %v5048
      %5073 = vrot.lane.b32.xlu0 %v5057, 8
      %v5074 = vpop.permute.xlu0 %5073
      %5075 = vrot.lane.b32.xlu0 %v5058, 8
      %v5076 = vpop.permute.xlu0 %5075
      %5077 = vrot.lane.b32.xlu0 %v5059, 8
      %v5078 = vpop.permute.xlu0 %5077
      %5079 = vrot.lane.b32.xlu0 %v5060, 8
      %v5080 = vpop.permute.xlu0 %5079
      %5081 = vrot.lane.b32.xlu0 %v5061, 8
      %v5082 = vpop.permute.xlu0 %5081
      %5083 = vrot.lane.b32.xlu0 %v5062, 8
      %v5084 = vpop.permute.xlu0 %5083
      %5085 = vrot.lane.b32.xlu0 %v5063, 8
      %v5086 = vpop.permute.xlu0 %5085
      %5087 = vrot.lane.b32.xlu0 %v5064, 8
      %v5088 = vpop.permute.xlu0 %5087
      %5097 = vst.msk [vmem:[#allocation10] sm:$0xf] %vm2909, %v5074
      %5098 = vst.msk [vmem:[#allocation10 + $0x4] sm:$0xf] %vm2909, %v5076
      %5099 = vst.msk [vmem:[#allocation10 + $0x8] sm:$0xf] %vm2909, %v5078
      %5100 = vst.msk [vmem:[#allocation10 + $0xc] sm:$0xf] %vm2909, %v5080
      %5101 = vst.msk [vmem:[#allocation10 + $0x10] sm:$0xf] %vm2909, %v5082
      %5102 = vst.msk [vmem:[#allocation10 + $0x14] sm:$0xf] %vm2909, %v5084
      %5103 = vst.msk [vmem:[#allocation10 + $0x18] sm:$0xf] %vm2909, %v5086
      %5104 = vst.msk [vmem:[#allocation10 + $0x1c] sm:$0xf] %vm2909, %v5088
      %v5105 = vld [vmem:[#allocation10] sm:$0xf]
      %v5106 = vld [vmem:[#allocation10 + $0x4] sm:$0xf]
      %v5107 = vld [vmem:[#allocation10 + $0x8] sm:$0xf]
      %v5108 = vld [vmem:[#allocation10 + $0xc] sm:$0xf]
      %v5109 = vld [vmem:[#allocation10 + $0x10] sm:$0xf]
      %v5110 = vld [vmem:[#allocation10 + $0x14] sm:$0xf]
      %v5111 = vld [vmem:[#allocation10 + $0x18] sm:$0xf]
      %v5112 = vld [vmem:[#allocation10 + $0x1c] sm:$0xf]
      %v5113 = vunpack.c.l.bf16 %v5105
      %v5114 = vunpack.c.l.bf16 %v5106
      %v5115 = vunpack.c.l.bf16 %v5107
      %v5116 = vunpack.c.l.bf16 %v5108
      %v5117 = vunpack.c.l.bf16 %v5109
      %v5118 = vunpack.c.l.bf16 %v5110
      %v5119 = vunpack.c.l.bf16 %v5111
      %v5120 = vunpack.c.l.bf16 %v5112
      %5129 = vrot.lane.b32.xlu0 %v5113, 127
      %v5130 = vpop.permute.xlu0 %5129
      %5131 = vrot.lane.b32.xlu0 %v5114, 127
      %v5132 = vpop.permute.xlu0 %5131
      %5133 = vrot.lane.b32.xlu0 %v5115, 127
      %v5134 = vpop.permute.xlu0 %5133
      %5135 = vrot.lane.b32.xlu0 %v5116, 127
      %v5136 = vpop.permute.xlu0 %5135
      %5137 = vrot.lane.b32.xlu0 %v5117, 127
      %v5138 = vpop.permute.xlu0 %5137
      %5139 = vrot.lane.b32.xlu0 %v5118, 127
      %v5140 = vpop.permute.xlu0 %5139
      %5141 = vrot.lane.b32.xlu0 %v5119, 127
      %v5142 = vpop.permute.xlu0 %5141
      %5143 = vrot.lane.b32.xlu0 %v5120, 127
      %v5144 = vpop.permute.xlu0 %5143
      %v5153 = vmax.f32 %v5113, %v5130
      %v5154 = vmax.f32 %v5114, %v5132
      %v5155 = vmax.f32 %v5115, %v5134
      %v5156 = vmax.f32 %v5116, %v5136
      %v5157 = vmax.f32 %v5117, %v5138
      %v5158 = vmax.f32 %v5118, %v5140
      %v5159 = vmax.f32 %v5119, %v5142
      %v5160 = vmax.f32 %v5120, %v5144
      %5169 = vrot.lane.b32.xlu0 %v5153, 121
      %v5170 = vpop.permute.xlu0 %5169
      %5171 = vrot.lane.b32.xlu0 %v5154, 121
      %v5172 = vpop.permute.xlu0 %5171
      %5173 = vrot.lane.b32.xlu0 %v5155, 121
      %v5174 = vpop.permute.xlu0 %5173
      %5175 = vrot.lane.b32.xlu0 %v5156, 121
      %v5176 = vpop.permute.xlu0 %5175
      %5177 = vrot.lane.b32.xlu0 %v5157, 121
      %v5178 = vpop.permute.xlu0 %5177
      %5179 = vrot.lane.b32.xlu0 %v5158, 121
      %v5180 = vpop.permute.xlu0 %5179
      %5181 = vrot.lane.b32.xlu0 %v5159, 121
      %v5182 = vpop.permute.xlu0 %5181
      %5183 = vrot.lane.b32.xlu0 %v5160, 121
      %v5184 = vpop.permute.xlu0 %5183
      %v5193 = vmax.f32 %v5153, %v5170
      %v5194 = vmax.f32 %v5154, %v5172
      %v5195 = vmax.f32 %v5155, %v5174
      %v5196 = vmax.f32 %v5156, %v5176
      %v5197 = vmax.f32 %v5157, %v5178
      %v5198 = vmax.f32 %v5158, %v5180
      %v5199 = vmax.f32 %v5159, %v5182
      %v5200 = vmax.f32 %v5160, %v5184
      %v5201 = vpack.c.bf16 %v5194, %v5193
      %v5202 = vpack.c.bf16 %v5196, %v5195
      %v5203 = vpack.c.bf16 %v5198, %v5197
      %v5204 = vpack.c.bf16 %v5200, %v5199
      %v5205 = vld [vmem:[%s20] sm:$0xf]
      %v5206 = vld [vmem:[%s20 + $0x4] sm:$0xf]
      %v5207 = vld [vmem:[%s20 + $0x8] sm:$0xf]
      %v5208 = vld [vmem:[%s20 + $0xc] sm:$0xf]
      %v5209 = vld [vmem:[%s20 + $0x10] sm:$0x1]
      %v5215 = vunpack.c.l.b16 %v5205
      %v5216 = vunpack.c.l.b16 %v5206
      %v5217 = vunpack.c.l.b16 %v5207
      %v5218 = vunpack.c.l.b16 %v5208
      %v5219 = vunpack.c.l.b16 %v5209
      %v5220 = vpack.c.b16 %v5216, %v5215
      %v5221 = vpack.c.b16 %v5218, %v5217
      %v5222 = vpack.c.b16 %v5219, %v5219
      %vm5225 = vcmask 269312
      %v5227 = vsel %vm5225, %v5201, 0
      %v5230 = vsel %vm5225, %v5202, 0
      %v5233 = vsel %vm5225, %v5203, 0
      %v5236 = vsel %vm5225, %v5204, 0
      %v5239 = vand.u32 %v5222, %v1530
      %5241 = vmatpush.bf16.msra.mxu0 0
      %5242 = vmatpush.bf16.msra.mxu0 0
      %5243 = vmatpush.bf16.msra.mxu0 0
      %5244 = vmatpush.bf16.msra.mxu0 0
      %5245 = vmatpush.bf16.msra.mxu0 0
      %5246 = vmatpush.bf16.msra.mxu0 %v5239
      %5247 = vmatpush.bf16.msra.mxu0 %v5221
      %5248 = vmatpush.bf16.msra.mxu0 %v5220
      %5249 = vmatmul.bf16.gmra.mxu0 %v5227
      %v5250 = vpop.f32.mrf.mxu0
      %v5251 = vadd.f32 0.0, %v5250
      %v5252 = vpop.f32.mrf.mxu0
      %v5253 = vadd.f32 0.0, %v5252
      %5254 = vmatmul.bf16.gmra.mxu0 %v5230
      %v5255 = vpop.f32.mrf.mxu0
      %v5256 = vadd.f32 0.0, %v5255
      %v5257 = vpop.f32.mrf.mxu0
      %v5258 = vadd.f32 0.0, %v5257
      %5259 = vmatmul.bf16.gmra.mxu0 %v5233
      %v5260 = vpop.f32.mrf.mxu0
      %v5261 = vadd.f32 0.0, %v5260
      %v5262 = vpop.f32.mrf.mxu0
      %v5263 = vadd.f32 0.0, %v5262
      %5264 = vmatmul.bf16.gmra.mxu0 %v5236
      %v5265 = vpop.f32.mrf.mxu0
      %v5266 = vadd.f32 0.0, %v5265
      %v5267 = vpop.f32.mrf.mxu0
      %v5268 = vadd.f32 0.0, %v5267
      %5269 = vdwg.mxu0
      %vm5270 = vcmask 72704
      %5271 = vst.msk [vmem:[%s653] sm:$0xff] %vm5270, %v5251
      %5272 = vst.msk [vmem:[%s653 + $0x8] sm:$0xff] %vm5270, %v5253
      %5273 = vst.msk [vmem:[%s653 + $0x10] sm:$0xff] %vm5270, %v5256
      %5274 = vst.msk [vmem:[%s653 + $0x18] sm:$0xff] %vm5270, %v5258
      %5275 = vst.msk [vmem:[%s653 + $0x20] sm:$0xff] %vm5270, %v5261
      %5276 = vst.msk [vmem:[%s653 + $0x28] sm:$0xff] %vm5270, %v5263
      %5277 = vst.msk [vmem:[%s653 + $0x30] sm:$0xff] %vm5270, %v5266
      %5278 = vst.msk [vmem:[%s653 + $0x38] sm:$0xff] %vm5270, %v5268
      %p5279 = scmp.lt.s32.totalorder %s32, 1
      %s5280 = scalar_select %p5279, %s32, 1
      %s5281 = smul.addr %s5280, 8
      %s5282 = smul.addr %s5281, 8
      %s5283 = scalar_lea.vmem %s21, %s5282
      // Predicated region
      $region105: #{custom_cnn2d_forward.1} parent=103 // pred_check
        %p5284 = pneg %p496
      $region106: #{custom_cnn2d_forward.1} parent=103 // pred_check_branch
        %5286 = sbr.rel (%p5284) target = $region108
      $region107: #{custom_cnn2d_forward.1} parent=103 // pred_region
        _
      $region108: #{custom_cnn2d_forward.1} parent=103 // pred_fallthru
        _
    $region104: #{custom_cnn2d_forward.1} parent=5 // pred_fallthru
      _
    %p5287 = scmp.le.s32.totalorder 2, %s27
    // Predicated region
    $region109: #{custom_cnn2d_forward.1} parent=5 // pred_check
      %p5288 = pneg %p5287
    $region110: #{custom_cnn2d_forward.1} parent=5 // pred_check_branch
      %5290 = sbr.rel (%p5288) target = $region112
    $region111: #{custom_cnn2d_forward.1} parent=5 // pred_region
      %s5291 = ssub.s32 %s27, 2
      // Predicated region
      $region113: #{custom_cnn2d_forward.1} parent=111 // pred_check
        %p5292 = pneg %p502
      $region114: #{custom_cnn2d_forward.1} parent=111 // pred_check_branch
        %5294 = sbr.rel (%p5292) target = $region116
      $region115: #{custom_cnn2d_forward.1} parent=111 // pred_region
        %p5295 = scmp.lt.s32.totalorder %s33, 1
        %s5296 = scalar_select %p5295, %s33, 1
        %s5297 = smul.addr %s5296, 8
        %s5298 = smul.addr %s5297, 8
        %s5299 = scalar_lea.vmem %s21, %s5298
      $region116: #{custom_cnn2d_forward.1} parent=111 // pred_fallthru
        _
    $region112: #{custom_cnn2d_forward.1} parent=5 // pred_fallthru
      _
  $region6: #{custom_cnn2d_forward.1} parent=0 // loop_footer
    %s31 = sadd.s32 1, %s27
  $region7: #{custom_cnn2d_forward.1} parent=0 // loop_footer_branch
    %26 = sbr.rel target = $region3
  $region8: #{custom_cnn2d_forward.1} parent=0 // loop_exit
    _

</llo_original>
